<compile_context>
chip_gen: v7x
topology: tpu7x:2x2x1
jax: 0.10.0
libtpu: 0.0.40
codegen_flags: <defaults>
</compile_context>

<pallas_src>
import numpy as np
import jax
import jax.numpy as jnp
from jax import lax
from jax.experimental import pallas as pl
from jax.experimental.pallas import tpu as pltpu

# ----------------- deterministic module constants (from __init__ defaults) -----------------
MASS_Q = 2.0
MASS_P = 0.2
M_TOTAL = MASS_Q + MASS_P
INV_M_TOTAL = 1.0 / M_TOTAL
_J = np.array([[0.01566089, 3.18037e-06, 0.0],
               [3.18037e-06, 0.01562078, 0.0],
               [0.0, 0.0, 0.02226868]], dtype=np.float64)
_JINV = np.linalg.inv(_J)
L_PEND = 0.5
INV_L_PEND = 1.0 / L_PEND
GRAVITY_Z = -9.81
MOTOR_DIST = 0.28
KF = 0.025
KM = 0.00029958
DT = 0.05
ACT_SCALE = 10.0
U_HOVER = -M_TOTAL * GRAVITY_Z / ACT_SCALE / KF / 4.0   # 21.582
_ss = np.array([[1.0, 1.0, 0.0], [1.0, -1.0, 0.0],
                [-1.0, -1.0, 0.0], [-1.0, 1.0, 0.0]], dtype=np.float64)
SS = _ss / np.linalg.norm(_ss, axis=-1, keepdims=True)   # (4, 3) normalized motor arms

NX = 14   # [r(3), mrp(3), theta(1), v(3), w(3), theta_dot(1)]
NU = 4

# ----------------- tiling constants -----------------
CHUNK_ROWS = 8            # sublanes per in-kernel chunk: one (8, 128) vreg per component
DEFAULT_BLOCK_ROWS = 256  # rows per grid step (32768 batch elems, ~8 MB double-buffered VMEM)


# ----------------- small-vector helpers on tuples of tile-shaped arrays -----------------
def _cross3(a, b):
    return (a[1] * b[2] - a[2] * b[1],
            a[2] * b[0] - a[0] * b[2],
            a[0] * b[1] - a[1] * b[0])


def _dot3(a, b):
    return a[0] * b[0] + a[1] * b[1] + a[2] * b[2]


def _recip_exact(d):
    return 1.0 / d


def _recip_fast(d):
    # EUP approximate reciprocal (moves the divide off the saturated VALU slot) plus one
    # Newton-Raphson refinement, keeping relative error far below the test tolerance.
    r = pl.reciprocal(d, approx=True)
    return r * (2.0 - d * r)


def _mrp2quat(m, recip):
    ns = _dot3(m, m)
    inv = recip(1.0 + ns)
    qw = (1.0 - ns) * inv
    qv = (2.0 * m[0] * inv, 2.0 * m[1] * inv, 2.0 * m[2] * inv)
    return qw, qv


def _quatrot(qw, qv, v):
    # rotate vector v by quaternion (qw, qv):  v + qw*t + qv x t,  t = 2*(qv x v)
    t = _cross3(qv, v)
    t = (2.0 * t[0], 2.0 * t[1], 2.0 * t[2])
    c = _cross3(qv, t)
    return (v[0] + qw * t[0] + c[0],
            v[1] + qw * t[1] + c[1],
            v[2] + qw * t[2] + c[2])


def _quatrot_x(qw, qv, v):
    # x-component only of _quatrot (the pendulum coupling only needs x_ddot)
    t0 = 2.0 * (qv[1] * v[2] - qv[2] * v[1])
    t1 = 2.0 * (qv[2] * v[0] - qv[0] * v[2])
    t2 = 2.0 * (qv[0] * v[1] - qv[1] * v[0])
    c0 = qv[1] * t2 - qv[2] * t1
    return v[0] + qw * t0 + c0


def _quatrot_neg_gravity(qw, qv, gz):
    # rotate (0, 0, gz) by quaternion (qw, -qv) [== mrp2quat(-m)]; specialized to skip the
    # duplicate mrp2quat and the structurally-zero components of the gravity vector.
    t0 = -2.0 * qv[1] * gz
    t1 = 2.0 * qv[0] * gz
    c0 = qv[2] * t1
    c1 = -qv[2] * t0
    c2 = -qv[0] * t1 + qv[1] * t0
    return (qw * t0 + c0, qw * t1 + c1, gz + c2)


def _w2pdot_mrp(m, w):
    # MRP kinematics: pdot = 1/4 [(1 - p.p) I + 2[p]x + 2 p p^T] w
    ns = _dot3(m, m)
    mw = _dot3(m, w)
    cmw = _cross3(m, w)
    return tuple(0.25 * ((1.0 - ns) * w[i] + 2.0 * cmw[i] + 2.0 * mw * m[i])
                 for i in range(3))


def _matvec3_sparse(mat, vec):
    # constant-coefficient 3x3 matvec; structurally-zero coefficients are skipped at trace time
    # (Mosaic/XLA will not fold 0.0*x due to NaN/Inf semantics).
    out = []
    for i in range(3):
        acc = None
        for j in range(3):
            c = float(mat[i, j])
            if c != 0.0:
                term = c * vec[j]
                acc = term if acc is None else acc + term
        out.append(acc)
    return tuple(out)


def _control_wrench(uc):
    # Control-only quantities (thrust + body torques). The torch module applies the control as a
    # zero-order hold across all four RK4 stages, so this is computed ONCE per chunk and passed
    # into _dynamics instead of being recomputed four times.
    u = tuple(ACT_SCALE * (ui + U_HOVER) for ui in uc)
    thrust = KF * (u[0] + u[1] + u[2] + u[3])
    kfu = tuple(KF * ui for ui in u)
    tau_x = MOTOR_DIST * (float(SS[0, 1]) * kfu[0] + float(SS[1, 1]) * kfu[1]
                          + float(SS[2, 1]) * kfu[2] + float(SS[3, 1]) * kfu[3])
    tau_y = -MOTOR_DIST * (float(SS[0, 0]) * kfu[0] + float(SS[1, 0]) * kfu[1]
                           + float(SS[2, 0]) * kfu[2] + float(SS[3, 0]) * kfu[3])
    tau_z = KM * (u[0] - u[1] + u[2] - u[3])
    return thrust, (tau_x, tau_y, tau_z)


def _dynamics(xc, thrust, tau, recip):
    """Continuous-time dynamics. xc: 14-tuple of tiles; thrust/tau: hoisted control wrench."""
    m = xc[3:6]
    theta = xc[6]
    v = xc[7:10]
    w = xc[10:13]
    theta_dot = xc[13]

    qw, qv = _mrp2quat(m, recip)

    # ---- forces (body frame): rotor thrust + gravity rotated into body frame via q(-m) ----
    g_body = _quatrot_neg_gravity(qw, qv, M_TOTAL * GRAVITY_Z)
    F = (g_body[0], g_body[1], thrust + g_body[2])

    # ---- kinematics / Newton-Euler ----
    mdot = _w2pdot_mrp(m, w)
    pdot = _quatrot(qw, qv, v)
    wxv = _cross3(w, v)
    vdot = tuple(F[i] * INV_M_TOTAL - wxv[i] for i in range(3))

    Jw = _matvec3_sparse(_J, w)
    wJw = _cross3(w, Jw)
    rhs = tuple(tau[i] - wJw[i] for i in range(3))
    wdot = _matvec3_sparse(_JINV, rhs)

    # ---- pendulum ----
    x_ddot = _quatrot_x(qw, qv, vdot)
    theta_ddot = (GRAVITY_Z * jnp.sin(theta) + x_ddot * jnp.cos(theta)) * INV_L_PEND
    # TODO(synk): optional (accuracy-caveated) angle-addition reuse of stage-1 sin/cos was not
    # applied, to keep the kernel numerically identical to the torch RK4 reference.

    return pdot + mdot + (theta_dot,) + vdot + wdot + (theta_ddot,)


def _rk4_components(xc, thrust, tau, recip):
    """RK4 step with a running accumulator (minimizes simultaneously-live intermediates)."""
    dt6 = DT / 6.0
    dt3 = DT / 3.0
    dt2 = DT / 2.0

    k = _dynamics(xc, thrust, tau, recip)                           # k1
    acc = tuple(xc[i] + dt6 * k[i] for i in range(NX))
    xt = tuple(xc[i] + dt2 * k[i] for i in range(NX))

    k = _dynamics(xt, thrust, tau, recip)                           # k2
    acc = tuple(acc[i] + dt3 * k[i] for i in range(NX))
    xt = tuple(xc[i] + dt2 * k[i] for i in range(NX))

    k = _dynamics(xt, thrust, tau, recip)                           # k3
    acc = tuple(acc[i] + dt3 * k[i] for i in range(NX))
    xt = tuple(xc[i] + DT * k[i] for i in range(NX))

    k = _dynamics(xt, thrust, tau, recip)                           # k4
    return tuple(acc[i] + dt6 * k[i] for i in range(NX))


# ----------------- Pallas kernel -----------------
def _rk4_kernel(x_ref, u_ref, o_ref):
    # x_ref: (NX, BLOCK_ROWS, 128), u_ref: (NU, BLOCK_ROWS, 128), o_ref: (NX, BLOCK_ROWS, 128).
    # The large block amortizes grid-step overhead; the fori_loop keeps the per-iteration working
    # set at one (8, 128) vreg per live component slab.
    n_chunks = x_ref.shape[1] // CHUNK_ROWS

    def chunk(j, carry):
        r0 = pl.multiple_of(j * CHUNK_ROWS, CHUNK_ROWS)
        rows = pl.ds(r0, CHUNK_ROWS)
        xc = tuple(x_ref[i, rows, :] for i in range(NX))
        uc = tuple(u_ref[i, rows, :] for i in range(NU))
        thrust, tau = _control_wrench(uc)      # hoisted: constant across the 4 RK4 stages
        out = _rk4_components(xc, thrust, tau, _recip_fast)
        for i in range(NX):
            o_ref[i, rows, :] = out[i]         # full-tile, lane-dense unmasked stores
        return carry

    lax.fori_loop(0, n_chunks, chunk, 0)


def flying_cartpole_step_cm(x_cm, u_cm, *, block_rows=None, donate_state=True):
    """Component-major entry point (no relayout): x_cm (NX, R, 128), u_cm (NU, R, 128) f32,
    R a multiple of 8. Returns the next state in the same layout. With donate_state=True the
    x_cm buffer is aliased to the output (in-place stepping for simulation loops)."""
    nxc, R, lanes = x_cm.shape
    assert nxc == NX and lanes == 128 and R % CHUNK_ROWS == 0
    if block_rows is None:
        block_rows = DEFAULT_BLOCK_ROWS if R >= DEFAULT_BLOCK_ROWS else R
    assert block_rows % CHUNK_ROWS == 0 and R % block_rows == 0
    grid = (R // block_rows,)
    return pl.pallas_call(
        _rk4_kernel,
        out_shape=jax.ShapeDtypeStruct((NX, R, 128), jnp.float32),
        grid=grid,
        in_specs=[pl.BlockSpec((NX, block_rows, 128), lambda i: (0, i, 0)),
                  pl.BlockSpec((NU, block_rows, 128), lambda i: (0, i, 0))],
        out_specs=pl.BlockSpec((NX, block_rows, 128), lambda i: (0, i, 0)),
        input_output_aliases=({0: 0} if donate_state else {}),
        compiler_params=pltpu.CompilerParams(
            dimension_semantics=("parallel",)),   # shards batch blocks across v7x's 2 TCs
    )(x_cm, u_cm)


# ----------------- wrapper-side layout helpers (plain JAX glue) -----------------
def _choose_layout(batch):
    rows_needed = -(-batch // 128)
    if rows_needed <= DEFAULT_BLOCK_ROWS:
        block_rows = max(CHUNK_ROWS, -(-rows_needed // CHUNK_ROWS) * CHUNK_ROWS)
        total_rows = block_rows
    else:
        block_rows = DEFAULT_BLOCK_ROWS
        total_rows = -(-rows_needed // block_rows) * block_rows
    return total_rows, block_rows


def _to_component_major(a, n_comp, b_pad):
    a = jnp.asarray(a, jnp.float32)
    b = a.shape[0]
    if b_pad != b:
        a = jnp.pad(a, ((0, b_pad - b), (0, 0)))
    return a.T.reshape(n_comp, b_pad // 128, 128)


@jax.jit
def flying_cartpole_step(x, u):
    """PyTorch-convention wrapper: x (B, 14), u (B, 4) -> next state (B, 14).
    Does one pad+relayout; production code should keep the state component-major and call
    flying_cartpole_step_cm directly (no relayout, aliased in-place state update)."""
    B = x.shape[0]
    total_rows, block_rows = _choose_layout(B)
    b_pad = total_rows * 128
    x_cm = _to_component_major(x, NX, b_pad)
    u_cm = _to_component_major(u, NU, b_pad)
    out_cm = flying_cartpole_step_cm(x_cm, u_cm, block_rows=block_rows)
    return out_cm.reshape(NX, b_pad).T[:B]


# ----------------- pure-JAX reference (same math, exact divide, no Pallas) -----------------
@jax.jit
def flying_cartpole_step_ref(x, u):
    xT = jnp.asarray(x, jnp.float32).T        # (NX, B)
    uT = jnp.asarray(u, jnp.float32).T        # (NU, B)
    xc = tuple(xT[i] for i in range(NX))
    uc = tuple(uT[i] for i in range(NU))
    thrust, tau = _control_wrench(uc)
    out = _rk4_components(xc, thrust, tau, _recip_exact)
    return jnp.stack(out, axis=0).T


if __name__ == "__main__":
    key = jax.random.PRNGKey(0)
    kx, ku, kx2, ku2, kx3, ku3 = jax.random.split(key, 6)

    # ---- small PyTorch-convention batch ----
    B = 8
    x = 0.1 * jax.random.normal(kx, (B, NX), dtype=jnp.float32)
    u = 0.1 * jax.random.normal(ku, (B, NU), dtype=jnp.float32)
    y = jax.block_until_ready(flying_cartpole_step(x, u))
    y_ref = jax.block_until_ready(flying_cartpole_step_ref(x, u))
    assert y.shape == (B, NX)
    np.testing.assert_allclose(np.asarray(y), np.asarray(y_ref), rtol=1e-4, atol=1e-4)

    # ---- exercises the multi-chunk in-kernel fori_loop (more than one 8-row chunk) ----
    B2 = 2000
    x2 = 0.1 * jax.random.normal(kx2, (B2, NX), dtype=jnp.float32)
    u2 = 0.1 * jax.random.normal(ku2, (B2, NU), dtype=jnp.float32)
    y2 = jax.block_until_ready(flying_cartpole_step(x2, u2))
    y2_ref = jax.block_until_ready(flying_cartpole_step_ref(x2, u2))
    np.testing.assert_allclose(np.asarray(y2), np.asarray(y2_ref), rtol=1e-4, atol=1e-4)

    # ---- component-major entry point with grid > 1 (multi-block + aliased output) ----
    R3 = 16
    x3_cm = 0.1 * jax.random.normal(kx3, (NX, R3, 128), dtype=jnp.float32)
    u3_cm = 0.1 * jax.random.normal(ku3, (NU, R3, 128), dtype=jnp.float32)
    y3_cm = jax.block_until_ready(
        flying_cartpole_step_cm(x3_cm, u3_cm, block_rows=CHUNK_ROWS))
    y3_ref = jax.block_until_ready(
        flying_cartpole_step_ref(x3_cm.reshape(NX, -1).T, u3_cm.reshape(NU, -1).T))
    np.testing.assert_allclose(np.asarray(y3_cm.reshape(NX, -1).T),
                               np.asarray(y3_ref), rtol=1e-4, atol=1e-4)

    print("KERNEL_OK")
</pallas_src>

<mosaic_0001>
module attributes {stable_mosaic.version = 11 : i64} {
  func.func @_rk4_kernel(%arg0: i32, %arg1: memref<14x8x128xf32, #tpu.memory_space<vmem>>, %arg2: memref<4x8x128xf32, #tpu.memory_space<vmem>>, %arg3: memref<14x8x128xf32, #tpu.memory_space<vmem>>) attributes {dimension_semantics = [#tpu.dimension_semantics<parallel>], iteration_bounds = array<i64: 1>, scalar_prefetch = 0 : i64, scratch_operands = 0 : i64, tpu.core_type = #tpu.core_type<tc>, window_params = [{transform_indices = @transform_0, window_bounds = array<i64: 14, 8, 128>}, {transform_indices = @transform_1, window_bounds = array<i64: 4, 8, 128>}, {transform_indices = @transform_2, window_bounds = array<i64: 14, 8, 128>}]} {
    %c0_i32 = arith.constant 0 : i32
    %c8_i32 = arith.constant 8 : i32
    %0 = arith.muli %c0_i32, %c8_i32 : i32
    %1 = tpu.assume_multiple %0, 8 : i32
    %c0 = arith.constant 0 : index
    %2 = arith.index_cast %1 : i32 to index
    %c0_0 = arith.constant 0 : index
    %3 = vector.load %arg1[%c0, %2, %c0_0] : memref<14x8x128xf32, #tpu.memory_space<vmem>>, vector<1x8x128xf32>
    %4 = vector.shape_cast %3 : vector<1x8x128xf32> to vector<8x128xf32>
    %c1 = arith.constant 1 : index
    %5 = arith.index_cast %1 : i32 to index
    %c0_1 = arith.constant 0 : index
    %6 = vector.load %arg1[%c1, %5, %c0_1] : memref<14x8x128xf32, #tpu.memory_space<vmem>>, vector<1x8x128xf32>
    %7 = vector.shape_cast %6 : vector<1x8x128xf32> to vector<8x128xf32>
    %c2 = arith.constant 2 : index
    %8 = arith.index_cast %1 : i32 to index
    %c0_2 = arith.constant 0 : index
    %9 = vector.load %arg1[%c2, %8, %c0_2] : memref<14x8x128xf32, #tpu.memory_space<vmem>>, vector<1x8x128xf32>
    %10 = vector.shape_cast %9 : vector<1x8x128xf32> to vector<8x128xf32>
    %c3 = arith.constant 3 : index
    %11 = arith.index_cast %1 : i32 to index
    %c0_3 = arith.constant 0 : index
    %12 = vector.load %arg1[%c3, %11, %c0_3] : memref<14x8x128xf32, #tpu.memory_space<vmem>>, vector<1x8x128xf32>
    %13 = vector.shape_cast %12 : vector<1x8x128xf32> to vector<8x128xf32>
    %c4 = arith.constant 4 : index
    %14 = arith.index_cast %1 : i32 to index
    %c0_4 = arith.constant 0 : index
    %15 = vector.load %arg1[%c4, %14, %c0_4] : memref<14x8x128xf32, #tpu.memory_space<vmem>>, vector<1x8x128xf32>
    %16 = vector.shape_cast %15 : vector<1x8x128xf32> to vector<8x128xf32>
    %c5 = arith.constant 5 : index
    %17 = arith.index_cast %1 : i32 to index
    %c0_5 = arith.constant 0 : index
    %18 = vector.load %arg1[%c5, %17, %c0_5] : memref<14x8x128xf32, #tpu.memory_space<vmem>>, vector<1x8x128xf32>
    %19 = vector.shape_cast %18 : vector<1x8x128xf32> to vector<8x128xf32>
    %c6 = arith.constant 6 : index
    %20 = arith.index_cast %1 : i32 to index
    %c0_6 = arith.constant 0 : index
    %21 = vector.load %arg1[%c6, %20, %c0_6] : memref<14x8x128xf32, #tpu.memory_space<vmem>>, vector<1x8x128xf32>
    %22 = vector.shape_cast %21 : vector<1x8x128xf32> to vector<8x128xf32>
    %c7 = arith.constant 7 : index
    %23 = arith.index_cast %1 : i32 to index
    %c0_7 = arith.constant 0 : index
    %24 = vector.load %arg1[%c7, %23, %c0_7] : memref<14x8x128xf32, #tpu.memory_space<vmem>>, vector<1x8x128xf32>
    %25 = vector.shape_cast %24 : vector<1x8x128xf32> to vector<8x128xf32>
    %c8 = arith.constant 8 : index
    %26 = arith.index_cast %1 : i32 to index
    %c0_8 = arith.constant 0 : index
    %27 = vector.load %arg1[%c8, %26, %c0_8] : memref<14x8x128xf32, #tpu.memory_space<vmem>>, vector<1x8x128xf32>
    %28 = vector.shape_cast %27 : vector<1x8x128xf32> to vector<8x128xf32>
    %c9 = arith.constant 9 : index
    %29 = arith.index_cast %1 : i32 to index
    %c0_9 = arith.constant 0 : index
    %30 = vector.load %arg1[%c9, %29, %c0_9] : memref<14x8x128xf32, #tpu.memory_space<vmem>>, vector<1x8x128xf32>
    %31 = vector.shape_cast %30 : vector<1x8x128xf32> to vector<8x128xf32>
    %c10 = arith.constant 10 : index
    %32 = arith.index_cast %1 : i32 to index
    %c0_10 = arith.constant 0 : index
    %33 = vector.load %arg1[%c10, %32, %c0_10] : memref<14x8x128xf32, #tpu.memory_space<vmem>>, vector<1x8x128xf32>
    %34 = vector.shape_cast %33 : vector<1x8x128xf32> to vector<8x128xf32>
    %c11 = arith.constant 11 : index
    %35 = arith.index_cast %1 : i32 to index
    %c0_11 = arith.constant 0 : index
    %36 = vector.load %arg1[%c11, %35, %c0_11] : memref<14x8x128xf32, #tpu.memory_space<vmem>>, vector<1x8x128xf32>
    %37 = vector.shape_cast %36 : vector<1x8x128xf32> to vector<8x128xf32>
    %c12 = arith.constant 12 : index
    %38 = arith.index_cast %1 : i32 to index
    %c0_12 = arith.constant 0 : index
    %39 = vector.load %arg1[%c12, %38, %c0_12] : memref<14x8x128xf32, #tpu.memory_space<vmem>>, vector<1x8x128xf32>
    %40 = vector.shape_cast %39 : vector<1x8x128xf32> to vector<8x128xf32>
    %c13 = arith.constant 13 : index
    %41 = arith.index_cast %1 : i32 to index
    %c0_13 = arith.constant 0 : index
    %42 = vector.load %arg1[%c13, %41, %c0_13] : memref<14x8x128xf32, #tpu.memory_space<vmem>>, vector<1x8x128xf32>
    %43 = vector.shape_cast %42 : vector<1x8x128xf32> to vector<8x128xf32>
    %c0_14 = arith.constant 0 : index
    %44 = arith.index_cast %1 : i32 to index
    %c0_15 = arith.constant 0 : index
    %45 = vector.load %arg2[%c0_14, %44, %c0_15] : memref<4x8x128xf32, #tpu.memory_space<vmem>>, vector<1x8x128xf32>
    %46 = vector.shape_cast %45 : vector<1x8x128xf32> to vector<8x128xf32>
    %c1_16 = arith.constant 1 : index
    %47 = arith.index_cast %1 : i32 to index
    %c0_17 = arith.constant 0 : index
    %48 = vector.load %arg2[%c1_16, %47, %c0_17] : memref<4x8x128xf32, #tpu.memory_space<vmem>>, vector<1x8x128xf32>
    %49 = vector.shape_cast %48 : vector<1x8x128xf32> to vector<8x128xf32>
    %c2_18 = arith.constant 2 : index
    %50 = arith.index_cast %1 : i32 to index
    %c0_19 = arith.constant 0 : index
    %51 = vector.load %arg2[%c2_18, %50, %c0_19] : memref<4x8x128xf32, #tpu.memory_space<vmem>>, vector<1x8x128xf32>
    %52 = vector.shape_cast %51 : vector<1x8x128xf32> to vector<8x128xf32>
    %c3_20 = arith.constant 3 : index
    %53 = arith.index_cast %1 : i32 to index
    %c0_21 = arith.constant 0 : index
    %54 = vector.load %arg2[%c3_20, %53, %c0_21] : memref<4x8x128xf32, #tpu.memory_space<vmem>>, vector<1x8x128xf32>
    %55 = vector.shape_cast %54 : vector<1x8x128xf32> to vector<8x128xf32>
    %cst = arith.constant 2.158200e+01 : f32
    %56 = vector.broadcast %cst : f32 to vector<8x128xf32>
    %57 = arith.addf %46, %56 : vector<8x128xf32>
    %cst_22 = arith.constant 1.000000e+01 : f32
    %58 = vector.broadcast %cst_22 : f32 to vector<8x128xf32>
    %59 = arith.mulf %58, %57 : vector<8x128xf32>
    %cst_23 = arith.constant 2.158200e+01 : f32
    %60 = vector.broadcast %cst_23 : f32 to vector<8x128xf32>
    %61 = arith.addf %49, %60 : vector<8x128xf32>
    %cst_24 = arith.constant 1.000000e+01 : f32
    %62 = vector.broadcast %cst_24 : f32 to vector<8x128xf32>
    %63 = arith.mulf %62, %61 : vector<8x128xf32>
    %cst_25 = arith.constant 2.158200e+01 : f32
    %64 = vector.broadcast %cst_25 : f32 to vector<8x128xf32>
    %65 = arith.addf %52, %64 : vector<8x128xf32>
    %cst_26 = arith.constant 1.000000e+01 : f32
    %66 = vector.broadcast %cst_26 : f32 to vector<8x128xf32>
    %67 = arith.mulf %66, %65 : vector<8x128xf32>
    %cst_27 = arith.constant 2.158200e+01 : f32
    %68 = vector.broadcast %cst_27 : f32 to vector<8x128xf32>
    %69 = arith.addf %55, %68 : vector<8x128xf32>
    %cst_28 = arith.constant 1.000000e+01 : f32
    %70 = vector.broadcast %cst_28 : f32 to vector<8x128xf32>
    %71 = arith.mulf %70, %69 : vector<8x128xf32>
    %72 = arith.addf %59, %63 : vector<8x128xf32>
    %73 = arith.addf %72, %67 : vector<8x128xf32>
    %74 = arith.addf %73, %71 : vector<8x128xf32>
    %cst_29 = arith.constant 2.500000e-02 : f32
    %75 = vector.broadcast %cst_29 : f32 to vector<8x128xf32>
    %76 = arith.mulf %75, %74 : vector<8x128xf32>
    %cst_30 = arith.constant 2.500000e-02 : f32
    %77 = vector.broadcast %cst_30 : f32 to vector<8x128xf32>
    %78 = arith.mulf %77, %59 : vector<8x128xf32>
    %cst_31 = arith.constant 2.500000e-02 : f32
    %79 = vector.broadcast %cst_31 : f32 to vector<8x128xf32>
    %80 = arith.mulf %79, %63 : vector<8x128xf32>
    %cst_32 = arith.constant 2.500000e-02 : f32
    %81 = vector.broadcast %cst_32 : f32 to vector<8x128xf32>
    %82 = arith.mulf %81, %67 : vector<8x128xf32>
    %cst_33 = arith.constant 2.500000e-02 : f32
    %83 = vector.broadcast %cst_33 : f32 to vector<8x128xf32>
    %84 = arith.mulf %83, %71 : vector<8x128xf32>
    %cst_34 = arith.constant 0.707106769 : f32
    %85 = vector.broadcast %cst_34 : f32 to vector<8x128xf32>
    %86 = arith.mulf %85, %78 : vector<8x128xf32>
    %cst_35 = arith.constant -0.707106769 : f32
    %87 = vector.broadcast %cst_35 : f32 to vector<8x128xf32>
    %88 = arith.mulf %87, %80 : vector<8x128xf32>
    %89 = arith.addf %86, %88 : vector<8x128xf32>
    %cst_36 = arith.constant -0.707106769 : f32
    %90 = vector.broadcast %cst_36 : f32 to vector<8x128xf32>
    %91 = arith.mulf %90, %82 : vector<8x128xf32>
    %92 = arith.addf %89, %91 : vector<8x128xf32>
    %cst_37 = arith.constant 0.707106769 : f32
    %93 = vector.broadcast %cst_37 : f32 to vector<8x128xf32>
    %94 = arith.mulf %93, %84 : vector<8x128xf32>
    %95 = arith.addf %92, %94 : vector<8x128xf32>
    %cst_38 = arith.constant 2.800000e-01 : f32
    %96 = vector.broadcast %cst_38 : f32 to vector<8x128xf32>
    %97 = arith.mulf %96, %95 : vector<8x128xf32>
    %cst_39 = arith.constant 0.707106769 : f32
    %98 = vector.broadcast %cst_39 : f32 to vector<8x128xf32>
    %99 = arith.mulf %98, %78 : vector<8x128xf32>
    %cst_40 = arith.constant 0.707106769 : f32
    %100 = vector.broadcast %cst_40 : f32 to vector<8x128xf32>
    %101 = arith.mulf %100, %80 : vector<8x128xf32>
    %102 = arith.addf %99, %101 : vector<8x128xf32>
    %cst_41 = arith.constant -0.707106769 : f32
    %103 = vector.broadcast %cst_41 : f32 to vector<8x128xf32>
    %104 = arith.mulf %103, %82 : vector<8x128xf32>
    %105 = arith.addf %102, %104 : vector<8x128xf32>
    %cst_42 = arith.constant -0.707106769 : f32
    %106 = vector.broadcast %cst_42 : f32 to vector<8x128xf32>
    %107 = arith.mulf %106, %84 : vector<8x128xf32>
    %108 = arith.addf %105, %107 : vector<8x128xf32>
    %cst_43 = arith.constant -2.800000e-01 : f32
    %109 = vector.broadcast %cst_43 : f32 to vector<8x128xf32>
    %110 = arith.mulf %109, %108 : vector<8x128xf32>
    %111 = arith.subf %59, %63 : vector<8x128xf32>
    %112 = arith.addf %111, %67 : vector<8x128xf32>
    %113 = arith.subf %112, %71 : vector<8x128xf32>
    %cst_44 = arith.constant 2.995800e-04 : f32
    %114 = vector.broadcast %cst_44 : f32 to vector<8x128xf32>
    %115 = arith.mulf %114, %113 : vector<8x128xf32>
    %116 = arith.mulf %13, %13 : vector<8x128xf32>
    %117 = arith.mulf %16, %16 : vector<8x128xf32>
    %118 = arith.addf %116, %117 : vector<8x128xf32>
    %119 = arith.mulf %19, %19 : vector<8x128xf32>
    %120 = arith.addf %118, %119 : vector<8x128xf32>
    %cst_45 = arith.constant 1.000000e+00 : f32
    %121 = vector.broadcast %cst_45 : f32 to vector<8x128xf32>
    %122 = arith.addf %121, %120 : vector<8x128xf32>
    %123 = tpu.reciprocal %122 {approx = true} : vector<8x128xf32> -> vector<8x128xf32>
    %124 = arith.mulf %122, %123 : vector<8x128xf32>
    %cst_46 = arith.constant 2.000000e+00 : f32
    %125 = vector.broadcast %cst_46 : f32 to vector<8x128xf32>
    %126 = arith.subf %125, %124 : vector<8x128xf32>
    %127 = arith.mulf %123, %126 : vector<8x128xf32>
    %cst_47 = arith.constant 1.000000e+00 : f32
    %128 = vector.broadcast %cst_47 : f32 to vector<8x128xf32>
    %129 = arith.subf %128, %120 : vector<8x128xf32>
    %130 = arith.mulf %129, %127 : vector<8x128xf32>
    %cst_48 = arith.constant 2.000000e+00 : f32
    %131 = vector.broadcast %cst_48 : f32 to vector<8x128xf32>
    %132 = arith.mulf %131, %13 : vector<8x128xf32>
    %133 = arith.mulf %132, %127 : vector<8x128xf32>
    %cst_49 = arith.constant 2.000000e+00 : f32
    %134 = vector.broadcast %cst_49 : f32 to vector<8x128xf32>
    %135 = arith.mulf %134, %16 : vector<8x128xf32>
    %136 = arith.mulf %135, %127 : vector<8x128xf32>
    %cst_50 = arith.constant 2.000000e+00 : f32
    %137 = vector.broadcast %cst_50 : f32 to vector<8x128xf32>
    %138 = arith.mulf %137, %19 : vector<8x128xf32>
    %139 = arith.mulf %138, %127 : vector<8x128xf32>
    %cst_51 = arith.constant -2.000000e+00 : f32
    %140 = vector.broadcast %cst_51 : f32 to vector<8x128xf32>
    %141 = arith.mulf %140, %136 : vector<8x128xf32>
    %cst_52 = arith.constant -2.158200e+01 : f32
    %142 = vector.broadcast %cst_52 : f32 to vector<8x128xf32>
    %143 = arith.mulf %141, %142 : vector<8x128xf32>
    %cst_53 = arith.constant 2.000000e+00 : f32
    %144 = vector.broadcast %cst_53 : f32 to vector<8x128xf32>
    %145 = arith.mulf %144, %133 : vector<8x128xf32>
    %cst_54 = arith.constant -2.158200e+01 : f32
    %146 = vector.broadcast %cst_54 : f32 to vector<8x128xf32>
    %147 = arith.mulf %145, %146 : vector<8x128xf32>
    %148 = arith.mulf %139, %147 : vector<8x128xf32>
    %cst_55 = arith.constant 0.000000e+00 : f32
    %149 = vector.broadcast %cst_55 : f32 to vector<8x128xf32>
    %150 = arith.subf %149, %139 : vector<8x128xf32>
    %151 = arith.mulf %150, %143 : vector<8x128xf32>
    %cst_56 = arith.constant 0.000000e+00 : f32
    %152 = vector.broadcast %cst_56 : f32 to vector<8x128xf32>
    %153 = arith.subf %152, %133 : vector<8x128xf32>
    %154 = arith.mulf %153, %147 : vector<8x128xf32>
    %155 = arith.mulf %136, %143 : vector<8x128xf32>
    %156 = arith.addf %154, %155 : vector<8x128xf32>
    %157 = arith.mulf %130, %143 : vector<8x128xf32>
    %158 = arith.addf %157, %148 : vector<8x128xf32>
    %159 = arith.mulf %130, %147 : vector<8x128xf32>
    %160 = arith.addf %159, %151 : vector<8x128xf32>
    %cst_57 = arith.constant -2.158200e+01 : f32
    %161 = vector.broadcast %cst_57 : f32 to vector<8x128xf32>
    %162 = arith.addf %161, %156 : vector<8x128xf32>
    %163 = arith.addf %76, %162 : vector<8x128xf32>
    %164 = arith.mulf %13, %13 : vector<8x128xf32>
    %165 = arith.mulf %16, %16 : vector<8x128xf32>
    %166 = arith.addf %164, %165 : vector<8x128xf32>
    %167 = arith.mulf %19, %19 : vector<8x128xf32>
    %168 = arith.addf %166, %167 : vector<8x128xf32>
    %169 = arith.mulf %13, %34 : vector<8x128xf32>
    %170 = arith.mulf %16, %37 : vector<8x128xf32>
    %171 = arith.addf %169, %170 : vector<8x128xf32>
    %172 = arith.mulf %19, %40 : vector<8x128xf32>
    %173 = arith.addf %171, %172 : vector<8x128xf32>
    %174 = arith.mulf %16, %40 : vector<8x128xf32>
    %175 = arith.mulf %19, %37 : vector<8x128xf32>
    %176 = arith.subf %174, %175 : vector<8x128xf32>
    %177 = arith.mulf %19, %34 : vector<8x128xf32>
    %178 = arith.mulf %13, %40 : vector<8x128xf32>
    %179 = arith.subf %177, %178 : vector<8x128xf32>
    %180 = arith.mulf %13, %37 : vector<8x128xf32>
    %181 = arith.mulf %16, %34 : vector<8x128xf32>
    %182 = arith.subf %180, %181 : vector<8x128xf32>
    %cst_58 = arith.constant 1.000000e+00 : f32
    %183 = vector.broadcast %cst_58 : f32 to vector<8x128xf32>
    %184 = arith.subf %183, %168 : vector<8x128xf32>
    %185 = arith.mulf %184, %34 : vector<8x128xf32>
    %cst_59 = arith.constant 2.000000e+00 : f32
    %186 = vector.broadcast %cst_59 : f32 to vector<8x128xf32>
    %187 = arith.mulf %186, %176 : vector<8x128xf32>
    %188 = arith.addf %185, %187 : vector<8x128xf32>
    %cst_60 = arith.constant 2.000000e+00 : f32
    %189 = vector.broadcast %cst_60 : f32 to vector<8x128xf32>
    %190 = arith.mulf %189, %173 : vector<8x128xf32>
    %191 = arith.mulf %190, %13 : vector<8x128xf32>
    %192 = arith.addf %188, %191 : vector<8x128xf32>
    %cst_61 = arith.constant 2.500000e-01 : f32
    %193 = vector.broadcast %cst_61 : f32 to vector<8x128xf32>
    %194 = arith.mulf %193, %192 : vector<8x128xf32>
    %cst_62 = arith.constant 1.000000e+00 : f32
    %195 = vector.broadcast %cst_62 : f32 to vector<8x128xf32>
    %196 = arith.subf %195, %168 : vector<8x128xf32>
    %197 = arith.mulf %196, %37 : vector<8x128xf32>
    %cst_63 = arith.constant 2.000000e+00 : f32
    %198 = vector.broadcast %cst_63 : f32 to vector<8x128xf32>
    %199 = arith.mulf %198, %179 : vector<8x128xf32>
    %200 = arith.addf %197, %199 : vector<8x128xf32>
    %cst_64 = arith.constant 2.000000e+00 : f32
    %201 = vector.broadcast %cst_64 : f32 to vector<8x128xf32>
    %202 = arith.mulf %201, %173 : vector<8x128xf32>
    %203 = arith.mulf %202, %16 : vector<8x128xf32>
    %204 = arith.addf %200, %203 : vector<8x128xf32>
    %cst_65 = arith.constant 2.500000e-01 : f32
    %205 = vector.broadcast %cst_65 : f32 to vector<8x128xf32>
    %206 = arith.mulf %205, %204 : vector<8x128xf32>
    %cst_66 = arith.constant 1.000000e+00 : f32
    %207 = vector.broadcast %cst_66 : f32 to vector<8x128xf32>
    %208 = arith.subf %207, %168 : vector<8x128xf32>
    %209 = arith.mulf %208, %40 : vector<8x128xf32>
    %cst_67 = arith.constant 2.000000e+00 : f32
    %210 = vector.broadcast %cst_67 : f32 to vector<8x128xf32>
    %211 = arith.mulf %210, %182 : vector<8x128xf32>
    %212 = arith.addf %209, %211 : vector<8x128xf32>
    %cst_68 = arith.constant 2.000000e+00 : f32
    %213 = vector.broadcast %cst_68 : f32 to vector<8x128xf32>
    %214 = arith.mulf %213, %173 : vector<8x128xf32>
    %215 = arith.mulf %214, %19 : vector<8x128xf32>
    %216 = arith.addf %212, %215 : vector<8x128xf32>
    %cst_69 = arith.constant 2.500000e-01 : f32
    %217 = vector.broadcast %cst_69 : f32 to vector<8x128xf32>
    %218 = arith.mulf %217, %216 : vector<8x128xf32>
    %219 = arith.mulf %136, %31 : vector<8x128xf32>
    %220 = arith.mulf %139, %28 : vector<8x128xf32>
    %221 = arith.subf %219, %220 : vector<8x128xf32>
    %222 = arith.mulf %139, %25 : vector<8x128xf32>
    %223 = arith.mulf %133, %31 : vector<8x128xf32>
    %224 = arith.subf %222, %223 : vector<8x128xf32>
    %225 = arith.mulf %133, %28 : vector<8x128xf32>
    %226 = arith.mulf %136, %25 : vector<8x128xf32>
    %227 = arith.subf %225, %226 : vector<8x128xf32>
    %cst_70 = arith.constant 2.000000e+00 : f32
    %228 = vector.broadcast %cst_70 : f32 to vector<8x128xf32>
    %229 = arith.mulf %228, %221 : vector<8x128xf32>
    %cst_71 = arith.constant 2.000000e+00 : f32
    %230 = vector.broadcast %cst_71 : f32 to vector<8x128xf32>
    %231 = arith.mulf %230, %224 : vector<8x128xf32>
    %cst_72 = arith.constant 2.000000e+00 : f32
    %232 = vector.broadcast %cst_72 : f32 to vector<8x128xf32>
    %233 = arith.mulf %232, %227 : vector<8x128xf32>
    %234 = arith.mulf %136, %233 : vector<8x128xf32>
    %235 = arith.mulf %139, %231 : vector<8x128xf32>
    %236 = arith.subf %234, %235 : vector<8x128xf32>
    %237 = arith.mulf %139, %229 : vector<8x128xf32>
    %238 = arith.mulf %133, %233 : vector<8x128xf32>
    %239 = arith.subf %237, %238 : vector<8x128xf32>
    %240 = arith.mulf %133, %231 : vector<8x128xf32>
    %241 = arith.mulf %136, %229 : vector<8x128xf32>
    %242 = arith.subf %240, %241 : vector<8x128xf32>
    %243 = arith.mulf %130, %229 : vector<8x128xf32>
    %244 = arith.addf %25, %243 : vector<8x128xf32>
    %245 = arith.addf %244, %236 : vector<8x128xf32>
    %246 = arith.mulf %130, %231 : vector<8x128xf32>
    %247 = arith.addf %28, %246 : vector<8x128xf32>
    %248 = arith.addf %247, %239 : vector<8x128xf32>
    %249 = arith.mulf %130, %233 : vector<8x128xf32>
    %250 = arith.addf %31, %249 : vector<8x128xf32>
    %251 = arith.addf %250, %242 : vector<8x128xf32>
    %252 = arith.mulf %37, %31 : vector<8x128xf32>
    %253 = arith.mulf %40, %28 : vector<8x128xf32>
    %254 = arith.subf %252, %253 : vector<8x128xf32>
    %255 = arith.mulf %40, %25 : vector<8x128xf32>
    %256 = arith.mulf %34, %31 : vector<8x128xf32>
    %257 = arith.subf %255, %256 : vector<8x128xf32>
    %258 = arith.mulf %34, %28 : vector<8x128xf32>
    %259 = arith.mulf %37, %25 : vector<8x128xf32>
    %260 = arith.subf %258, %259 : vector<8x128xf32>
    %cst_73 = arith.constant 0.454545468 : f32
    %261 = vector.broadcast %cst_73 : f32 to vector<8x128xf32>
    %262 = arith.mulf %158, %261 : vector<8x128xf32>
    %263 = arith.subf %262, %254 : vector<8x128xf32>
    %cst_74 = arith.constant 0.454545468 : f32
    %264 = vector.broadcast %cst_74 : f32 to vector<8x128xf32>
    %265 = arith.mulf %160, %264 : vector<8x128xf32>
    %266 = arith.subf %265, %257 : vector<8x128xf32>
    %cst_75 = arith.constant 0.454545468 : f32
    %267 = vector.broadcast %cst_75 : f32 to vector<8x128xf32>
    %268 = arith.mulf %163, %267 : vector<8x128xf32>
    %269 = arith.subf %268, %260 : vector<8x128xf32>
    %cst_76 = arith.constant 0.0156608894 : f32
    %270 = vector.broadcast %cst_76 : f32 to vector<8x128xf32>
    %271 = arith.mulf %270, %34 : vector<8x128xf32>
    %cst_77 = arith.constant 3.180370e-06 : f32
    %272 = vector.broadcast %cst_77 : f32 to vector<8x128xf32>
    %273 = arith.mulf %272, %37 : vector<8x128xf32>
    %274 = arith.addf %271, %273 : vector<8x128xf32>
    %cst_78 = arith.constant 3.180370e-06 : f32
    %275 = vector.broadcast %cst_78 : f32 to vector<8x128xf32>
    %276 = arith.mulf %275, %34 : vector<8x128xf32>
    %cst_79 = arith.constant 0.0156207802 : f32
    %277 = vector.broadcast %cst_79 : f32 to vector<8x128xf32>
    %278 = arith.mulf %277, %37 : vector<8x128xf32>
    %279 = arith.addf %276, %278 : vector<8x128xf32>
    %cst_80 = arith.constant 0.0222686809 : f32
    %280 = vector.broadcast %cst_80 : f32 to vector<8x128xf32>
    %281 = arith.mulf %280, %40 : vector<8x128xf32>
    %282 = arith.mulf %37, %281 : vector<8x128xf32>
    %283 = arith.mulf %40, %279 : vector<8x128xf32>
    %284 = arith.subf %282, %283 : vector<8x128xf32>
    %285 = arith.mulf %40, %274 : vector<8x128xf32>
    %286 = arith.mulf %34, %281 : vector<8x128xf32>
    %287 = arith.subf %285, %286 : vector<8x128xf32>
    %288 = arith.mulf %34, %279 : vector<8x128xf32>
    %289 = arith.mulf %37, %274 : vector<8x128xf32>
    %290 = arith.subf %288, %289 : vector<8x128xf32>
    %291 = arith.subf %97, %284 : vector<8x128xf32>
    %292 = arith.subf %110, %287 : vector<8x128xf32>
    %293 = arith.subf %115, %290 : vector<8x128xf32>
    %cst_81 = arith.constant 63.8533325 : f32
    %294 = vector.broadcast %cst_81 : f32 to vector<8x128xf32>
    %295 = arith.mulf %294, %291 : vector<8x128xf32>
    %cst_82 = arith.constant -0.0130004538 : f32
    %296 = vector.broadcast %cst_82 : f32 to vector<8x128xf32>
    %297 = arith.mulf %296, %292 : vector<8x128xf32>
    %298 = arith.addf %295, %297 : vector<8x128xf32>
    %cst_83 = arith.constant -0.0130004538 : f32
    %299 = vector.broadcast %cst_83 : f32 to vector<8x128xf32>
    %300 = arith.mulf %299, %291 : vector<8x128xf32>
    %cst_84 = arith.constant 64.0172958 : f32
    %301 = vector.broadcast %cst_84 : f32 to vector<8x128xf32>
    %302 = arith.mulf %301, %292 : vector<8x128xf32>
    %303 = arith.addf %300, %302 : vector<8x128xf32>
    %cst_85 = arith.constant 44.9061203 : f32
    %304 = vector.broadcast %cst_85 : f32 to vector<8x128xf32>
    %305 = arith.mulf %304, %293 : vector<8x128xf32>
    %306 = arith.mulf %136, %269 : vector<8x128xf32>
    %307 = arith.mulf %139, %266 : vector<8x128xf32>
    %308 = arith.subf %306, %307 : vector<8x128xf32>
    %cst_86 = arith.constant 2.000000e+00 : f32
    %309 = vector.broadcast %cst_86 : f32 to vector<8x128xf32>
    %310 = arith.mulf %309, %308 : vector<8x128xf32>
    %311 = arith.mulf %139, %263 : vector<8x128xf32>
    %312 = arith.mulf %133, %269 : vector<8x128xf32>
    %313 = arith.subf %311, %312 : vector<8x128xf32>
    %cst_87 = arith.constant 2.000000e+00 : f32
    %314 = vector.broadcast %cst_87 : f32 to vector<8x128xf32>
    %315 = arith.mulf %314, %313 : vector<8x128xf32>
    %316 = arith.mulf %133, %266 : vector<8x128xf32>
    %317 = arith.mulf %136, %263 : vector<8x128xf32>
    %318 = arith.subf %316, %317 : vector<8x128xf32>
    %cst_88 = arith.constant 2.000000e+00 : f32
    %319 = vector.broadcast %cst_88 : f32 to vector<8x128xf32>
    %320 = arith.mulf %319, %318 : vector<8x128xf32>
    %321 = arith.mulf %136, %320 : vector<8x128xf32>
    %322 = arith.mulf %139, %315 : vector<8x128xf32>
    %323 = arith.subf %321, %322 : vector<8x128xf32>
    %324 = arith.mulf %130, %310 : vector<8x128xf32>
    %325 = arith.addf %263, %324 : vector<8x128xf32>
    %326 = arith.addf %325, %323 : vector<8x128xf32>
    %327 = math.sin %22 : vector<8x128xf32>
    %cst_89 = arith.constant -9.810000e+00 : f32
    %328 = vector.broadcast %cst_89 : f32 to vector<8x128xf32>
    %329 = arith.mulf %328, %327 : vector<8x128xf32>
    %330 = math.cos %22 : vector<8x128xf32>
    %331 = arith.mulf %326, %330 : vector<8x128xf32>
    %332 = arith.addf %329, %331 : vector<8x128xf32>
    %cst_90 = arith.constant 2.000000e+00 : f32
    %333 = vector.broadcast %cst_90 : f32 to vector<8x128xf32>
    %334 = arith.mulf %332, %333 : vector<8x128xf32>
    %cst_91 = arith.constant 0.00833333377 : f32
    %335 = vector.broadcast %cst_91 : f32 to vector<8x128xf32>
    %336 = arith.mulf %335, %245 : vector<8x128xf32>
    %337 = arith.addf %4, %336 : vector<8x128xf32>
    %cst_92 = arith.constant 0.00833333377 : f32
    %338 = vector.broadcast %cst_92 : f32 to vector<8x128xf32>
    %339 = arith.mulf %338, %248 : vector<8x128xf32>
    %340 = arith.addf %7, %339 : vector<8x128xf32>
    %cst_93 = arith.constant 0.00833333377 : f32
    %341 = vector.broadcast %cst_93 : f32 to vector<8x128xf32>
    %342 = arith.mulf %341, %251 : vector<8x128xf32>
    %343 = arith.addf %10, %342 : vector<8x128xf32>
    %cst_94 = arith.constant 0.00833333377 : f32
    %344 = vector.broadcast %cst_94 : f32 to vector<8x128xf32>
    %345 = arith.mulf %344, %194 : vector<8x128xf32>
    %346 = arith.addf %13, %345 : vector<8x128xf32>
    %cst_95 = arith.constant 0.00833333377 : f32
    %347 = vector.broadcast %cst_95 : f32 to vector<8x128xf32>
    %348 = arith.mulf %347, %206 : vector<8x128xf32>
    %349 = arith.addf %16, %348 : vector<8x128xf32>
    %cst_96 = arith.constant 0.00833333377 : f32
    %350 = vector.broadcast %cst_96 : f32 to vector<8x128xf32>
    %351 = arith.mulf %350, %218 : vector<8x128xf32>
    %352 = arith.addf %19, %351 : vector<8x128xf32>
    %cst_97 = arith.constant 0.00833333377 : f32
    %353 = vector.broadcast %cst_97 : f32 to vector<8x128xf32>
    %354 = arith.mulf %353, %43 : vector<8x128xf32>
    %355 = arith.addf %22, %354 : vector<8x128xf32>
    %cst_98 = arith.constant 0.00833333377 : f32
    %356 = vector.broadcast %cst_98 : f32 to vector<8x128xf32>
    %357 = arith.mulf %356, %263 : vector<8x128xf32>
    %358 = arith.addf %25, %357 : vector<8x128xf32>
    %cst_99 = arith.constant 0.00833333377 : f32
    %359 = vector.broadcast %cst_99 : f32 to vector<8x128xf32>
    %360 = arith.mulf %359, %266 : vector<8x128xf32>
    %361 = arith.addf %28, %360 : vector<8x128xf32>
    %cst_100 = arith.constant 0.00833333377 : f32
    %362 = vector.broadcast %cst_100 : f32 to vector<8x128xf32>
    %363 = arith.mulf %362, %269 : vector<8x128xf32>
    %364 = arith.addf %31, %363 : vector<8x128xf32>
    %cst_101 = arith.constant 0.00833333377 : f32
    %365 = vector.broadcast %cst_101 : f32 to vector<8x128xf32>
    %366 = arith.mulf %365, %298 : vector<8x128xf32>
    %367 = arith.addf %34, %366 : vector<8x128xf32>
    %cst_102 = arith.constant 0.00833333377 : f32
    %368 = vector.broadcast %cst_102 : f32 to vector<8x128xf32>
    %369 = arith.mulf %368, %303 : vector<8x128xf32>
    %370 = arith.addf %37, %369 : vector<8x128xf32>
    %cst_103 = arith.constant 0.00833333377 : f32
    %371 = vector.broadcast %cst_103 : f32 to vector<8x128xf32>
    %372 = arith.mulf %371, %305 : vector<8x128xf32>
    %373 = arith.addf %40, %372 : vector<8x128xf32>
    %cst_104 = arith.constant 0.00833333377 : f32
    %374 = vector.broadcast %cst_104 : f32 to vector<8x128xf32>
    %375 = arith.mulf %374, %334 : vector<8x128xf32>
    %376 = arith.addf %43, %375 : vector<8x128xf32>
    %cst_105 = arith.constant 2.500000e-02 : f32
    %377 = vector.broadcast %cst_105 : f32 to vector<8x128xf32>
    %378 = arith.mulf %377, %194 : vector<8x128xf32>
    %379 = arith.addf %13, %378 : vector<8x128xf32>
    %cst_106 = arith.constant 2.500000e-02 : f32
    %380 = vector.broadcast %cst_106 : f32 to vector<8x128xf32>
    %381 = arith.mulf %380, %206 : vector<8x128xf32>
    %382 = arith.addf %16, %381 : vector<8x128xf32>
    %cst_107 = arith.constant 2.500000e-02 : f32
    %383 = vector.broadcast %cst_107 : f32 to vector<8x128xf32>
    %384 = arith.mulf %383, %218 : vector<8x128xf32>
    %385 = arith.addf %19, %384 : vector<8x128xf32>
    %cst_108 = arith.constant 2.500000e-02 : f32
    %386 = vector.broadcast %cst_108 : f32 to vector<8x128xf32>
    %387 = arith.mulf %386, %43 : vector<8x128xf32>
    %388 = arith.addf %22, %387 : vector<8x128xf32>
    %cst_109 = arith.constant 2.500000e-02 : f32
    %389 = vector.broadcast %cst_109 : f32 to vector<8x128xf32>
    %390 = arith.mulf %389, %263 : vector<8x128xf32>
    %391 = arith.addf %25, %390 : vector<8x128xf32>
    %cst_110 = arith.constant 2.500000e-02 : f32
    %392 = vector.broadcast %cst_110 : f32 to vector<8x128xf32>
    %393 = arith.mulf %392, %266 : vector<8x128xf32>
    %394 = arith.addf %28, %393 : vector<8x128xf32>
    %cst_111 = arith.constant 2.500000e-02 : f32
    %395 = vector.broadcast %cst_111 : f32 to vector<8x128xf32>
    %396 = arith.mulf %395, %269 : vector<8x128xf32>
    %397 = arith.addf %31, %396 : vector<8x128xf32>
    %cst_112 = arith.constant 2.500000e-02 : f32
    %398 = vector.broadcast %cst_112 : f32 to vector<8x128xf32>
    %399 = arith.mulf %398, %298 : vector<8x128xf32>
    %400 = arith.addf %34, %399 : vector<8x128xf32>
    %cst_113 = arith.constant 2.500000e-02 : f32
    %401 = vector.broadcast %cst_113 : f32 to vector<8x128xf32>
    %402 = arith.mulf %401, %303 : vector<8x128xf32>
    %403 = arith.addf %37, %402 : vector<8x128xf32>
    %cst_114 = arith.constant 2.500000e-02 : f32
    %404 = vector.broadcast %cst_114 : f32 to vector<8x128xf32>
    %405 = arith.mulf %404, %305 : vector<8x128xf32>
    %406 = arith.addf %40, %405 : vector<8x128xf32>
    %cst_115 = arith.constant 2.500000e-02 : f32
    %407 = vector.broadcast %cst_115 : f32 to vector<8x128xf32>
    %408 = arith.mulf %407, %334 : vector<8x128xf32>
    %409 = arith.addf %43, %408 : vector<8x128xf32>
    %410 = arith.mulf %379, %379 : vector<8x128xf32>
    %411 = arith.mulf %382, %382 : vector<8x128xf32>
    %412 = arith.addf %410, %411 : vector<8x128xf32>
    %413 = arith.mulf %385, %385 : vector<8x128xf32>
    %414 = arith.addf %412, %413 : vector<8x128xf32>
    %cst_116 = arith.constant 1.000000e+00 : f32
    %415 = vector.broadcast %cst_116 : f32 to vector<8x128xf32>
    %416 = arith.addf %415, %414 : vector<8x128xf32>
    %417 = tpu.reciprocal %416 {approx = true} : vector<8x128xf32> -> vector<8x128xf32>
    %418 = arith.mulf %416, %417 : vector<8x128xf32>
    %cst_117 = arith.constant 2.000000e+00 : f32
    %419 = vector.broadcast %cst_117 : f32 to vector<8x128xf32>
    %420 = arith.subf %419, %418 : vector<8x128xf32>
    %421 = arith.mulf %417, %420 : vector<8x128xf32>
    %cst_118 = arith.constant 1.000000e+00 : f32
    %422 = vector.broadcast %cst_118 : f32 to vector<8x128xf32>
    %423 = arith.subf %422, %414 : vector<8x128xf32>
    %424 = arith.mulf %423, %421 : vector<8x128xf32>
    %cst_119 = arith.constant 2.000000e+00 : f32
    %425 = vector.broadcast %cst_119 : f32 to vector<8x128xf32>
    %426 = arith.mulf %425, %379 : vector<8x128xf32>
    %427 = arith.mulf %426, %421 : vector<8x128xf32>
    %cst_120 = arith.constant 2.000000e+00 : f32
    %428 = vector.broadcast %cst_120 : f32 to vector<8x128xf32>
    %429 = arith.mulf %428, %382 : vector<8x128xf32>
    %430 = arith.mulf %429, %421 : vector<8x128xf32>
    %cst_121 = arith.constant 2.000000e+00 : f32
    %431 = vector.broadcast %cst_121 : f32 to vector<8x128xf32>
    %432 = arith.mulf %431, %385 : vector<8x128xf32>
    %433 = arith.mulf %432, %421 : vector<8x128xf32>
    %cst_122 = arith.constant -2.000000e+00 : f32
    %434 = vector.broadcast %cst_122 : f32 to vector<8x128xf32>
    %435 = arith.mulf %434, %430 : vector<8x128xf32>
    %cst_123 = arith.constant -2.158200e+01 : f32
    %436 = vector.broadcast %cst_123 : f32 to vector<8x128xf32>
    %437 = arith.mulf %435, %436 : vector<8x128xf32>
    %cst_124 = arith.constant 2.000000e+00 : f32
    %438 = vector.broadcast %cst_124 : f32 to vector<8x128xf32>
    %439 = arith.mulf %438, %427 : vector<8x128xf32>
    %cst_125 = arith.constant -2.158200e+01 : f32
    %440 = vector.broadcast %cst_125 : f32 to vector<8x128xf32>
    %441 = arith.mulf %439, %440 : vector<8x128xf32>
    %442 = arith.mulf %433, %441 : vector<8x128xf32>
    %cst_126 = arith.constant 0.000000e+00 : f32
    %443 = vector.broadcast %cst_126 : f32 to vector<8x128xf32>
    %444 = arith.subf %443, %433 : vector<8x128xf32>
    %445 = arith.mulf %444, %437 : vector<8x128xf32>
    %cst_127 = arith.constant 0.000000e+00 : f32
    %446 = vector.broadcast %cst_127 : f32 to vector<8x128xf32>
    %447 = arith.subf %446, %427 : vector<8x128xf32>
    %448 = arith.mulf %447, %441 : vector<8x128xf32>
    %449 = arith.mulf %430, %437 : vector<8x128xf32>
    %450 = arith.addf %448, %449 : vector<8x128xf32>
    %451 = arith.mulf %424, %437 : vector<8x128xf32>
    %452 = arith.addf %451, %442 : vector<8x128xf32>
    %453 = arith.mulf %424, %441 : vector<8x128xf32>
    %454 = arith.addf %453, %445 : vector<8x128xf32>
    %cst_128 = arith.constant -2.158200e+01 : f32
    %455 = vector.broadcast %cst_128 : f32 to vector<8x128xf32>
    %456 = arith.addf %455, %450 : vector<8x128xf32>
    %457 = arith.addf %76, %456 : vector<8x128xf32>
    %458 = arith.mulf %379, %379 : vector<8x128xf32>
    %459 = arith.mulf %382, %382 : vector<8x128xf32>
    %460 = arith.addf %458, %459 : vector<8x128xf32>
    %461 = arith.mulf %385, %385 : vector<8x128xf32>
    %462 = arith.addf %460, %461 : vector<8x128xf32>
    %463 = arith.mulf %379, %400 : vector<8x128xf32>
    %464 = arith.mulf %382, %403 : vector<8x128xf32>
    %465 = arith.addf %463, %464 : vector<8x128xf32>
    %466 = arith.mulf %385, %406 : vector<8x128xf32>
    %467 = arith.addf %465, %466 : vector<8x128xf32>
    %468 = arith.mulf %382, %406 : vector<8x128xf32>
    %469 = arith.mulf %385, %403 : vector<8x128xf32>
    %470 = arith.subf %468, %469 : vector<8x128xf32>
    %471 = arith.mulf %385, %400 : vector<8x128xf32>
    %472 = arith.mulf %379, %406 : vector<8x128xf32>
    %473 = arith.subf %471, %472 : vector<8x128xf32>
    %474 = arith.mulf %379, %403 : vector<8x128xf32>
    %475 = arith.mulf %382, %400 : vector<8x128xf32>
    %476 = arith.subf %474, %475 : vector<8x128xf32>
    %cst_129 = arith.constant 1.000000e+00 : f32
    %477 = vector.broadcast %cst_129 : f32 to vector<8x128xf32>
    %478 = arith.subf %477, %462 : vector<8x128xf32>
    %479 = arith.mulf %478, %400 : vector<8x128xf32>
    %cst_130 = arith.constant 2.000000e+00 : f32
    %480 = vector.broadcast %cst_130 : f32 to vector<8x128xf32>
    %481 = arith.mulf %480, %470 : vector<8x128xf32>
    %482 = arith.addf %479, %481 : vector<8x128xf32>
    %cst_131 = arith.constant 2.000000e+00 : f32
    %483 = vector.broadcast %cst_131 : f32 to vector<8x128xf32>
    %484 = arith.mulf %483, %467 : vector<8x128xf32>
    %485 = arith.mulf %484, %379 : vector<8x128xf32>
    %486 = arith.addf %482, %485 : vector<8x128xf32>
    %cst_132 = arith.constant 2.500000e-01 : f32
    %487 = vector.broadcast %cst_132 : f32 to vector<8x128xf32>
    %488 = arith.mulf %487, %486 : vector<8x128xf32>
    %cst_133 = arith.constant 1.000000e+00 : f32
    %489 = vector.broadcast %cst_133 : f32 to vector<8x128xf32>
    %490 = arith.subf %489, %462 : vector<8x128xf32>
    %491 = arith.mulf %490, %403 : vector<8x128xf32>
    %cst_134 = arith.constant 2.000000e+00 : f32
    %492 = vector.broadcast %cst_134 : f32 to vector<8x128xf32>
    %493 = arith.mulf %492, %473 : vector<8x128xf32>
    %494 = arith.addf %491, %493 : vector<8x128xf32>
    %cst_135 = arith.constant 2.000000e+00 : f32
    %495 = vector.broadcast %cst_135 : f32 to vector<8x128xf32>
    %496 = arith.mulf %495, %467 : vector<8x128xf32>
    %497 = arith.mulf %496, %382 : vector<8x128xf32>
    %498 = arith.addf %494, %497 : vector<8x128xf32>
    %cst_136 = arith.constant 2.500000e-01 : f32
    %499 = vector.broadcast %cst_136 : f32 to vector<8x128xf32>
    %500 = arith.mulf %499, %498 : vector<8x128xf32>
    %cst_137 = arith.constant 1.000000e+00 : f32
    %501 = vector.broadcast %cst_137 : f32 to vector<8x128xf32>
    %502 = arith.subf %501, %462 : vector<8x128xf32>
    %503 = arith.mulf %502, %406 : vector<8x128xf32>
    %cst_138 = arith.constant 2.000000e+00 : f32
    %504 = vector.broadcast %cst_138 : f32 to vector<8x128xf32>
    %505 = arith.mulf %504, %476 : vector<8x128xf32>
    %506 = arith.addf %503, %505 : vector<8x128xf32>
    %cst_139 = arith.constant 2.000000e+00 : f32
    %507 = vector.broadcast %cst_139 : f32 to vector<8x128xf32>
    %508 = arith.mulf %507, %467 : vector<8x128xf32>
    %509 = arith.mulf %508, %385 : vector<8x128xf32>
    %510 = arith.addf %506, %509 : vector<8x128xf32>
    %cst_140 = arith.constant 2.500000e-01 : f32
    %511 = vector.broadcast %cst_140 : f32 to vector<8x128xf32>
    %512 = arith.mulf %511, %510 : vector<8x128xf32>
    %513 = arith.mulf %430, %397 : vector<8x128xf32>
    %514 = arith.mulf %433, %394 : vector<8x128xf32>
    %515 = arith.subf %513, %514 : vector<8x128xf32>
    %516 = arith.mulf %433, %391 : vector<8x128xf32>
    %517 = arith.mulf %427, %397 : vector<8x128xf32>
    %518 = arith.subf %516, %517 : vector<8x128xf32>
    %519 = arith.mulf %427, %394 : vector<8x128xf32>
    %520 = arith.mulf %430, %391 : vector<8x128xf32>
    %521 = arith.subf %519, %520 : vector<8x128xf32>
    %cst_141 = arith.constant 2.000000e+00 : f32
    %522 = vector.broadcast %cst_141 : f32 to vector<8x128xf32>
    %523 = arith.mulf %522, %515 : vector<8x128xf32>
    %cst_142 = arith.constant 2.000000e+00 : f32
    %524 = vector.broadcast %cst_142 : f32 to vector<8x128xf32>
    %525 = arith.mulf %524, %518 : vector<8x128xf32>
    %cst_143 = arith.constant 2.000000e+00 : f32
    %526 = vector.broadcast %cst_143 : f32 to vector<8x128xf32>
    %527 = arith.mulf %526, %521 : vector<8x128xf32>
    %528 = arith.mulf %430, %527 : vector<8x128xf32>
    %529 = arith.mulf %433, %525 : vector<8x128xf32>
    %530 = arith.subf %528, %529 : vector<8x128xf32>
    %531 = arith.mulf %433, %523 : vector<8x128xf32>
    %532 = arith.mulf %427, %527 : vector<8x128xf32>
    %533 = arith.subf %531, %532 : vector<8x128xf32>
    %534 = arith.mulf %427, %525 : vector<8x128xf32>
    %535 = arith.mulf %430, %523 : vector<8x128xf32>
    %536 = arith.subf %534, %535 : vector<8x128xf32>
    %537 = arith.mulf %424, %523 : vector<8x128xf32>
    %538 = arith.addf %391, %537 : vector<8x128xf32>
    %539 = arith.addf %538, %530 : vector<8x128xf32>
    %540 = arith.mulf %424, %525 : vector<8x128xf32>
    %541 = arith.addf %394, %540 : vector<8x128xf32>
    %542 = arith.addf %541, %533 : vector<8x128xf32>
    %543 = arith.mulf %424, %527 : vector<8x128xf32>
    %544 = arith.addf %397, %543 : vector<8x128xf32>
    %545 = arith.addf %544, %536 : vector<8x128xf32>
    %546 = arith.mulf %403, %397 : vector<8x128xf32>
    %547 = arith.mulf %406, %394 : vector<8x128xf32>
    %548 = arith.subf %546, %547 : vector<8x128xf32>
    %549 = arith.mulf %406, %391 : vector<8x128xf32>
    %550 = arith.mulf %400, %397 : vector<8x128xf32>
    %551 = arith.subf %549, %550 : vector<8x128xf32>
    %552 = arith.mulf %400, %394 : vector<8x128xf32>
    %553 = arith.mulf %403, %391 : vector<8x128xf32>
    %554 = arith.subf %552, %553 : vector<8x128xf32>
    %cst_144 = arith.constant 0.454545468 : f32
    %555 = vector.broadcast %cst_144 : f32 to vector<8x128xf32>
    %556 = arith.mulf %452, %555 : vector<8x128xf32>
    %557 = arith.subf %556, %548 : vector<8x128xf32>
    %cst_145 = arith.constant 0.454545468 : f32
    %558 = vector.broadcast %cst_145 : f32 to vector<8x128xf32>
    %559 = arith.mulf %454, %558 : vector<8x128xf32>
    %560 = arith.subf %559, %551 : vector<8x128xf32>
    %cst_146 = arith.constant 0.454545468 : f32
    %561 = vector.broadcast %cst_146 : f32 to vector<8x128xf32>
    %562 = arith.mulf %457, %561 : vector<8x128xf32>
    %563 = arith.subf %562, %554 : vector<8x128xf32>
    %cst_147 = arith.constant 0.0156608894 : f32
    %564 = vector.broadcast %cst_147 : f32 to vector<8x128xf32>
    %565 = arith.mulf %564, %400 : vector<8x128xf32>
    %cst_148 = arith.constant 3.180370e-06 : f32
    %566 = vector.broadcast %cst_148 : f32 to vector<8x128xf32>
    %567 = arith.mulf %566, %403 : vector<8x128xf32>
    %568 = arith.addf %565, %567 : vector<8x128xf32>
    %cst_149 = arith.constant 3.180370e-06 : f32
    %569 = vector.broadcast %cst_149 : f32 to vector<8x128xf32>
    %570 = arith.mulf %569, %400 : vector<8x128xf32>
    %cst_150 = arith.constant 0.0156207802 : f32
    %571 = vector.broadcast %cst_150 : f32 to vector<8x128xf32>
    %572 = arith.mulf %571, %403 : vector<8x128xf32>
    %573 = arith.addf %570, %572 : vector<8x128xf32>
    %cst_151 = arith.constant 0.0222686809 : f32
    %574 = vector.broadcast %cst_151 : f32 to vector<8x128xf32>
    %575 = arith.mulf %574, %406 : vector<8x128xf32>
    %576 = arith.mulf %403, %575 : vector<8x128xf32>
    %577 = arith.mulf %406, %573 : vector<8x128xf32>
    %578 = arith.subf %576, %577 : vector<8x128xf32>
    %579 = arith.mulf %406, %568 : vector<8x128xf32>
    %580 = arith.mulf %400, %575 : vector<8x128xf32>
    %581 = arith.subf %579, %580 : vector<8x128xf32>
    %582 = arith.mulf %400, %573 : vector<8x128xf32>
    %583 = arith.mulf %403, %568 : vector<8x128xf32>
    %584 = arith.subf %582, %583 : vector<8x128xf32>
    %585 = arith.subf %97, %578 : vector<8x128xf32>
    %586 = arith.subf %110, %581 : vector<8x128xf32>
    %587 = arith.subf %115, %584 : vector<8x128xf32>
    %cst_152 = arith.constant 63.8533325 : f32
    %588 = vector.broadcast %cst_152 : f32 to vector<8x128xf32>
    %589 = arith.mulf %588, %585 : vector<8x128xf32>
    %cst_153 = arith.constant -0.0130004538 : f32
    %590 = vector.broadcast %cst_153 : f32 to vector<8x128xf32>
    %591 = arith.mulf %590, %586 : vector<8x128xf32>
    %592 = arith.addf %589, %591 : vector<8x128xf32>
    %cst_154 = arith.constant -0.0130004538 : f32
    %593 = vector.broadcast %cst_154 : f32 to vector<8x128xf32>
    %594 = arith.mulf %593, %585 : vector<8x128xf32>
    %cst_155 = arith.constant 64.0172958 : f32
    %595 = vector.broadcast %cst_155 : f32 to vector<8x128xf32>
    %596 = arith.mulf %595, %586 : vector<8x128xf32>
    %597 = arith.addf %594, %596 : vector<8x128xf32>
    %cst_156 = arith.constant 44.9061203 : f32
    %598 = vector.broadcast %cst_156 : f32 to vector<8x128xf32>
    %599 = arith.mulf %598, %587 : vector<8x128xf32>
    %600 = arith.mulf %430, %563 : vector<8x128xf32>
    %601 = arith.mulf %433, %560 : vector<8x128xf32>
    %602 = arith.subf %600, %601 : vector<8x128xf32>
    %cst_157 = arith.constant 2.000000e+00 : f32
    %603 = vector.broadcast %cst_157 : f32 to vector<8x128xf32>
    %604 = arith.mulf %603, %602 : vector<8x128xf32>
    %605 = arith.mulf %433, %557 : vector<8x128xf32>
    %606 = arith.mulf %427, %563 : vector<8x128xf32>
    %607 = arith.subf %605, %606 : vector<8x128xf32>
    %cst_158 = arith.constant 2.000000e+00 : f32
    %608 = vector.broadcast %cst_158 : f32 to vector<8x128xf32>
    %609 = arith.mulf %608, %607 : vector<8x128xf32>
    %610 = arith.mulf %427, %560 : vector<8x128xf32>
    %611 = arith.mulf %430, %557 : vector<8x128xf32>
    %612 = arith.subf %610, %611 : vector<8x128xf32>
    %cst_159 = arith.constant 2.000000e+00 : f32
    %613 = vector.broadcast %cst_159 : f32 to vector<8x128xf32>
    %614 = arith.mulf %613, %612 : vector<8x128xf32>
    %615 = arith.mulf %430, %614 : vector<8x128xf32>
    %616 = arith.mulf %433, %609 : vector<8x128xf32>
    %617 = arith.subf %615, %616 : vector<8x128xf32>
    %618 = arith.mulf %424, %604 : vector<8x128xf32>
    %619 = arith.addf %557, %618 : vector<8x128xf32>
    %620 = arith.addf %619, %617 : vector<8x128xf32>
    %621 = math.sin %388 : vector<8x128xf32>
    %cst_160 = arith.constant -9.810000e+00 : f32
    %622 = vector.broadcast %cst_160 : f32 to vector<8x128xf32>
    %623 = arith.mulf %622, %621 : vector<8x128xf32>
    %624 = math.cos %388 : vector<8x128xf32>
    %625 = arith.mulf %620, %624 : vector<8x128xf32>
    %626 = arith.addf %623, %625 : vector<8x128xf32>
    %cst_161 = arith.constant 2.000000e+00 : f32
    %627 = vector.broadcast %cst_161 : f32 to vector<8x128xf32>
    %628 = arith.mulf %626, %627 : vector<8x128xf32>
    %cst_162 = arith.constant 0.0166666675 : f32
    %629 = vector.broadcast %cst_162 : f32 to vector<8x128xf32>
    %630 = arith.mulf %629, %539 : vector<8x128xf32>
    %631 = arith.addf %337, %630 : vector<8x128xf32>
    %cst_163 = arith.constant 0.0166666675 : f32
    %632 = vector.broadcast %cst_163 : f32 to vector<8x128xf32>
    %633 = arith.mulf %632, %542 : vector<8x128xf32>
    %634 = arith.addf %340, %633 : vector<8x128xf32>
    %cst_164 = arith.constant 0.0166666675 : f32
    %635 = vector.broadcast %cst_164 : f32 to vector<8x128xf32>
    %636 = arith.mulf %635, %545 : vector<8x128xf32>
    %637 = arith.addf %343, %636 : vector<8x128xf32>
    %cst_165 = arith.constant 0.0166666675 : f32
    %638 = vector.broadcast %cst_165 : f32 to vector<8x128xf32>
    %639 = arith.mulf %638, %488 : vector<8x128xf32>
    %640 = arith.addf %346, %639 : vector<8x128xf32>
    %cst_166 = arith.constant 0.0166666675 : f32
    %641 = vector.broadcast %cst_166 : f32 to vector<8x128xf32>
    %642 = arith.mulf %641, %500 : vector<8x128xf32>
    %643 = arith.addf %349, %642 : vector<8x128xf32>
    %cst_167 = arith.constant 0.0166666675 : f32
    %644 = vector.broadcast %cst_167 : f32 to vector<8x128xf32>
    %645 = arith.mulf %644, %512 : vector<8x128xf32>
    %646 = arith.addf %352, %645 : vector<8x128xf32>
    %cst_168 = arith.constant 0.0166666675 : f32
    %647 = vector.broadcast %cst_168 : f32 to vector<8x128xf32>
    %648 = arith.mulf %647, %409 : vector<8x128xf32>
    %649 = arith.addf %355, %648 : vector<8x128xf32>
    %cst_169 = arith.constant 0.0166666675 : f32
    %650 = vector.broadcast %cst_169 : f32 to vector<8x128xf32>
    %651 = arith.mulf %650, %557 : vector<8x128xf32>
    %652 = arith.addf %358, %651 : vector<8x128xf32>
    %cst_170 = arith.constant 0.0166666675 : f32
    %653 = vector.broadcast %cst_170 : f32 to vector<8x128xf32>
    %654 = arith.mulf %653, %560 : vector<8x128xf32>
    %655 = arith.addf %361, %654 : vector<8x128xf32>
    %cst_171 = arith.constant 0.0166666675 : f32
    %656 = vector.broadcast %cst_171 : f32 to vector<8x128xf32>
    %657 = arith.mulf %656, %563 : vector<8x128xf32>
    %658 = arith.addf %364, %657 : vector<8x128xf32>
    %cst_172 = arith.constant 0.0166666675 : f32
    %659 = vector.broadcast %cst_172 : f32 to vector<8x128xf32>
    %660 = arith.mulf %659, %592 : vector<8x128xf32>
    %661 = arith.addf %367, %660 : vector<8x128xf32>
    %cst_173 = arith.constant 0.0166666675 : f32
    %662 = vector.broadcast %cst_173 : f32 to vector<8x128xf32>
    %663 = arith.mulf %662, %597 : vector<8x128xf32>
    %664 = arith.addf %370, %663 : vector<8x128xf32>
    %cst_174 = arith.constant 0.0166666675 : f32
    %665 = vector.broadcast %cst_174 : f32 to vector<8x128xf32>
    %666 = arith.mulf %665, %599 : vector<8x128xf32>
    %667 = arith.addf %373, %666 : vector<8x128xf32>
    %cst_175 = arith.constant 0.0166666675 : f32
    %668 = vector.broadcast %cst_175 : f32 to vector<8x128xf32>
    %669 = arith.mulf %668, %628 : vector<8x128xf32>
    %670 = arith.addf %376, %669 : vector<8x128xf32>
    %cst_176 = arith.constant 2.500000e-02 : f32
    %671 = vector.broadcast %cst_176 : f32 to vector<8x128xf32>
    %672 = arith.mulf %671, %488 : vector<8x128xf32>
    %673 = arith.addf %13, %672 : vector<8x128xf32>
    %cst_177 = arith.constant 2.500000e-02 : f32
    %674 = vector.broadcast %cst_177 : f32 to vector<8x128xf32>
    %675 = arith.mulf %674, %500 : vector<8x128xf32>
    %676 = arith.addf %16, %675 : vector<8x128xf32>
    %cst_178 = arith.constant 2.500000e-02 : f32
    %677 = vector.broadcast %cst_178 : f32 to vector<8x128xf32>
    %678 = arith.mulf %677, %512 : vector<8x128xf32>
    %679 = arith.addf %19, %678 : vector<8x128xf32>
    %cst_179 = arith.constant 2.500000e-02 : f32
    %680 = vector.broadcast %cst_179 : f32 to vector<8x128xf32>
    %681 = arith.mulf %680, %409 : vector<8x128xf32>
    %682 = arith.addf %22, %681 : vector<8x128xf32>
    %cst_180 = arith.constant 2.500000e-02 : f32
    %683 = vector.broadcast %cst_180 : f32 to vector<8x128xf32>
    %684 = arith.mulf %683, %557 : vector<8x128xf32>
    %685 = arith.addf %25, %684 : vector<8x128xf32>
    %cst_181 = arith.constant 2.500000e-02 : f32
    %686 = vector.broadcast %cst_181 : f32 to vector<8x128xf32>
    %687 = arith.mulf %686, %560 : vector<8x128xf32>
    %688 = arith.addf %28, %687 : vector<8x128xf32>
    %cst_182 = arith.constant 2.500000e-02 : f32
    %689 = vector.broadcast %cst_182 : f32 to vector<8x128xf32>
    %690 = arith.mulf %689, %563 : vector<8x128xf32>
    %691 = arith.addf %31, %690 : vector<8x128xf32>
    %cst_183 = arith.constant 2.500000e-02 : f32
    %692 = vector.broadcast %cst_183 : f32 to vector<8x128xf32>
    %693 = arith.mulf %692, %592 : vector<8x128xf32>
    %694 = arith.addf %34, %693 : vector<8x128xf32>
    %cst_184 = arith.constant 2.500000e-02 : f32
    %695 = vector.broadcast %cst_184 : f32 to vector<8x128xf32>
    %696 = arith.mulf %695, %597 : vector<8x128xf32>
    %697 = arith.addf %37, %696 : vector<8x128xf32>
    %cst_185 = arith.constant 2.500000e-02 : f32
    %698 = vector.broadcast %cst_185 : f32 to vector<8x128xf32>
    %699 = arith.mulf %698, %599 : vector<8x128xf32>
    %700 = arith.addf %40, %699 : vector<8x128xf32>
    %cst_186 = arith.constant 2.500000e-02 : f32
    %701 = vector.broadcast %cst_186 : f32 to vector<8x128xf32>
    %702 = arith.mulf %701, %628 : vector<8x128xf32>
    %703 = arith.addf %43, %702 : vector<8x128xf32>
    %704 = arith.mulf %673, %673 : vector<8x128xf32>
    %705 = arith.mulf %676, %676 : vector<8x128xf32>
    %706 = arith.addf %704, %705 : vector<8x128xf32>
    %707 = arith.mulf %679, %679 : vector<8x128xf32>
    %708 = arith.addf %706, %707 : vector<8x128xf32>
    %cst_187 = arith.constant 1.000000e+00 : f32
    %709 = vector.broadcast %cst_187 : f32 to vector<8x128xf32>
    %710 = arith.addf %709, %708 : vector<8x128xf32>
    %711 = tpu.reciprocal %710 {approx = true} : vector<8x128xf32> -> vector<8x128xf32>
    %712 = arith.mulf %710, %711 : vector<8x128xf32>
    %cst_188 = arith.constant 2.000000e+00 : f32
    %713 = vector.broadcast %cst_188 : f32 to vector<8x128xf32>
    %714 = arith.subf %713, %712 : vector<8x128xf32>
    %715 = arith.mulf %711, %714 : vector<8x128xf32>
    %cst_189 = arith.constant 1.000000e+00 : f32
    %716 = vector.broadcast %cst_189 : f32 to vector<8x128xf32>
    %717 = arith.subf %716, %708 : vector<8x128xf32>
    %718 = arith.mulf %717, %715 : vector<8x128xf32>
    %cst_190 = arith.constant 2.000000e+00 : f32
    %719 = vector.broadcast %cst_190 : f32 to vector<8x128xf32>
    %720 = arith.mulf %719, %673 : vector<8x128xf32>
    %721 = arith.mulf %720, %715 : vector<8x128xf32>
    %cst_191 = arith.constant 2.000000e+00 : f32
    %722 = vector.broadcast %cst_191 : f32 to vector<8x128xf32>
    %723 = arith.mulf %722, %676 : vector<8x128xf32>
    %724 = arith.mulf %723, %715 : vector<8x128xf32>
    %cst_192 = arith.constant 2.000000e+00 : f32
    %725 = vector.broadcast %cst_192 : f32 to vector<8x128xf32>
    %726 = arith.mulf %725, %679 : vector<8x128xf32>
    %727 = arith.mulf %726, %715 : vector<8x128xf32>
    %cst_193 = arith.constant -2.000000e+00 : f32
    %728 = vector.broadcast %cst_193 : f32 to vector<8x128xf32>
    %729 = arith.mulf %728, %724 : vector<8x128xf32>
    %cst_194 = arith.constant -2.158200e+01 : f32
    %730 = vector.broadcast %cst_194 : f32 to vector<8x128xf32>
    %731 = arith.mulf %729, %730 : vector<8x128xf32>
    %cst_195 = arith.constant 2.000000e+00 : f32
    %732 = vector.broadcast %cst_195 : f32 to vector<8x128xf32>
    %733 = arith.mulf %732, %721 : vector<8x128xf32>
    %cst_196 = arith.constant -2.158200e+01 : f32
    %734 = vector.broadcast %cst_196 : f32 to vector<8x128xf32>
    %735 = arith.mulf %733, %734 : vector<8x128xf32>
    %736 = arith.mulf %727, %735 : vector<8x128xf32>
    %cst_197 = arith.constant 0.000000e+00 : f32
    %737 = vector.broadcast %cst_197 : f32 to vector<8x128xf32>
    %738 = arith.subf %737, %727 : vector<8x128xf32>
    %739 = arith.mulf %738, %731 : vector<8x128xf32>
    %cst_198 = arith.constant 0.000000e+00 : f32
    %740 = vector.broadcast %cst_198 : f32 to vector<8x128xf32>
    %741 = arith.subf %740, %721 : vector<8x128xf32>
    %742 = arith.mulf %741, %735 : vector<8x128xf32>
    %743 = arith.mulf %724, %731 : vector<8x128xf32>
    %744 = arith.addf %742, %743 : vector<8x128xf32>
    %745 = arith.mulf %718, %731 : vector<8x128xf32>
    %746 = arith.addf %745, %736 : vector<8x128xf32>
    %747 = arith.mulf %718, %735 : vector<8x128xf32>
    %748 = arith.addf %747, %739 : vector<8x128xf32>
    %cst_199 = arith.constant -2.158200e+01 : f32
    %749 = vector.broadcast %cst_199 : f32 to vector<8x128xf32>
    %750 = arith.addf %749, %744 : vector<8x128xf32>
    %751 = arith.addf %76, %750 : vector<8x128xf32>
    %752 = arith.mulf %673, %673 : vector<8x128xf32>
    %753 = arith.mulf %676, %676 : vector<8x128xf32>
    %754 = arith.addf %752, %753 : vector<8x128xf32>
    %755 = arith.mulf %679, %679 : vector<8x128xf32>
    %756 = arith.addf %754, %755 : vector<8x128xf32>
    %757 = arith.mulf %673, %694 : vector<8x128xf32>
    %758 = arith.mulf %676, %697 : vector<8x128xf32>
    %759 = arith.addf %757, %758 : vector<8x128xf32>
    %760 = arith.mulf %679, %700 : vector<8x128xf32>
    %761 = arith.addf %759, %760 : vector<8x128xf32>
    %762 = arith.mulf %676, %700 : vector<8x128xf32>
    %763 = arith.mulf %679, %697 : vector<8x128xf32>
    %764 = arith.subf %762, %763 : vector<8x128xf32>
    %765 = arith.mulf %679, %694 : vector<8x128xf32>
    %766 = arith.mulf %673, %700 : vector<8x128xf32>
    %767 = arith.subf %765, %766 : vector<8x128xf32>
    %768 = arith.mulf %673, %697 : vector<8x128xf32>
    %769 = arith.mulf %676, %694 : vector<8x128xf32>
    %770 = arith.subf %768, %769 : vector<8x128xf32>
    %cst_200 = arith.constant 1.000000e+00 : f32
    %771 = vector.broadcast %cst_200 : f32 to vector<8x128xf32>
    %772 = arith.subf %771, %756 : vector<8x128xf32>
    %773 = arith.mulf %772, %694 : vector<8x128xf32>
    %cst_201 = arith.constant 2.000000e+00 : f32
    %774 = vector.broadcast %cst_201 : f32 to vector<8x128xf32>
    %775 = arith.mulf %774, %764 : vector<8x128xf32>
    %776 = arith.addf %773, %775 : vector<8x128xf32>
    %cst_202 = arith.constant 2.000000e+00 : f32
    %777 = vector.broadcast %cst_202 : f32 to vector<8x128xf32>
    %778 = arith.mulf %777, %761 : vector<8x128xf32>
    %779 = arith.mulf %778, %673 : vector<8x128xf32>
    %780 = arith.addf %776, %779 : vector<8x128xf32>
    %cst_203 = arith.constant 2.500000e-01 : f32
    %781 = vector.broadcast %cst_203 : f32 to vector<8x128xf32>
    %782 = arith.mulf %781, %780 : vector<8x128xf32>
    %cst_204 = arith.constant 1.000000e+00 : f32
    %783 = vector.broadcast %cst_204 : f32 to vector<8x128xf32>
    %784 = arith.subf %783, %756 : vector<8x128xf32>
    %785 = arith.mulf %784, %697 : vector<8x128xf32>
    %cst_205 = arith.constant 2.000000e+00 : f32
    %786 = vector.broadcast %cst_205 : f32 to vector<8x128xf32>
    %787 = arith.mulf %786, %767 : vector<8x128xf32>
    %788 = arith.addf %785, %787 : vector<8x128xf32>
    %cst_206 = arith.constant 2.000000e+00 : f32
    %789 = vector.broadcast %cst_206 : f32 to vector<8x128xf32>
    %790 = arith.mulf %789, %761 : vector<8x128xf32>
    %791 = arith.mulf %790, %676 : vector<8x128xf32>
    %792 = arith.addf %788, %791 : vector<8x128xf32>
    %cst_207 = arith.constant 2.500000e-01 : f32
    %793 = vector.broadcast %cst_207 : f32 to vector<8x128xf32>
    %794 = arith.mulf %793, %792 : vector<8x128xf32>
    %cst_208 = arith.constant 1.000000e+00 : f32
    %795 = vector.broadcast %cst_208 : f32 to vector<8x128xf32>
    %796 = arith.subf %795, %756 : vector<8x128xf32>
    %797 = arith.mulf %796, %700 : vector<8x128xf32>
    %cst_209 = arith.constant 2.000000e+00 : f32
    %798 = vector.broadcast %cst_209 : f32 to vector<8x128xf32>
    %799 = arith.mulf %798, %770 : vector<8x128xf32>
    %800 = arith.addf %797, %799 : vector<8x128xf32>
    %cst_210 = arith.constant 2.000000e+00 : f32
    %801 = vector.broadcast %cst_210 : f32 to vector<8x128xf32>
    %802 = arith.mulf %801, %761 : vector<8x128xf32>
    %803 = arith.mulf %802, %679 : vector<8x128xf32>
    %804 = arith.addf %800, %803 : vector<8x128xf32>
    %cst_211 = arith.constant 2.500000e-01 : f32
    %805 = vector.broadcast %cst_211 : f32 to vector<8x128xf32>
    %806 = arith.mulf %805, %804 : vector<8x128xf32>
    %807 = arith.mulf %724, %691 : vector<8x128xf32>
    %808 = arith.mulf %727, %688 : vector<8x128xf32>
    %809 = arith.subf %807, %808 : vector<8x128xf32>
    %810 = arith.mulf %727, %685 : vector<8x128xf32>
    %811 = arith.mulf %721, %691 : vector<8x128xf32>
    %812 = arith.subf %810, %811 : vector<8x128xf32>
    %813 = arith.mulf %721, %688 : vector<8x128xf32>
    %814 = arith.mulf %724, %685 : vector<8x128xf32>
    %815 = arith.subf %813, %814 : vector<8x128xf32>
    %cst_212 = arith.constant 2.000000e+00 : f32
    %816 = vector.broadcast %cst_212 : f32 to vector<8x128xf32>
    %817 = arith.mulf %816, %809 : vector<8x128xf32>
    %cst_213 = arith.constant 2.000000e+00 : f32
    %818 = vector.broadcast %cst_213 : f32 to vector<8x128xf32>
    %819 = arith.mulf %818, %812 : vector<8x128xf32>
    %cst_214 = arith.constant 2.000000e+00 : f32
    %820 = vector.broadcast %cst_214 : f32 to vector<8x128xf32>
    %821 = arith.mulf %820, %815 : vector<8x128xf32>
    %822 = arith.mulf %724, %821 : vector<8x128xf32>
    %823 = arith.mulf %727, %819 : vector<8x128xf32>
    %824 = arith.subf %822, %823 : vector<8x128xf32>
    %825 = arith.mulf %727, %817 : vector<8x128xf32>
    %826 = arith.mulf %721, %821 : vector<8x128xf32>
    %827 = arith.subf %825, %826 : vector<8x128xf32>
    %828 = arith.mulf %721, %819 : vector<8x128xf32>
    %829 = arith.mulf %724, %817 : vector<8x128xf32>
    %830 = arith.subf %828, %829 : vector<8x128xf32>
    %831 = arith.mulf %718, %817 : vector<8x128xf32>
    %832 = arith.addf %685, %831 : vector<8x128xf32>
    %833 = arith.addf %832, %824 : vector<8x128xf32>
    %834 = arith.mulf %718, %819 : vector<8x128xf32>
    %835 = arith.addf %688, %834 : vector<8x128xf32>
    %836 = arith.addf %835, %827 : vector<8x128xf32>
    %837 = arith.mulf %718, %821 : vector<8x128xf32>
    %838 = arith.addf %691, %837 : vector<8x128xf32>
    %839 = arith.addf %838, %830 : vector<8x128xf32>
    %840 = arith.mulf %697, %691 : vector<8x128xf32>
    %841 = arith.mulf %700, %688 : vector<8x128xf32>
    %842 = arith.subf %840, %841 : vector<8x128xf32>
    %843 = arith.mulf %700, %685 : vector<8x128xf32>
    %844 = arith.mulf %694, %691 : vector<8x128xf32>
    %845 = arith.subf %843, %844 : vector<8x128xf32>
    %846 = arith.mulf %694, %688 : vector<8x128xf32>
    %847 = arith.mulf %697, %685 : vector<8x128xf32>
    %848 = arith.subf %846, %847 : vector<8x128xf32>
    %cst_215 = arith.constant 0.454545468 : f32
    %849 = vector.broadcast %cst_215 : f32 to vector<8x128xf32>
    %850 = arith.mulf %746, %849 : vector<8x128xf32>
    %851 = arith.subf %850, %842 : vector<8x128xf32>
    %cst_216 = arith.constant 0.454545468 : f32
    %852 = vector.broadcast %cst_216 : f32 to vector<8x128xf32>
    %853 = arith.mulf %748, %852 : vector<8x128xf32>
    %854 = arith.subf %853, %845 : vector<8x128xf32>
    %cst_217 = arith.constant 0.454545468 : f32
    %855 = vector.broadcast %cst_217 : f32 to vector<8x128xf32>
    %856 = arith.mulf %751, %855 : vector<8x128xf32>
    %857 = arith.subf %856, %848 : vector<8x128xf32>
    %cst_218 = arith.constant 0.0156608894 : f32
    %858 = vector.broadcast %cst_218 : f32 to vector<8x128xf32>
    %859 = arith.mulf %858, %694 : vector<8x128xf32>
    %cst_219 = arith.constant 3.180370e-06 : f32
    %860 = vector.broadcast %cst_219 : f32 to vector<8x128xf32>
    %861 = arith.mulf %860, %697 : vector<8x128xf32>
    %862 = arith.addf %859, %861 : vector<8x128xf32>
    %cst_220 = arith.constant 3.180370e-06 : f32
    %863 = vector.broadcast %cst_220 : f32 to vector<8x128xf32>
    %864 = arith.mulf %863, %694 : vector<8x128xf32>
    %cst_221 = arith.constant 0.0156207802 : f32
    %865 = vector.broadcast %cst_221 : f32 to vector<8x128xf32>
    %866 = arith.mulf %865, %697 : vector<8x128xf32>
    %867 = arith.addf %864, %866 : vector<8x128xf32>
    %cst_222 = arith.constant 0.0222686809 : f32
    %868 = vector.broadcast %cst_222 : f32 to vector<8x128xf32>
    %869 = arith.mulf %868, %700 : vector<8x128xf32>
    %870 = arith.mulf %697, %869 : vector<8x128xf32>
    %871 = arith.mulf %700, %867 : vector<8x128xf32>
    %872 = arith.subf %870, %871 : vector<8x128xf32>
    %873 = arith.mulf %700, %862 : vector<8x128xf32>
    %874 = arith.mulf %694, %869 : vector<8x128xf32>
    %875 = arith.subf %873, %874 : vector<8x128xf32>
    %876 = arith.mulf %694, %867 : vector<8x128xf32>
    %877 = arith.mulf %697, %862 : vector<8x128xf32>
    %878 = arith.subf %876, %877 : vector<8x128xf32>
    %879 = arith.subf %97, %872 : vector<8x128xf32>
    %880 = arith.subf %110, %875 : vector<8x128xf32>
    %881 = arith.subf %115, %878 : vector<8x128xf32>
    %cst_223 = arith.constant 63.8533325 : f32
    %882 = vector.broadcast %cst_223 : f32 to vector<8x128xf32>
    %883 = arith.mulf %882, %879 : vector<8x128xf32>
    %cst_224 = arith.constant -0.0130004538 : f32
    %884 = vector.broadcast %cst_224 : f32 to vector<8x128xf32>
    %885 = arith.mulf %884, %880 : vector<8x128xf32>
    %886 = arith.addf %883, %885 : vector<8x128xf32>
    %cst_225 = arith.constant -0.0130004538 : f32
    %887 = vector.broadcast %cst_225 : f32 to vector<8x128xf32>
    %888 = arith.mulf %887, %879 : vector<8x128xf32>
    %cst_226 = arith.constant 64.0172958 : f32
    %889 = vector.broadcast %cst_226 : f32 to vector<8x128xf32>
    %890 = arith.mulf %889, %880 : vector<8x128xf32>
    %891 = arith.addf %888, %890 : vector<8x128xf32>
    %cst_227 = arith.constant 44.9061203 : f32
    %892 = vector.broadcast %cst_227 : f32 to vector<8x128xf32>
    %893 = arith.mulf %892, %881 : vector<8x128xf32>
    %894 = arith.mulf %724, %857 : vector<8x128xf32>
    %895 = arith.mulf %727, %854 : vector<8x128xf32>
    %896 = arith.subf %894, %895 : vector<8x128xf32>
    %cst_228 = arith.constant 2.000000e+00 : f32
    %897 = vector.broadcast %cst_228 : f32 to vector<8x128xf32>
    %898 = arith.mulf %897, %896 : vector<8x128xf32>
    %899 = arith.mulf %727, %851 : vector<8x128xf32>
    %900 = arith.mulf %721, %857 : vector<8x128xf32>
    %901 = arith.subf %899, %900 : vector<8x128xf32>
    %cst_229 = arith.constant 2.000000e+00 : f32
    %902 = vector.broadcast %cst_229 : f32 to vector<8x128xf32>
    %903 = arith.mulf %902, %901 : vector<8x128xf32>
    %904 = arith.mulf %721, %854 : vector<8x128xf32>
    %905 = arith.mulf %724, %851 : vector<8x128xf32>
    %906 = arith.subf %904, %905 : vector<8x128xf32>
    %cst_230 = arith.constant 2.000000e+00 : f32
    %907 = vector.broadcast %cst_230 : f32 to vector<8x128xf32>
    %908 = arith.mulf %907, %906 : vector<8x128xf32>
    %909 = arith.mulf %724, %908 : vector<8x128xf32>
    %910 = arith.mulf %727, %903 : vector<8x128xf32>
    %911 = arith.subf %909, %910 : vector<8x128xf32>
    %912 = arith.mulf %718, %898 : vector<8x128xf32>
    %913 = arith.addf %851, %912 : vector<8x128xf32>
    %914 = arith.addf %913, %911 : vector<8x128xf32>
    %915 = math.sin %682 : vector<8x128xf32>
    %cst_231 = arith.constant -9.810000e+00 : f32
    %916 = vector.broadcast %cst_231 : f32 to vector<8x128xf32>
    %917 = arith.mulf %916, %915 : vector<8x128xf32>
    %918 = math.cos %682 : vector<8x128xf32>
    %919 = arith.mulf %914, %918 : vector<8x128xf32>
    %920 = arith.addf %917, %919 : vector<8x128xf32>
    %cst_232 = arith.constant 2.000000e+00 : f32
    %921 = vector.broadcast %cst_232 : f32 to vector<8x128xf32>
    %922 = arith.mulf %920, %921 : vector<8x128xf32>
    %cst_233 = arith.constant 0.0166666675 : f32
    %923 = vector.broadcast %cst_233 : f32 to vector<8x128xf32>
    %924 = arith.mulf %923, %833 : vector<8x128xf32>
    %925 = arith.addf %631, %924 : vector<8x128xf32>
    %cst_234 = arith.constant 0.0166666675 : f32
    %926 = vector.broadcast %cst_234 : f32 to vector<8x128xf32>
    %927 = arith.mulf %926, %836 : vector<8x128xf32>
    %928 = arith.addf %634, %927 : vector<8x128xf32>
    %cst_235 = arith.constant 0.0166666675 : f32
    %929 = vector.broadcast %cst_235 : f32 to vector<8x128xf32>
    %930 = arith.mulf %929, %839 : vector<8x128xf32>
    %931 = arith.addf %637, %930 : vector<8x128xf32>
    %cst_236 = arith.constant 0.0166666675 : f32
    %932 = vector.broadcast %cst_236 : f32 to vector<8x128xf32>
    %933 = arith.mulf %932, %782 : vector<8x128xf32>
    %934 = arith.addf %640, %933 : vector<8x128xf32>
    %cst_237 = arith.constant 0.0166666675 : f32
    %935 = vector.broadcast %cst_237 : f32 to vector<8x128xf32>
    %936 = arith.mulf %935, %794 : vector<8x128xf32>
    %937 = arith.addf %643, %936 : vector<8x128xf32>
    %cst_238 = arith.constant 0.0166666675 : f32
    %938 = vector.broadcast %cst_238 : f32 to vector<8x128xf32>
    %939 = arith.mulf %938, %806 : vector<8x128xf32>
    %940 = arith.addf %646, %939 : vector<8x128xf32>
    %cst_239 = arith.constant 0.0166666675 : f32
    %941 = vector.broadcast %cst_239 : f32 to vector<8x128xf32>
    %942 = arith.mulf %941, %703 : vector<8x128xf32>
    %943 = arith.addf %649, %942 : vector<8x128xf32>
    %cst_240 = arith.constant 0.0166666675 : f32
    %944 = vector.broadcast %cst_240 : f32 to vector<8x128xf32>
    %945 = arith.mulf %944, %851 : vector<8x128xf32>
    %946 = arith.addf %652, %945 : vector<8x128xf32>
    %cst_241 = arith.constant 0.0166666675 : f32
    %947 = vector.broadcast %cst_241 : f32 to vector<8x128xf32>
    %948 = arith.mulf %947, %854 : vector<8x128xf32>
    %949 = arith.addf %655, %948 : vector<8x128xf32>
    %cst_242 = arith.constant 0.0166666675 : f32
    %950 = vector.broadcast %cst_242 : f32 to vector<8x128xf32>
    %951 = arith.mulf %950, %857 : vector<8x128xf32>
    %952 = arith.addf %658, %951 : vector<8x128xf32>
    %cst_243 = arith.constant 0.0166666675 : f32
    %953 = vector.broadcast %cst_243 : f32 to vector<8x128xf32>
    %954 = arith.mulf %953, %886 : vector<8x128xf32>
    %955 = arith.addf %661, %954 : vector<8x128xf32>
    %cst_244 = arith.constant 0.0166666675 : f32
    %956 = vector.broadcast %cst_244 : f32 to vector<8x128xf32>
    %957 = arith.mulf %956, %891 : vector<8x128xf32>
    %958 = arith.addf %664, %957 : vector<8x128xf32>
    %cst_245 = arith.constant 0.0166666675 : f32
    %959 = vector.broadcast %cst_245 : f32 to vector<8x128xf32>
    %960 = arith.mulf %959, %893 : vector<8x128xf32>
    %961 = arith.addf %667, %960 : vector<8x128xf32>
    %cst_246 = arith.constant 0.0166666675 : f32
    %962 = vector.broadcast %cst_246 : f32 to vector<8x128xf32>
    %963 = arith.mulf %962, %922 : vector<8x128xf32>
    %964 = arith.addf %670, %963 : vector<8x128xf32>
    %cst_247 = arith.constant 5.000000e-02 : f32
    %965 = vector.broadcast %cst_247 : f32 to vector<8x128xf32>
    %966 = arith.mulf %965, %782 : vector<8x128xf32>
    %967 = arith.addf %13, %966 : vector<8x128xf32>
    %cst_248 = arith.constant 5.000000e-02 : f32
    %968 = vector.broadcast %cst_248 : f32 to vector<8x128xf32>
    %969 = arith.mulf %968, %794 : vector<8x128xf32>
    %970 = arith.addf %16, %969 : vector<8x128xf32>
    %cst_249 = arith.constant 5.000000e-02 : f32
    %971 = vector.broadcast %cst_249 : f32 to vector<8x128xf32>
    %972 = arith.mulf %971, %806 : vector<8x128xf32>
    %973 = arith.addf %19, %972 : vector<8x128xf32>
    %cst_250 = arith.constant 5.000000e-02 : f32
    %974 = vector.broadcast %cst_250 : f32 to vector<8x128xf32>
    %975 = arith.mulf %974, %703 : vector<8x128xf32>
    %976 = arith.addf %22, %975 : vector<8x128xf32>
    %cst_251 = arith.constant 5.000000e-02 : f32
    %977 = vector.broadcast %cst_251 : f32 to vector<8x128xf32>
    %978 = arith.mulf %977, %851 : vector<8x128xf32>
    %979 = arith.addf %25, %978 : vector<8x128xf32>
    %cst_252 = arith.constant 5.000000e-02 : f32
    %980 = vector.broadcast %cst_252 : f32 to vector<8x128xf32>
    %981 = arith.mulf %980, %854 : vector<8x128xf32>
    %982 = arith.addf %28, %981 : vector<8x128xf32>
    %cst_253 = arith.constant 5.000000e-02 : f32
    %983 = vector.broadcast %cst_253 : f32 to vector<8x128xf32>
    %984 = arith.mulf %983, %857 : vector<8x128xf32>
    %985 = arith.addf %31, %984 : vector<8x128xf32>
    %cst_254 = arith.constant 5.000000e-02 : f32
    %986 = vector.broadcast %cst_254 : f32 to vector<8x128xf32>
    %987 = arith.mulf %986, %886 : vector<8x128xf32>
    %988 = arith.addf %34, %987 : vector<8x128xf32>
    %cst_255 = arith.constant 5.000000e-02 : f32
    %989 = vector.broadcast %cst_255 : f32 to vector<8x128xf32>
    %990 = arith.mulf %989, %891 : vector<8x128xf32>
    %991 = arith.addf %37, %990 : vector<8x128xf32>
    %cst_256 = arith.constant 5.000000e-02 : f32
    %992 = vector.broadcast %cst_256 : f32 to vector<8x128xf32>
    %993 = arith.mulf %992, %893 : vector<8x128xf32>
    %994 = arith.addf %40, %993 : vector<8x128xf32>
    %cst_257 = arith.constant 5.000000e-02 : f32
    %995 = vector.broadcast %cst_257 : f32 to vector<8x128xf32>
    %996 = arith.mulf %995, %922 : vector<8x128xf32>
    %997 = arith.addf %43, %996 : vector<8x128xf32>
    %998 = arith.mulf %967, %967 : vector<8x128xf32>
    %999 = arith.mulf %970, %970 : vector<8x128xf32>
    %1000 = arith.addf %998, %999 : vector<8x128xf32>
    %1001 = arith.mulf %973, %973 : vector<8x128xf32>
    %1002 = arith.addf %1000, %1001 : vector<8x128xf32>
    %cst_258 = arith.constant 1.000000e+00 : f32
    %1003 = vector.broadcast %cst_258 : f32 to vector<8x128xf32>
    %1004 = arith.addf %1003, %1002 : vector<8x128xf32>
    %1005 = tpu.reciprocal %1004 {approx = true} : vector<8x128xf32> -> vector<8x128xf32>
    %1006 = arith.mulf %1004, %1005 : vector<8x128xf32>
    %cst_259 = arith.constant 2.000000e+00 : f32
    %1007 = vector.broadcast %cst_259 : f32 to vector<8x128xf32>
    %1008 = arith.subf %1007, %1006 : vector<8x128xf32>
    %1009 = arith.mulf %1005, %1008 : vector<8x128xf32>
    %cst_260 = arith.constant 1.000000e+00 : f32
    %1010 = vector.broadcast %cst_260 : f32 to vector<8x128xf32>
    %1011 = arith.subf %1010, %1002 : vector<8x128xf32>
    %1012 = arith.mulf %1011, %1009 : vector<8x128xf32>
    %cst_261 = arith.constant 2.000000e+00 : f32
    %1013 = vector.broadcast %cst_261 : f32 to vector<8x128xf32>
    %1014 = arith.mulf %1013, %967 : vector<8x128xf32>
    %1015 = arith.mulf %1014, %1009 : vector<8x128xf32>
    %cst_262 = arith.constant 2.000000e+00 : f32
    %1016 = vector.broadcast %cst_262 : f32 to vector<8x128xf32>
    %1017 = arith.mulf %1016, %970 : vector<8x128xf32>
    %1018 = arith.mulf %1017, %1009 : vector<8x128xf32>
    %cst_263 = arith.constant 2.000000e+00 : f32
    %1019 = vector.broadcast %cst_263 : f32 to vector<8x128xf32>
    %1020 = arith.mulf %1019, %973 : vector<8x128xf32>
    %1021 = arith.mulf %1020, %1009 : vector<8x128xf32>
    %cst_264 = arith.constant -2.000000e+00 : f32
    %1022 = vector.broadcast %cst_264 : f32 to vector<8x128xf32>
    %1023 = arith.mulf %1022, %1018 : vector<8x128xf32>
    %cst_265 = arith.constant -2.158200e+01 : f32
    %1024 = vector.broadcast %cst_265 : f32 to vector<8x128xf32>
    %1025 = arith.mulf %1023, %1024 : vector<8x128xf32>
    %cst_266 = arith.constant 2.000000e+00 : f32
    %1026 = vector.broadcast %cst_266 : f32 to vector<8x128xf32>
    %1027 = arith.mulf %1026, %1015 : vector<8x128xf32>
    %cst_267 = arith.constant -2.158200e+01 : f32
    %1028 = vector.broadcast %cst_267 : f32 to vector<8x128xf32>
    %1029 = arith.mulf %1027, %1028 : vector<8x128xf32>
    %1030 = arith.mulf %1021, %1029 : vector<8x128xf32>
    %cst_268 = arith.constant 0.000000e+00 : f32
    %1031 = vector.broadcast %cst_268 : f32 to vector<8x128xf32>
    %1032 = arith.subf %1031, %1021 : vector<8x128xf32>
    %1033 = arith.mulf %1032, %1025 : vector<8x128xf32>
    %cst_269 = arith.constant 0.000000e+00 : f32
    %1034 = vector.broadcast %cst_269 : f32 to vector<8x128xf32>
    %1035 = arith.subf %1034, %1015 : vector<8x128xf32>
    %1036 = arith.mulf %1035, %1029 : vector<8x128xf32>
    %1037 = arith.mulf %1018, %1025 : vector<8x128xf32>
    %1038 = arith.addf %1036, %1037 : vector<8x128xf32>
    %1039 = arith.mulf %1012, %1025 : vector<8x128xf32>
    %1040 = arith.addf %1039, %1030 : vector<8x128xf32>
    %1041 = arith.mulf %1012, %1029 : vector<8x128xf32>
    %1042 = arith.addf %1041, %1033 : vector<8x128xf32>
    %cst_270 = arith.constant -2.158200e+01 : f32
    %1043 = vector.broadcast %cst_270 : f32 to vector<8x128xf32>
    %1044 = arith.addf %1043, %1038 : vector<8x128xf32>
    %1045 = arith.addf %76, %1044 : vector<8x128xf32>
    %1046 = arith.mulf %967, %967 : vector<8x128xf32>
    %1047 = arith.mulf %970, %970 : vector<8x128xf32>
    %1048 = arith.addf %1046, %1047 : vector<8x128xf32>
    %1049 = arith.mulf %973, %973 : vector<8x128xf32>
    %1050 = arith.addf %1048, %1049 : vector<8x128xf32>
    %1051 = arith.mulf %967, %988 : vector<8x128xf32>
    %1052 = arith.mulf %970, %991 : vector<8x128xf32>
    %1053 = arith.addf %1051, %1052 : vector<8x128xf32>
    %1054 = arith.mulf %973, %994 : vector<8x128xf32>
    %1055 = arith.addf %1053, %1054 : vector<8x128xf32>
    %1056 = arith.mulf %970, %994 : vector<8x128xf32>
    %1057 = arith.mulf %973, %991 : vector<8x128xf32>
    %1058 = arith.subf %1056, %1057 : vector<8x128xf32>
    %1059 = arith.mulf %973, %988 : vector<8x128xf32>
    %1060 = arith.mulf %967, %994 : vector<8x128xf32>
    %1061 = arith.subf %1059, %1060 : vector<8x128xf32>
    %1062 = arith.mulf %967, %991 : vector<8x128xf32>
    %1063 = arith.mulf %970, %988 : vector<8x128xf32>
    %1064 = arith.subf %1062, %1063 : vector<8x128xf32>
    %cst_271 = arith.constant 1.000000e+00 : f32
    %1065 = vector.broadcast %cst_271 : f32 to vector<8x128xf32>
    %1066 = arith.subf %1065, %1050 : vector<8x128xf32>
    %1067 = arith.mulf %1066, %988 : vector<8x128xf32>
    %cst_272 = arith.constant 2.000000e+00 : f32
    %1068 = vector.broadcast %cst_272 : f32 to vector<8x128xf32>
    %1069 = arith.mulf %1068, %1058 : vector<8x128xf32>
    %1070 = arith.addf %1067, %1069 : vector<8x128xf32>
    %cst_273 = arith.constant 2.000000e+00 : f32
    %1071 = vector.broadcast %cst_273 : f32 to vector<8x128xf32>
    %1072 = arith.mulf %1071, %1055 : vector<8x128xf32>
    %1073 = arith.mulf %1072, %967 : vector<8x128xf32>
    %1074 = arith.addf %1070, %1073 : vector<8x128xf32>
    %cst_274 = arith.constant 2.500000e-01 : f32
    %1075 = vector.broadcast %cst_274 : f32 to vector<8x128xf32>
    %1076 = arith.mulf %1075, %1074 : vector<8x128xf32>
    %cst_275 = arith.constant 1.000000e+00 : f32
    %1077 = vector.broadcast %cst_275 : f32 to vector<8x128xf32>
    %1078 = arith.subf %1077, %1050 : vector<8x128xf32>
    %1079 = arith.mulf %1078, %991 : vector<8x128xf32>
    %cst_276 = arith.constant 2.000000e+00 : f32
    %1080 = vector.broadcast %cst_276 : f32 to vector<8x128xf32>
    %1081 = arith.mulf %1080, %1061 : vector<8x128xf32>
    %1082 = arith.addf %1079, %1081 : vector<8x128xf32>
    %cst_277 = arith.constant 2.000000e+00 : f32
    %1083 = vector.broadcast %cst_277 : f32 to vector<8x128xf32>
    %1084 = arith.mulf %1083, %1055 : vector<8x128xf32>
    %1085 = arith.mulf %1084, %970 : vector<8x128xf32>
    %1086 = arith.addf %1082, %1085 : vector<8x128xf32>
    %cst_278 = arith.constant 2.500000e-01 : f32
    %1087 = vector.broadcast %cst_278 : f32 to vector<8x128xf32>
    %1088 = arith.mulf %1087, %1086 : vector<8x128xf32>
    %cst_279 = arith.constant 1.000000e+00 : f32
    %1089 = vector.broadcast %cst_279 : f32 to vector<8x128xf32>
    %1090 = arith.subf %1089, %1050 : vector<8x128xf32>
    %1091 = arith.mulf %1090, %994 : vector<8x128xf32>
    %cst_280 = arith.constant 2.000000e+00 : f32
    %1092 = vector.broadcast %cst_280 : f32 to vector<8x128xf32>
    %1093 = arith.mulf %1092, %1064 : vector<8x128xf32>
    %1094 = arith.addf %1091, %1093 : vector<8x128xf32>
    %cst_281 = arith.constant 2.000000e+00 : f32
    %1095 = vector.broadcast %cst_281 : f32 to vector<8x128xf32>
    %1096 = arith.mulf %1095, %1055 : vector<8x128xf32>
    %1097 = arith.mulf %1096, %973 : vector<8x128xf32>
    %1098 = arith.addf %1094, %1097 : vector<8x128xf32>
    %cst_282 = arith.constant 2.500000e-01 : f32
    %1099 = vector.broadcast %cst_282 : f32 to vector<8x128xf32>
    %1100 = arith.mulf %1099, %1098 : vector<8x128xf32>
    %1101 = arith.mulf %1018, %985 : vector<8x128xf32>
    %1102 = arith.mulf %1021, %982 : vector<8x128xf32>
    %1103 = arith.subf %1101, %1102 : vector<8x128xf32>
    %1104 = arith.mulf %1021, %979 : vector<8x128xf32>
    %1105 = arith.mulf %1015, %985 : vector<8x128xf32>
    %1106 = arith.subf %1104, %1105 : vector<8x128xf32>
    %1107 = arith.mulf %1015, %982 : vector<8x128xf32>
    %1108 = arith.mulf %1018, %979 : vector<8x128xf32>
    %1109 = arith.subf %1107, %1108 : vector<8x128xf32>
    %cst_283 = arith.constant 2.000000e+00 : f32
    %1110 = vector.broadcast %cst_283 : f32 to vector<8x128xf32>
    %1111 = arith.mulf %1110, %1103 : vector<8x128xf32>
    %cst_284 = arith.constant 2.000000e+00 : f32
    %1112 = vector.broadcast %cst_284 : f32 to vector<8x128xf32>
    %1113 = arith.mulf %1112, %1106 : vector<8x128xf32>
    %cst_285 = arith.constant 2.000000e+00 : f32
    %1114 = vector.broadcast %cst_285 : f32 to vector<8x128xf32>
    %1115 = arith.mulf %1114, %1109 : vector<8x128xf32>
    %1116 = arith.mulf %1018, %1115 : vector<8x128xf32>
    %1117 = arith.mulf %1021, %1113 : vector<8x128xf32>
    %1118 = arith.subf %1116, %1117 : vector<8x128xf32>
    %1119 = arith.mulf %1021, %1111 : vector<8x128xf32>
    %1120 = arith.mulf %1015, %1115 : vector<8x128xf32>
    %1121 = arith.subf %1119, %1120 : vector<8x128xf32>
    %1122 = arith.mulf %1015, %1113 : vector<8x128xf32>
    %1123 = arith.mulf %1018, %1111 : vector<8x128xf32>
    %1124 = arith.subf %1122, %1123 : vector<8x128xf32>
    %1125 = arith.mulf %1012, %1111 : vector<8x128xf32>
    %1126 = arith.addf %979, %1125 : vector<8x128xf32>
    %1127 = arith.addf %1126, %1118 : vector<8x128xf32>
    %1128 = arith.mulf %1012, %1113 : vector<8x128xf32>
    %1129 = arith.addf %982, %1128 : vector<8x128xf32>
    %1130 = arith.addf %1129, %1121 : vector<8x128xf32>
    %1131 = arith.mulf %1012, %1115 : vector<8x128xf32>
    %1132 = arith.addf %985, %1131 : vector<8x128xf32>
    %1133 = arith.addf %1132, %1124 : vector<8x128xf32>
    %1134 = arith.mulf %991, %985 : vector<8x128xf32>
    %1135 = arith.mulf %994, %982 : vector<8x128xf32>
    %1136 = arith.subf %1134, %1135 : vector<8x128xf32>
    %1137 = arith.mulf %994, %979 : vector<8x128xf32>
    %1138 = arith.mulf %988, %985 : vector<8x128xf32>
    %1139 = arith.subf %1137, %1138 : vector<8x128xf32>
    %1140 = arith.mulf %988, %982 : vector<8x128xf32>
    %1141 = arith.mulf %991, %979 : vector<8x128xf32>
    %1142 = arith.subf %1140, %1141 : vector<8x128xf32>
    %cst_286 = arith.constant 0.454545468 : f32
    %1143 = vector.broadcast %cst_286 : f32 to vector<8x128xf32>
    %1144 = arith.mulf %1040, %1143 : vector<8x128xf32>
    %1145 = arith.subf %1144, %1136 : vector<8x128xf32>
    %cst_287 = arith.constant 0.454545468 : f32
    %1146 = vector.broadcast %cst_287 : f32 to vector<8x128xf32>
    %1147 = arith.mulf %1042, %1146 : vector<8x128xf32>
    %1148 = arith.subf %1147, %1139 : vector<8x128xf32>
    %cst_288 = arith.constant 0.454545468 : f32
    %1149 = vector.broadcast %cst_288 : f32 to vector<8x128xf32>
    %1150 = arith.mulf %1045, %1149 : vector<8x128xf32>
    %1151 = arith.subf %1150, %1142 : vector<8x128xf32>
    %cst_289 = arith.constant 0.0156608894 : f32
    %1152 = vector.broadcast %cst_289 : f32 to vector<8x128xf32>
    %1153 = arith.mulf %1152, %988 : vector<8x128xf32>
    %cst_290 = arith.constant 3.180370e-06 : f32
    %1154 = vector.broadcast %cst_290 : f32 to vector<8x128xf32>
    %1155 = arith.mulf %1154, %991 : vector<8x128xf32>
    %1156 = arith.addf %1153, %1155 : vector<8x128xf32>
    %cst_291 = arith.constant 3.180370e-06 : f32
    %1157 = vector.broadcast %cst_291 : f32 to vector<8x128xf32>
    %1158 = arith.mulf %1157, %988 : vector<8x128xf32>
    %cst_292 = arith.constant 0.0156207802 : f32
    %1159 = vector.broadcast %cst_292 : f32 to vector<8x128xf32>
    %1160 = arith.mulf %1159, %991 : vector<8x128xf32>
    %1161 = arith.addf %1158, %1160 : vector<8x128xf32>
    %cst_293 = arith.constant 0.0222686809 : f32
    %1162 = vector.broadcast %cst_293 : f32 to vector<8x128xf32>
    %1163 = arith.mulf %1162, %994 : vector<8x128xf32>
    %1164 = arith.mulf %991, %1163 : vector<8x128xf32>
    %1165 = arith.mulf %994, %1161 : vector<8x128xf32>
    %1166 = arith.subf %1164, %1165 : vector<8x128xf32>
    %1167 = arith.mulf %994, %1156 : vector<8x128xf32>
    %1168 = arith.mulf %988, %1163 : vector<8x128xf32>
    %1169 = arith.subf %1167, %1168 : vector<8x128xf32>
    %1170 = arith.mulf %988, %1161 : vector<8x128xf32>
    %1171 = arith.mulf %991, %1156 : vector<8x128xf32>
    %1172 = arith.subf %1170, %1171 : vector<8x128xf32>
    %1173 = arith.subf %97, %1166 : vector<8x128xf32>
    %1174 = arith.subf %110, %1169 : vector<8x128xf32>
    %1175 = arith.subf %115, %1172 : vector<8x128xf32>
    %cst_294 = arith.constant 63.8533325 : f32
    %1176 = vector.broadcast %cst_294 : f32 to vector<8x128xf32>
    %1177 = arith.mulf %1176, %1173 : vector<8x128xf32>
    %cst_295 = arith.constant -0.0130004538 : f32
    %1178 = vector.broadcast %cst_295 : f32 to vector<8x128xf32>
    %1179 = arith.mulf %1178, %1174 : vector<8x128xf32>
    %1180 = arith.addf %1177, %1179 : vector<8x128xf32>
    %cst_296 = arith.constant -0.0130004538 : f32
    %1181 = vector.broadcast %cst_296 : f32 to vector<8x128xf32>
    %1182 = arith.mulf %1181, %1173 : vector<8x128xf32>
    %cst_297 = arith.constant 64.0172958 : f32
    %1183 = vector.broadcast %cst_297 : f32 to vector<8x128xf32>
    %1184 = arith.mulf %1183, %1174 : vector<8x128xf32>
    %1185 = arith.addf %1182, %1184 : vector<8x128xf32>
    %cst_298 = arith.constant 44.9061203 : f32
    %1186 = vector.broadcast %cst_298 : f32 to vector<8x128xf32>
    %1187 = arith.mulf %1186, %1175 : vector<8x128xf32>
    %1188 = arith.mulf %1018, %1151 : vector<8x128xf32>
    %1189 = arith.mulf %1021, %1148 : vector<8x128xf32>
    %1190 = arith.subf %1188, %1189 : vector<8x128xf32>
    %cst_299 = arith.constant 2.000000e+00 : f32
    %1191 = vector.broadcast %cst_299 : f32 to vector<8x128xf32>
    %1192 = arith.mulf %1191, %1190 : vector<8x128xf32>
    %1193 = arith.mulf %1021, %1145 : vector<8x128xf32>
    %1194 = arith.mulf %1015, %1151 : vector<8x128xf32>
    %1195 = arith.subf %1193, %1194 : vector<8x128xf32>
    %cst_300 = arith.constant 2.000000e+00 : f32
    %1196 = vector.broadcast %cst_300 : f32 to vector<8x128xf32>
    %1197 = arith.mulf %1196, %1195 : vector<8x128xf32>
    %1198 = arith.mulf %1015, %1148 : vector<8x128xf32>
    %1199 = arith.mulf %1018, %1145 : vector<8x128xf32>
    %1200 = arith.subf %1198, %1199 : vector<8x128xf32>
    %cst_301 = arith.constant 2.000000e+00 : f32
    %1201 = vector.broadcast %cst_301 : f32 to vector<8x128xf32>
    %1202 = arith.mulf %1201, %1200 : vector<8x128xf32>
    %1203 = arith.mulf %1018, %1202 : vector<8x128xf32>
    %1204 = arith.mulf %1021, %1197 : vector<8x128xf32>
    %1205 = arith.subf %1203, %1204 : vector<8x128xf32>
    %1206 = arith.mulf %1012, %1192 : vector<8x128xf32>
    %1207 = arith.addf %1145, %1206 : vector<8x128xf32>
    %1208 = arith.addf %1207, %1205 : vector<8x128xf32>
    %1209 = math.sin %976 : vector<8x128xf32>
    %cst_302 = arith.constant -9.810000e+00 : f32
    %1210 = vector.broadcast %cst_302 : f32 to vector<8x128xf32>
    %1211 = arith.mulf %1210, %1209 : vector<8x128xf32>
    %1212 = math.cos %976 : vector<8x128xf32>
    %1213 = arith.mulf %1208, %1212 : vector<8x128xf32>
    %1214 = arith.addf %1211, %1213 : vector<8x128xf32>
    %cst_303 = arith.constant 2.000000e+00 : f32
    %1215 = vector.broadcast %cst_303 : f32 to vector<8x128xf32>
    %1216 = arith.mulf %1214, %1215 : vector<8x128xf32>
    %cst_304 = arith.constant 0.00833333377 : f32
    %1217 = vector.broadcast %cst_304 : f32 to vector<8x128xf32>
    %1218 = arith.mulf %1217, %1127 : vector<8x128xf32>
    %1219 = arith.addf %925, %1218 : vector<8x128xf32>
    %cst_305 = arith.constant 0.00833333377 : f32
    %1220 = vector.broadcast %cst_305 : f32 to vector<8x128xf32>
    %1221 = arith.mulf %1220, %1130 : vector<8x128xf32>
    %1222 = arith.addf %928, %1221 : vector<8x128xf32>
    %cst_306 = arith.constant 0.00833333377 : f32
    %1223 = vector.broadcast %cst_306 : f32 to vector<8x128xf32>
    %1224 = arith.mulf %1223, %1133 : vector<8x128xf32>
    %1225 = arith.addf %931, %1224 : vector<8x128xf32>
    %cst_307 = arith.constant 0.00833333377 : f32
    %1226 = vector.broadcast %cst_307 : f32 to vector<8x128xf32>
    %1227 = arith.mulf %1226, %1076 : vector<8x128xf32>
    %1228 = arith.addf %934, %1227 : vector<8x128xf32>
    %cst_308 = arith.constant 0.00833333377 : f32
    %1229 = vector.broadcast %cst_308 : f32 to vector<8x128xf32>
    %1230 = arith.mulf %1229, %1088 : vector<8x128xf32>
    %1231 = arith.addf %937, %1230 : vector<8x128xf32>
    %cst_309 = arith.constant 0.00833333377 : f32
    %1232 = vector.broadcast %cst_309 : f32 to vector<8x128xf32>
    %1233 = arith.mulf %1232, %1100 : vector<8x128xf32>
    %1234 = arith.addf %940, %1233 : vector<8x128xf32>
    %cst_310 = arith.constant 0.00833333377 : f32
    %1235 = vector.broadcast %cst_310 : f32 to vector<8x128xf32>
    %1236 = arith.mulf %1235, %997 : vector<8x128xf32>
    %1237 = arith.addf %943, %1236 : vector<8x128xf32>
    %cst_311 = arith.constant 0.00833333377 : f32
    %1238 = vector.broadcast %cst_311 : f32 to vector<8x128xf32>
    %1239 = arith.mulf %1238, %1145 : vector<8x128xf32>
    %1240 = arith.addf %946, %1239 : vector<8x128xf32>
    %cst_312 = arith.constant 0.00833333377 : f32
    %1241 = vector.broadcast %cst_312 : f32 to vector<8x128xf32>
    %1242 = arith.mulf %1241, %1148 : vector<8x128xf32>
    %1243 = arith.addf %949, %1242 : vector<8x128xf32>
    %cst_313 = arith.constant 0.00833333377 : f32
    %1244 = vector.broadcast %cst_313 : f32 to vector<8x128xf32>
    %1245 = arith.mulf %1244, %1151 : vector<8x128xf32>
    %1246 = arith.addf %952, %1245 : vector<8x128xf32>
    %cst_314 = arith.constant 0.00833333377 : f32
    %1247 = vector.broadcast %cst_314 : f32 to vector<8x128xf32>
    %1248 = arith.mulf %1247, %1180 : vector<8x128xf32>
    %1249 = arith.addf %955, %1248 : vector<8x128xf32>
    %cst_315 = arith.constant 0.00833333377 : f32
    %1250 = vector.broadcast %cst_315 : f32 to vector<8x128xf32>
    %1251 = arith.mulf %1250, %1185 : vector<8x128xf32>
    %1252 = arith.addf %958, %1251 : vector<8x128xf32>
    %cst_316 = arith.constant 0.00833333377 : f32
    %1253 = vector.broadcast %cst_316 : f32 to vector<8x128xf32>
    %1254 = arith.mulf %1253, %1187 : vector<8x128xf32>
    %1255 = arith.addf %961, %1254 : vector<8x128xf32>
    %cst_317 = arith.constant 0.00833333377 : f32
    %1256 = vector.broadcast %cst_317 : f32 to vector<8x128xf32>
    %1257 = arith.mulf %1256, %1216 : vector<8x128xf32>
    %1258 = arith.addf %964, %1257 : vector<8x128xf32>
    %c0_318 = arith.constant 0 : index
    %1259 = arith.index_cast %1 : i32 to index
    %c0_319 = arith.constant 0 : index
    %1260 = vector.load %arg3[%c0_318, %1259, %c0_319] : memref<14x8x128xf32, #tpu.memory_space<vmem>>, vector<1x8x128xf32>
    %1261 = vector.shape_cast %1260 : vector<1x8x128xf32> to vector<8x128xf32>
    %1262 = vector.shape_cast %1219 : vector<8x128xf32> to vector<1x8x128xf32>
    tpu.vector_store %arg3[%c0_318, %1259, %c0_319], %1262 {strides = array<i32>} : memref<14x8x128xf32, #tpu.memory_space<vmem>>, vector<1x8x128xf32>,
    %c1_320 = arith.constant 1 : index
    %1263 = arith.index_cast %1 : i32 to index
    %c0_321 = arith.constant 0 : index
    %1264 = vector.load %arg3[%c1_320, %1263, %c0_321] : memref<14x8x128xf32, #tpu.memory_space<vmem>>, vector<1x8x128xf32>
    %1265 = vector.shape_cast %1264 : vector<1x8x128xf32> to vector<8x128xf32>
    %1266 = vector.shape_cast %1222 : vector<8x128xf32> to vector<1x8x128xf32>
    tpu.vector_store %arg3[%c1_320, %1263, %c0_321], %1266 {strides = array<i32>} : memref<14x8x128xf32, #tpu.memory_space<vmem>>, vector<1x8x128xf32>,
    %c2_322 = arith.constant 2 : index
    %1267 = arith.index_cast %1 : i32 to index
    %c0_323 = arith.constant 0 : index
    %1268 = vector.load %arg3[%c2_322, %1267, %c0_323] : memref<14x8x128xf32, #tpu.memory_space<vmem>>, vector<1x8x128xf32>
    %1269 = vector.shape_cast %1268 : vector<1x8x128xf32> to vector<8x128xf32>
    %1270 = vector.shape_cast %1225 : vector<8x128xf32> to vector<1x8x128xf32>
    tpu.vector_store %arg3[%c2_322, %1267, %c0_323], %1270 {strides = array<i32>} : memref<14x8x128xf32, #tpu.memory_space<vmem>>, vector<1x8x128xf32>,
    %c3_324 = arith.constant 3 : index
    %1271 = arith.index_cast %1 : i32 to index
    %c0_325 = arith.constant 0 : index
    %1272 = vector.load %arg3[%c3_324, %1271, %c0_325] : memref<14x8x128xf32, #tpu.memory_space<vmem>>, vector<1x8x128xf32>
    %1273 = vector.shape_cast %1272 : vector<1x8x128xf32> to vector<8x128xf32>
    %1274 = vector.shape_cast %1228 : vector<8x128xf32> to vector<1x8x128xf32>
    tpu.vector_store %arg3[%c3_324, %1271, %c0_325], %1274 {strides = array<i32>} : memref<14x8x128xf32, #tpu.memory_space<vmem>>, vector<1x8x128xf32>,
    %c4_326 = arith.constant 4 : index
    %1275 = arith.index_cast %1 : i32 to index
    %c0_327 = arith.constant 0 : index
    %1276 = vector.load %arg3[%c4_326, %1275, %c0_327] : memref<14x8x128xf32, #tpu.memory_space<vmem>>, vector<1x8x128xf32>
    %1277 = vector.shape_cast %1276 : vector<1x8x128xf32> to vector<8x128xf32>
    %1278 = vector.shape_cast %1231 : vector<8x128xf32> to vector<1x8x128xf32>
    tpu.vector_store %arg3[%c4_326, %1275, %c0_327], %1278 {strides = array<i32>} : memref<14x8x128xf32, #tpu.memory_space<vmem>>, vector<1x8x128xf32>,
    %c5_328 = arith.constant 5 : index
    %1279 = arith.index_cast %1 : i32 to index
    %c0_329 = arith.constant 0 : index
    %1280 = vector.load %arg3[%c5_328, %1279, %c0_329] : memref<14x8x128xf32, #tpu.memory_space<vmem>>, vector<1x8x128xf32>
    %1281 = vector.shape_cast %1280 : vector<1x8x128xf32> to vector<8x128xf32>
    %1282 = vector.shape_cast %1234 : vector<8x128xf32> to vector<1x8x128xf32>
    tpu.vector_store %arg3[%c5_328, %1279, %c0_329], %1282 {strides = array<i32>} : memref<14x8x128xf32, #tpu.memory_space<vmem>>, vector<1x8x128xf32>,
    %c6_330 = arith.constant 6 : index
    %1283 = arith.index_cast %1 : i32 to index
    %c0_331 = arith.constant 0 : index
    %1284 = vector.load %arg3[%c6_330, %1283, %c0_331] : memref<14x8x128xf32, #tpu.memory_space<vmem>>, vector<1x8x128xf32>
    %1285 = vector.shape_cast %1284 : vector<1x8x128xf32> to vector<8x128xf32>
    %1286 = vector.shape_cast %1237 : vector<8x128xf32> to vector<1x8x128xf32>
    tpu.vector_store %arg3[%c6_330, %1283, %c0_331], %1286 {strides = array<i32>} : memref<14x8x128xf32, #tpu.memory_space<vmem>>, vector<1x8x128xf32>,
    %c7_332 = arith.constant 7 : index
    %1287 = arith.index_cast %1 : i32 to index
    %c0_333 = arith.constant 0 : index
    %1288 = vector.load %arg3[%c7_332, %1287, %c0_333] : memref<14x8x128xf32, #tpu.memory_space<vmem>>, vector<1x8x128xf32>
    %1289 = vector.shape_cast %1288 : vector<1x8x128xf32> to vector<8x128xf32>
    %1290 = vector.shape_cast %1240 : vector<8x128xf32> to vector<1x8x128xf32>
    tpu.vector_store %arg3[%c7_332, %1287, %c0_333], %1290 {strides = array<i32>} : memref<14x8x128xf32, #tpu.memory_space<vmem>>, vector<1x8x128xf32>,
    %c8_334 = arith.constant 8 : index
    %1291 = arith.index_cast %1 : i32 to index
    %c0_335 = arith.constant 0 : index
    %1292 = vector.load %arg3[%c8_334, %1291, %c0_335] : memref<14x8x128xf32, #tpu.memory_space<vmem>>, vector<1x8x128xf32>
    %1293 = vector.shape_cast %1292 : vector<1x8x128xf32> to vector<8x128xf32>
    %1294 = vector.shape_cast %1243 : vector<8x128xf32> to vector<1x8x128xf32>
    tpu.vector_store %arg3[%c8_334, %1291, %c0_335], %1294 {strides = array<i32>} : memref<14x8x128xf32, #tpu.memory_space<vmem>>, vector<1x8x128xf32>,
    %c9_336 = arith.constant 9 : index
    %1295 = arith.index_cast %1 : i32 to index
    %c0_337 = arith.constant 0 : index
    %1296 = vector.load %arg3[%c9_336, %1295, %c0_337] : memref<14x8x128xf32, #tpu.memory_space<vmem>>, vector<1x8x128xf32>
    %1297 = vector.shape_cast %1296 : vector<1x8x128xf32> to vector<8x128xf32>
    %1298 = vector.shape_cast %1246 : vector<8x128xf32> to vector<1x8x128xf32>
    tpu.vector_store %arg3[%c9_336, %1295, %c0_337], %1298 {strides = array<i32>} : memref<14x8x128xf32, #tpu.memory_space<vmem>>, vector<1x8x128xf32>,
    %c10_338 = arith.constant 10 : index
    %1299 = arith.index_cast %1 : i32 to index
    %c0_339 = arith.constant 0 : index
    %1300 = vector.load %arg3[%c10_338, %1299, %c0_339] : memref<14x8x128xf32, #tpu.memory_space<vmem>>, vector<1x8x128xf32>
    %1301 = vector.shape_cast %1300 : vector<1x8x128xf32> to vector<8x128xf32>
    %1302 = vector.shape_cast %1249 : vector<8x128xf32> to vector<1x8x128xf32>
    tpu.vector_store %arg3[%c10_338, %1299, %c0_339], %1302 {strides = array<i32>} : memref<14x8x128xf32, #tpu.memory_space<vmem>>, vector<1x8x128xf32>,
    %c11_340 = arith.constant 11 : index
    %1303 = arith.index_cast %1 : i32 to index
    %c0_341 = arith.constant 0 : index
    %1304 = vector.load %arg3[%c11_340, %1303, %c0_341] : memref<14x8x128xf32, #tpu.memory_space<vmem>>, vector<1x8x128xf32>
    %1305 = vector.shape_cast %1304 : vector<1x8x128xf32> to vector<8x128xf32>
    %1306 = vector.shape_cast %1252 : vector<8x128xf32> to vector<1x8x128xf32>
    tpu.vector_store %arg3[%c11_340, %1303, %c0_341], %1306 {strides = array<i32>} : memref<14x8x128xf32, #tpu.memory_space<vmem>>, vector<1x8x128xf32>,
    %c12_342 = arith.constant 12 : index
    %1307 = arith.index_cast %1 : i32 to index
    %c0_343 = arith.constant 0 : index
    %1308 = vector.load %arg3[%c12_342, %1307, %c0_343] : memref<14x8x128xf32, #tpu.memory_space<vmem>>, vector<1x8x128xf32>
    %1309 = vector.shape_cast %1308 : vector<1x8x128xf32> to vector<8x128xf32>
    %1310 = vector.shape_cast %1255 : vector<8x128xf32> to vector<1x8x128xf32>
    tpu.vector_store %arg3[%c12_342, %1307, %c0_343], %1310 {strides = array<i32>} : memref<14x8x128xf32, #tpu.memory_space<vmem>>, vector<1x8x128xf32>,
    %c13_344 = arith.constant 13 : index
    %1311 = arith.index_cast %1 : i32 to index
    %c0_345 = arith.constant 0 : index
    %1312 = vector.load %arg3[%c13_344, %1311, %c0_345] : memref<14x8x128xf32, #tpu.memory_space<vmem>>, vector<1x8x128xf32>
    %1313 = vector.shape_cast %1312 : vector<1x8x128xf32> to vector<8x128xf32>
    %1314 = vector.shape_cast %1258 : vector<8x128xf32> to vector<1x8x128xf32>
    tpu.vector_store %arg3[%c13_344, %1311, %c0_345], %1314 {strides = array<i32>} : memref<14x8x128xf32, #tpu.memory_space<vmem>>, vector<1x8x128xf32>,
    %c1_i32 = arith.constant 1 : i32
    return
  }
  func.func @transform_0(%arg0: i32) -> (i32, i32, i32) {
    %c0_i32 = arith.constant 0 : i32
    %c0_i32_0 = arith.constant 0 : i32
    %c0_i32_1 = arith.constant 0 : i32
    return %c0_i32, %arg0, %c0_i32_0 : i32, i32, i32
  }
  func.func @transform_1(%arg0: i32) -> (i32, i32, i32) {
    %c0_i32 = arith.constant 0 : i32
    %c0_i32_0 = arith.constant 0 : i32
    %c0_i32_1 = arith.constant 0 : i32
    return %c0_i32, %arg0, %c0_i32_0 : i32, i32, i32
  }
  func.func @transform_2(%arg0: i32) -> (i32, i32, i32) {
    %c0_i32 = arith.constant 0 : i32
    %c0_i32_0 = arith.constant 0 : i32
    %c0_i32_1 = arith.constant 0 : i32
    return %c0_i32, %arg0, %c0_i32_0 : i32, i32, i32
  }
}

</mosaic_0001>

<llo_original>
// kernel: flying_cartpole_step.1
$region0: #{flying_cartpole_step.1}
  #allocation0 [shape = 'u32[]', space=smem, size = 0x4, offset = 0x4, fixed_abs, tag = 'smem constant byte address 0x4 - core index']
  #allocation1 [shape = 'u32[144,128]{1,0:T(1,128)}', space=vmem, size = 0x12000, scoped, tag = 'internal scratch']
  %s0 = inlined_call_operand.vmem [shape: f32[14,8,128], index: 0, kind: input, shape index: {}, may-alias: {0,2}]
  %s1 = inlined_call_operand.vmem [shape: f32[4,8,128], index: 1, kind: input, shape index: {}]
  %s2 = inlined_call_operand.vmem [shape: f32[14,8,128], index: 2, kind: output, shape index: {}, may-alias: {0,2}]
  %s3 = sld [smem:[#allocation0]]
  $region18: #{flying_cartpole_step.1} parent=0
    _
  %s5 = ssub.s32 1, %s3
  %s6 = scalar_select 0, %s5, %s3
  // Predicated region
  $region2: #{flying_cartpole_step.1} parent=0 // pred_check
    _
  $region3: #{flying_cartpole_step.1} parent=0 // pred_check_branch
    %8 = sbr.rel (0) target = $region5
  $region4: #{flying_cartpole_step.1} parent=0 // pred_region
    _
  $region5: #{flying_cartpole_step.1} parent=0 // pred_fallthru
    _
  // Predicated region
  $region6: #{flying_cartpole_step.1} parent=0 // pred_check
    _
  $region7: #{flying_cartpole_step.1} parent=0 // pred_check_branch
    %10 = sbr.rel (0) target = $region9
  $region8: #{flying_cartpole_step.1} parent=0 // pred_region
    _
  $region9: #{flying_cartpole_step.1} parent=0 // pred_fallthru
    _
  %v11 = vld [vmem:[%s0] sm:$0xff]
  %s12 = sadd.s32 0, 8
  %s13 = scalar_lea.vmem %s0, %s12
  %v14 = vld [vmem:[%s13] sm:$0xff]
  %s15 = sadd.s32 0, 16
  %s16 = scalar_lea.vmem %s0, %s15
  %v17 = vld [vmem:[%s16] sm:$0xff]
  %s18 = sadd.s32 0, 24
  %s19 = scalar_lea.vmem %s0, %s18
  %v20 = vld [vmem:[%s19] sm:$0xff]
  %s21 = sadd.s32 0, 32
  %s22 = scalar_lea.vmem %s0, %s21
  %v23 = vld [vmem:[%s22] sm:$0xff]
  %s24 = sadd.s32 0, 40
  %s25 = scalar_lea.vmem %s0, %s24
  %v26 = vld [vmem:[%s25] sm:$0xff]
  %s27 = sadd.s32 0, 48
  %s28 = scalar_lea.vmem %s0, %s27
  %v29 = vld [vmem:[%s28] sm:$0xff]
  %s30 = sadd.s32 0, 56
  %s31 = scalar_lea.vmem %s0, %s30
  %v32 = vld [vmem:[%s31] sm:$0xff]
  %s33 = sadd.s32 0, 64
  %s34 = scalar_lea.vmem %s0, %s33
  %v35 = vld [vmem:[%s34] sm:$0xff]
  %s36 = sadd.s32 0, 72
  %s37 = scalar_lea.vmem %s0, %s36
  %v38 = vld [vmem:[%s37] sm:$0xff]
  %s39 = sadd.s32 0, 80
  %s40 = scalar_lea.vmem %s0, %s39
  %v41 = vld [vmem:[%s40] sm:$0xff]
  %s42 = sadd.s32 0, 88
  %s43 = scalar_lea.vmem %s0, %s42
  %v44 = vld [vmem:[%s43] sm:$0xff]
  %s45 = sadd.s32 0, 96
  %s46 = scalar_lea.vmem %s0, %s45
  %v47 = vld [vmem:[%s46] sm:$0xff]
  %s48 = sadd.s32 0, 104
  %s49 = scalar_lea.vmem %s0, %s48
  %v50 = vld [vmem:[%s49] sm:$0xff]
  %v51 = vld [vmem:[%s1] sm:$0xff]
  %s52 = scalar_lea.vmem %s1, %s12
  %v53 = vld [vmem:[%s52] sm:$0xff]
  %s54 = scalar_lea.vmem %s1, %s15
  %v55 = vld [vmem:[%s54] sm:$0xff]
  %s56 = scalar_lea.vmem %s1, %s18
  %v57 = vld [vmem:[%s56] sm:$0xff]
  %v58 = vadd.f32 %v51, 21.582
  %v59 = vmul.f32 %v58, 10.0
  %v60 = vadd.f32 %v53, 21.582
  %v61 = vmul.f32 %v60, 10.0
  %v62 = vadd.f32 %v55, 21.582
  %v63 = vmul.f32 %v62, 10.0
  %v64 = vadd.f32 %v57, 21.582
  %v65 = vmul.f32 %v64, 10.0
  %v66 = vadd.f32 %v59, %v61
  %v67 = vadd.f32 %v66, %v63
  %v68 = vadd.f32 %v67, %v65
  %v69 = vmul.f32 %v68, 0.025
  %v70 = vmul.f32 %v59, 0.025
  %v71 = vmul.f32 %v61, 0.025
  %v72 = vmul.f32 %v63, 0.025
  %v73 = vmul.f32 %v65, 0.025
  %v74 = vmul.f32 %v70, 0.70710677
  %v75 = vmul.f32 %v71, -0.70710677
  %v76 = vadd.f32 %v74, %v75
  %v77 = vmul.f32 %v72, -0.70710677
  %v78 = vadd.f32 %v76, %v77
  %v79 = vmul.f32 %v73, 0.70710677
  %v80 = vadd.f32 %v78, %v79
  %v81 = vmul.f32 %v80, 0.28
  %v82 = vmul.f32 %v71, 0.70710677
  %v83 = vadd.f32 %v74, %v82
  %v84 = vadd.f32 %v83, %v77
  %v85 = vmul.f32 %v73, -0.70710677
  %v86 = vadd.f32 %v84, %v85
  %v87 = vmul.f32 %v86, -0.28
  %v88 = vsub.f32 %v59, %v61
  %v89 = vadd.f32 %v88, %v63
  %v90 = vsub.f32 %v89, %v65
  %v91 = vmul.f32 %v90, 0.00029958
  %v92 = vmul.f32 %v20, %v20
  %v93 = vmul.f32 %v23, %v23
  %v94 = vadd.f32 %v92, %v93
  %v95 = vmul.f32 %v26, %v26
  %v96 = vadd.f32 %v94, %v95
  %v97 = vadd.f32 %v96, 1.0
  %v98 = vrcp.pop %v97
  %v99 = vmul.f32 %v97, %v98
  %v100 = vsub.f32 2.0, %v99
  %v101 = vmul.f32 %v98, %v100
  %v102 = vsub.f32 1.0, %v96
  %v103 = vmul.f32 %v102, %v101
  %v104 = vmul.f32 %v20, 2.0
  %v105 = vmul.f32 %v104, %v101
  %v106 = vmul.f32 %v23, 2.0
  %v107 = vmul.f32 %v106, %v101
  %v108 = vmul.f32 %v26, 2.0
  %v109 = vmul.f32 %v108, %v101
  %v110 = vmul.f32 %v107, -2.0
  %v111 = vmul.f32 %v110, -21.582
  %v112 = vmul.f32 %v105, 2.0
  %v113 = vmul.f32 %v112, -21.582
  %v114 = vmul.f32 %v109, %v113
  %v115 = vsub.f32 0.0, %v109
  %v116 = vmul.f32 %v115, %v111
  %v117 = vsub.f32 0.0, %v105
  %v118 = vmul.f32 %v117, %v113
  %v119 = vmul.f32 %v107, %v111
  %v120 = vadd.f32 %v118, %v119
  %v121 = vmul.f32 %v103, %v111
  %v122 = vadd.f32 %v121, %v114
  %v123 = vmul.f32 %v103, %v113
  %v124 = vadd.f32 %v123, %v116
  %v125 = vadd.f32 %v120, -21.582
  %v126 = vadd.f32 %v69, %v125
  %v127 = vmul.f32 %v20, %v41
  %v128 = vmul.f32 %v23, %v44
  %v129 = vadd.f32 %v127, %v128
  %v130 = vmul.f32 %v26, %v47
  %v131 = vadd.f32 %v129, %v130
  %v132 = vmul.f32 %v23, %v47
  %v133 = vmul.f32 %v26, %v44
  %v134 = vsub.f32 %v132, %v133
  %v135 = vmul.f32 %v26, %v41
  %v136 = vmul.f32 %v20, %v47
  %v137 = vsub.f32 %v135, %v136
  %v138 = vmul.f32 %v20, %v44
  %v139 = vmul.f32 %v23, %v41
  %v140 = vsub.f32 %v138, %v139
  %v141 = vmul.f32 %v102, %v41
  %v142 = vmul.f32 %v134, 2.0
  %v143 = vadd.f32 %v141, %v142
  %v144 = vmul.f32 %v131, 2.0
  %v145 = vmul.f32 %v144, %v20
  %v146 = vadd.f32 %v143, %v145
  %v147 = vmul.f32 %v146, 0.25
  %v148 = vmul.f32 %v102, %v44
  %v149 = vmul.f32 %v137, 2.0
  %v150 = vadd.f32 %v148, %v149
  %v151 = vmul.f32 %v144, %v23
  %v152 = vadd.f32 %v150, %v151
  %v153 = vmul.f32 %v152, 0.25
  %v154 = vmul.f32 %v102, %v47
  %v155 = vmul.f32 %v140, 2.0
  %v156 = vadd.f32 %v154, %v155
  %v157 = vmul.f32 %v144, %v26
  %v158 = vadd.f32 %v156, %v157
  %v159 = vmul.f32 %v158, 0.25
  %v160 = vmul.f32 %v107, %v38
  %v161 = vmul.f32 %v109, %v35
  %v162 = vsub.f32 %v160, %v161
  %v163 = vmul.f32 %v109, %v32
  %v164 = vmul.f32 %v105, %v38
  %v165 = vsub.f32 %v163, %v164
  %v166 = vmul.f32 %v105, %v35
  %v167 = vmul.f32 %v107, %v32
  %v168 = vsub.f32 %v166, %v167
  %v169 = vmul.f32 %v162, 2.0
  %v170 = vmul.f32 %v165, 2.0
  %v171 = vmul.f32 %v168, 2.0
  %v172 = vmul.f32 %v107, %v171
  %v173 = vmul.f32 %v109, %v170
  %v174 = vsub.f32 %v172, %v173
  %v175 = vmul.f32 %v109, %v169
  %v176 = vmul.f32 %v105, %v171
  %v177 = vsub.f32 %v175, %v176
  %v178 = vmul.f32 %v105, %v170
  %v179 = vmul.f32 %v107, %v169
  %v180 = vsub.f32 %v178, %v179
  %v181 = vmul.f32 %v103, %v169
  %v182 = vadd.f32 %v32, %v181
  %v183 = vadd.f32 %v182, %v174
  %v184 = vmul.f32 %v103, %v170
  %v185 = vadd.f32 %v35, %v184
  %v186 = vadd.f32 %v185, %v177
  %v187 = vmul.f32 %v103, %v171
  %v188 = vadd.f32 %v38, %v187
  %v189 = vadd.f32 %v188, %v180
  %v190 = vmul.f32 %v44, %v38
  %v191 = vmul.f32 %v47, %v35
  %v192 = vsub.f32 %v190, %v191
  %v193 = vmul.f32 %v47, %v32
  %v194 = vmul.f32 %v41, %v38
  %v195 = vsub.f32 %v193, %v194
  %v196 = vmul.f32 %v41, %v35
  %v197 = vmul.f32 %v44, %v32
  %v198 = vsub.f32 %v196, %v197
  %v199 = vmul.f32 %v122, 0.45454547
  %v200 = vsub.f32 %v199, %v192
  %v201 = vmul.f32 %v124, 0.45454547
  %v202 = vsub.f32 %v201, %v195
  %v203 = vmul.f32 %v126, 0.45454547
  %v204 = vsub.f32 %v203, %v198
  %v205 = vmul.f32 %v41, 0.01566089
  %v206 = vmul.f32 %v44, 3.18037e-06
  %v207 = vadd.f32 %v205, %v206
  %v208 = vmul.f32 %v41, 3.18037e-06
  %v209 = vmul.f32 %v44, 0.01562078
  %v210 = vadd.f32 %v208, %v209
  %v211 = vmul.f32 %v47, 0.02226868
  %v212 = vmul.f32 %v44, %v211
  %v213 = vmul.f32 %v47, %v210
  %v214 = vsub.f32 %v212, %v213
  %v215 = vmul.f32 %v47, %v207
  %v216 = vmul.f32 %v41, %v211
  %v217 = vsub.f32 %v215, %v216
  %v218 = vmul.f32 %v41, %v210
  %v219 = vmul.f32 %v44, %v207
  %v220 = vsub.f32 %v218, %v219
  %v221 = vsub.f32 %v81, %v214
  %v222 = vsub.f32 %v87, %v217
  %v223 = vsub.f32 %v91, %v220
  %v224 = vmul.f32 %v221, 63.853333
  %v225 = vmul.f32 %v222, -0.013000454
  %v226 = vadd.f32 %v224, %v225
  %v227 = vmul.f32 %v221, -0.013000454
  %v228 = vmul.f32 %v222, 64.017296
  %v229 = vadd.f32 %v227, %v228
  %v230 = vmul.f32 %v223, 44.90612
  %v231 = vmul.f32 %v107, %v204
  %v232 = vmul.f32 %v109, %v202
  %v233 = vsub.f32 %v231, %v232
  %v234 = vmul.f32 %v233, 2.0
  %v235 = vmul.f32 %v109, %v200
  %v236 = vmul.f32 %v105, %v204
  %v237 = vsub.f32 %v235, %v236
  %v238 = vmul.f32 %v237, 2.0
  %v239 = vmul.f32 %v105, %v202
  %v240 = vmul.f32 %v107, %v200
  %v241 = vsub.f32 %v239, %v240
  %v242 = vmul.f32 %v241, 2.0
  %v243 = vmul.f32 %v107, %v242
  %v244 = vmul.f32 %v109, %v238
  %v245 = vsub.f32 %v243, %v244
  %v246 = vmul.f32 %v103, %v234
  %v247 = vadd.f32 %v200, %v246
  %v248 = vadd.f32 %v247, %v245
  %v249 = vand.u32 2147483647, %v29
  %vm250 = vcmp.le.f32.partialorder %v249, 0.7853982
  %vm251 = vcmp.lt.s32.totalorder %v29, 0
  %v252 = vand.u32 %v29, 2139095040
  %v253 = vshrl.u32 %v252, 23
  %v254 = vsub.s32 %v253, 127
  %v255 = vand.u32 2147483647, %v29
  %v256 = vand.u32 %v255, 8388607
  %v257 = vor.u32 %v256, 8388608
  %v258 = vsub.s32 0, %v257
  %v259 = vadd.s32 %v254, 1
  %vm260 = vcmp.gt.s32.totalorder %v259, 0
  %v261 = vsel %vm260, %v259, 0
  %v262 = vshrl.u32 %v261, 5
  %v263 = vand.u32 %v261, 31
  %v264 = vsub.s32 32, %v263
  %v265 = vshrl.u32 683565275, %v264
  %v266 = vshll.u32 683565275, %v263
  %v267 = vshrl.u32 2475754826, %v264
  %v268 = vor.u32 %v266, %v267
  %v269 = vshll.u32 2475754826, %v263
  %v270 = vshrl.u32 2131351028, %v264
  %v271 = vor.u32 %v269, %v270
  %v272 = vshll.u32 2131351028, %v263
  %v273 = vshrl.u32 2102212464, %v264
  %v274 = vor.u32 %v272, %v273
  %v275 = vshll.u32 2102212464, %v263
  %v276 = vshrl.u32 920167782, %v264
  %v277 = vor.u32 %v275, %v276
  %v278 = vshll.u32 920167782, %v263
  %v279 = vshrl.u32 1326507024, %v264
  %v280 = vor.u32 %v278, %v279
  %vm281 = vcmp.lt.s32.totalorder %v262, 1
  %vm282 = vcmp.lt.s32.totalorder %v262, 2
  %vm283 = vcmp.lt.s32.totalorder %v262, 3
  %vm284 = vcmp.lt.s32.totalorder %v262, 4
  %v285 = vsel %vm281, %v265, %v268
  %v286 = vsel %vm284, %v274, 2102212464
  %v287 = vsel %vm283, %v271, %v286
  %v288 = vsel %vm282, %v285, %v287
  %v289 = vsel %vm281, %v268, %v271
  %v290 = vsel %vm284, %v277, 920167782
  %v291 = vsel %vm283, %v274, %v290
  %v292 = vsel %vm282, %v289, %v291
  %v293 = vsel %vm281, %v271, %v274
  %v294 = vsel %vm284, %v280, 1326507024
  %v295 = vsel %vm283, %v277, %v294
  %v296 = vsel %vm282, %v293, %v295
  %v297 = vshll.u32 %v257, 8
  %v298 = vmul.u32.u64.compose %v297, %v296
  %v299 = vextract.low.u32 %v298
  %v300 = vextract.high.u32 %v298
  %v301 = vmul.u32.u64.compose %v297, %v292
  %v302 = vextract.low.u32 %v301
  %v303 = vextract.high.u32 %v301
  %v304 = vmul.u32 %v297, %v288
  %v305 = vadd.s32 %v300, %v302
  %vm306 = vc.u32 %v300, %v302
  %v307 = vadd.s32 %v303, 1
  %v308 = vsel %vm306, %v307, %v303
  %v309 = vadd.s32 %v304, %v308
  %v310 = vadd.s32 %v309, 536870912
  %v311 = vshrl.u32 %v310, 30
  %v312 = vshll.u32 %v311, 30
  %v313 = vsub.s32 %v309, %v312
  %vm314 = vcmp.lt.s32.totalorder %v313, 0
  %v315 = vsub.s32 0, %v313
  %v316 = vsel %vm314, %v315, %v313
  %v317 = vclz %v316
  %v318 = vsub.s32 %v317, 2
  %vm319 = vcmp.gt.s32.totalorder 0, %v318
  %v320 = vsel %vm319, 0, %v318
  %v321 = vsub.s32 32, %v320
  %v322 = vshll.u32 %v313, %v320
  %v323 = vshrl.u32 %v305, %v321
  %v324 = vor.u32 %v322, %v323
  %v325 = vsub.s32 4294967266, %v320
  %v326 = vadd.s32 %v325, 127
  %v327 = vshll.u32 %v326, 23
  %v328 = vor.u32 4788187, %v327
  %v329 = vand.u32 2147483647, %v328
  %v331 = vcvt.s32.f32 %v324
  %v332 = vmul.f32 %v331, %v329
  %v333 = vxor.u32 %v332, 2147483648
  %v334 = vsel %vm251, %v333, %v332
  %v335 = vsub.s32 4, %v311
  %v336 = vsel %vm251, %v335, %v311
  %v337 = vsel %vm250, %v29, %v334
  %v338 = vsel %vm250, 0, %v336
  %v339 = vcosq.f32.pop %v337
  %v340 = vsinq.f32.pop %v337
  %vm341 = vweird.f32 %v29
  %v342 = vadd.s32 %v338, 3
  %v343 = vand.u32 %v342, 3
  %vm344 = vcmp.lt.s32.totalorder %v343, 2
  %vm345 = vcmp.eq.s32.totalorder %v343, 0
  %v346 = vxor.u32 %v340, 2147483648
  %v347 = vsel %vm345, %v339, %v346
  %vm348 = vcmp.eq.s32.totalorder %v343, 2
  %v349 = vxor.u32 %v339, 2147483648
  %v350 = vsel %vm348, %v349, %v340
  %v351 = vsel %vm344, %v347, %v350
  %v352 = vsel %vm341, nan, %v351
  %v353 = vmul.f32 %v352, -9.81
  %v354 = vand.u32 2147483647, %v29
  %vm355 = vcmp.le.f32.partialorder %v354, 0.7853982
  %vm356 = vcmp.lt.s32.totalorder %v29, 0
  %v357 = vand.u32 %v29, 2139095040
  %v358 = vshrl.u32 %v357, 23
  %v359 = vsub.s32 %v358, 127
  %v360 = vand.u32 2147483647, %v29
  %v361 = vand.u32 %v360, 8388607
  %v362 = vor.u32 %v361, 8388608
  %v363 = vsub.s32 0, %v362
  %v364 = vadd.s32 %v359, 1
  %vm365 = vcmp.gt.s32.totalorder %v364, 0
  %v366 = vsel %vm365, %v364, 0
  %v367 = vshrl.u32 %v366, 5
  %v368 = vand.u32 %v366, 31
  %v369 = vsub.s32 32, %v368
  %v370 = vshrl.u32 683565275, %v369
  %v371 = vshll.u32 683565275, %v368
  %v372 = vshrl.u32 2475754826, %v369
  %v373 = vor.u32 %v371, %v372
  %v374 = vshll.u32 2475754826, %v368
  %v375 = vshrl.u32 2131351028, %v369
  %v376 = vor.u32 %v374, %v375
  %v377 = vshll.u32 2131351028, %v368
  %v378 = vshrl.u32 2102212464, %v369
  %v379 = vor.u32 %v377, %v378
  %v380 = vshll.u32 2102212464, %v368
  %v381 = vshrl.u32 920167782, %v369
  %v382 = vor.u32 %v380, %v381
  %v383 = vshll.u32 920167782, %v368
  %v384 = vshrl.u32 1326507024, %v369
  %v385 = vor.u32 %v383, %v384
  %vm386 = vcmp.lt.s32.totalorder %v367, 1
  %vm387 = vcmp.lt.s32.totalorder %v367, 2
  %vm388 = vcmp.lt.s32.totalorder %v367, 3
  %vm389 = vcmp.lt.s32.totalorder %v367, 4
  %v390 = vsel %vm386, %v370, %v373
  %v391 = vsel %vm389, %v379, 2102212464
  %v392 = vsel %vm388, %v376, %v391
  %v393 = vsel %vm387, %v390, %v392
  %v394 = vsel %vm386, %v373, %v376
  %v395 = vsel %vm389, %v382, 920167782
  %v396 = vsel %vm388, %v379, %v395
  %v397 = vsel %vm387, %v394, %v396
  %v398 = vsel %vm386, %v376, %v379
  %v399 = vsel %vm389, %v385, 1326507024
  %v400 = vsel %vm388, %v382, %v399
  %v401 = vsel %vm387, %v398, %v400
  %v402 = vshll.u32 %v362, 8
  %v403 = vmul.u32.u64.compose %v402, %v401
  %v404 = vextract.low.u32 %v403
  %v405 = vextract.high.u32 %v403
  %v406 = vmul.u32.u64.compose %v402, %v397
  %v407 = vextract.low.u32 %v406
  %v408 = vextract.high.u32 %v406
  %v409 = vmul.u32 %v402, %v393
  %v410 = vadd.s32 %v405, %v407
  %vm411 = vc.u32 %v405, %v407
  %v412 = vadd.s32 %v408, 1
  %v413 = vsel %vm411, %v412, %v408
  %v414 = vadd.s32 %v409, %v413
  %v415 = vadd.s32 %v414, 536870912
  %v416 = vshrl.u32 %v415, 30
  %v417 = vshll.u32 %v416, 30
  %v418 = vsub.s32 %v414, %v417
  %vm419 = vcmp.lt.s32.totalorder %v418, 0
  %v420 = vsub.s32 0, %v418
  %v421 = vsel %vm419, %v420, %v418
  %v422 = vclz %v421
  %v423 = vsub.s32 %v422, 2
  %vm424 = vcmp.gt.s32.totalorder 0, %v423
  %v425 = vsel %vm424, 0, %v423
  %v426 = vsub.s32 32, %v425
  %v427 = vshll.u32 %v418, %v425
  %v428 = vshrl.u32 %v410, %v426
  %v429 = vor.u32 %v427, %v428
  %v430 = vsub.s32 4294967266, %v425
  %v431 = vadd.s32 %v430, 127
  %v432 = vshll.u32 %v431, 23
  %v433 = vor.u32 4788187, %v432
  %v434 = vand.u32 2147483647, %v433
  %v436 = vcvt.s32.f32 %v429
  %v437 = vmul.f32 %v436, %v434
  %v438 = vxor.u32 %v437, 2147483648
  %v439 = vsel %vm356, %v438, %v437
  %v440 = vsub.s32 4, %v416
  %v441 = vsel %vm356, %v440, %v416
  %v442 = vsel %vm355, %v29, %v439
  %v443 = vsel %vm355, 0, %v441
  %v444 = vcosq.f32.pop %v442
  %v445 = vsinq.f32.pop %v442
  %vm446 = vweird.f32 %v29
  %v447 = vand.u32 %v443, 3
  %vm448 = vcmp.lt.s32.totalorder %v447, 2
  %vm449 = vcmp.eq.s32.totalorder %v447, 0
  %v450 = vxor.u32 %v445, 2147483648
  %v451 = vsel %vm449, %v444, %v450
  %vm452 = vcmp.eq.s32.totalorder %v447, 2
  %v453 = vxor.u32 %v444, 2147483648
  %v454 = vsel %vm452, %v453, %v445
  %v455 = vsel %vm448, %v451, %v454
  %v456 = vsel %vm446, nan, %v455
  %v457 = vmul.f32 %v248, %v456
  %v458 = vadd.f32 %v353, %v457
  %v459 = vmul.f32 %v458, 2.0
  %v460 = vmul.f32 %v183, 0.008333334
  %v461 = vadd.f32 %v11, %v460
  %v462 = vmul.f32 %v186, 0.008333334
  %v463 = vadd.f32 %v14, %v462
  %v464 = vmul.f32 %v189, 0.008333334
  %v465 = vadd.f32 %v17, %v464
  %v466 = vmul.f32 %v147, 0.008333334
  %v467 = vadd.f32 %v20, %v466
  %v468 = vmul.f32 %v153, 0.008333334
  %v469 = vadd.f32 %v23, %v468
  %v470 = vmul.f32 %v159, 0.008333334
  %v471 = vadd.f32 %v26, %v470
  %v472 = vmul.f32 %v50, 0.008333334
  %v473 = vadd.f32 %v29, %v472
  %v474 = vmul.f32 %v200, 0.008333334
  %v475 = vadd.f32 %v32, %v474
  %v476 = vmul.f32 %v202, 0.008333334
  %v477 = vadd.f32 %v35, %v476
  %v478 = vmul.f32 %v204, 0.008333334
  %v479 = vadd.f32 %v38, %v478
  %v480 = vmul.f32 %v226, 0.008333334
  %v481 = vadd.f32 %v41, %v480
  %v482 = vmul.f32 %v229, 0.008333334
  %v483 = vadd.f32 %v44, %v482
  %v484 = vmul.f32 %v230, 0.008333334
  %v485 = vadd.f32 %v47, %v484
  %v486 = vmul.f32 %v459, 0.008333334
  %v487 = vadd.f32 %v50, %v486
  %v488 = vmul.f32 %v147, 0.025
  %v489 = vadd.f32 %v20, %v488
  %v490 = vmul.f32 %v153, 0.025
  %v491 = vadd.f32 %v23, %v490
  %v492 = vmul.f32 %v159, 0.025
  %v493 = vadd.f32 %v26, %v492
  %v494 = vmul.f32 %v50, 0.025
  %v495 = vadd.f32 %v29, %v494
  %v496 = vmul.f32 %v200, 0.025
  %v497 = vadd.f32 %v32, %v496
  %v498 = vmul.f32 %v202, 0.025
  %v499 = vadd.f32 %v35, %v498
  %v500 = vmul.f32 %v204, 0.025
  %v501 = vadd.f32 %v38, %v500
  %v502 = vmul.f32 %v226, 0.025
  %v503 = vadd.f32 %v41, %v502
  %v504 = vmul.f32 %v229, 0.025
  %v505 = vadd.f32 %v44, %v504
  %v506 = vmul.f32 %v230, 0.025
  %v507 = vadd.f32 %v47, %v506
  %v508 = vmul.f32 %v459, 0.025
  %v509 = vadd.f32 %v50, %v508
  %v510 = vmul.f32 %v489, %v489
  %v511 = vmul.f32 %v491, %v491
  %v512 = vadd.f32 %v510, %v511
  %v513 = vmul.f32 %v493, %v493
  %v514 = vadd.f32 %v512, %v513
  %v515 = vadd.f32 %v514, 1.0
  %v516 = vrcp.pop %v515
  %v517 = vmul.f32 %v515, %v516
  %v518 = vsub.f32 2.0, %v517
  %v519 = vmul.f32 %v516, %v518
  %v520 = vsub.f32 1.0, %v514
  %v521 = vmul.f32 %v520, %v519
  %v522 = vmul.f32 %v489, 2.0
  %v523 = vmul.f32 %v522, %v519
  %v524 = vmul.f32 %v491, 2.0
  %v525 = vmul.f32 %v524, %v519
  %v526 = vmul.f32 %v493, 2.0
  %v527 = vmul.f32 %v526, %v519
  %v528 = vmul.f32 %v525, -2.0
  %v529 = vmul.f32 %v528, -21.582
  %v530 = vmul.f32 %v523, 2.0
  %v531 = vmul.f32 %v530, -21.582
  %v532 = vmul.f32 %v527, %v531
  %v533 = vsub.f32 0.0, %v527
  %v534 = vmul.f32 %v533, %v529
  %v535 = vsub.f32 0.0, %v523
  %v536 = vmul.f32 %v535, %v531
  %v537 = vmul.f32 %v525, %v529
  %v538 = vadd.f32 %v536, %v537
  %v539 = vmul.f32 %v521, %v529
  %v540 = vadd.f32 %v539, %v532
  %v541 = vmul.f32 %v521, %v531
  %v542 = vadd.f32 %v541, %v534
  %v543 = vadd.f32 %v538, -21.582
  %v544 = vadd.f32 %v69, %v543
  %v545 = vmul.f32 %v489, %v503
  %v546 = vmul.f32 %v491, %v505
  %v547 = vadd.f32 %v545, %v546
  %v548 = vmul.f32 %v493, %v507
  %v549 = vadd.f32 %v547, %v548
  %v550 = vmul.f32 %v491, %v507
  %v551 = vmul.f32 %v493, %v505
  %v552 = vsub.f32 %v550, %v551
  %v553 = vmul.f32 %v493, %v503
  %v554 = vmul.f32 %v489, %v507
  %v555 = vsub.f32 %v553, %v554
  %v556 = vmul.f32 %v489, %v505
  %v557 = vmul.f32 %v491, %v503
  %v558 = vsub.f32 %v556, %v557
  %v559 = vmul.f32 %v520, %v503
  %v560 = vmul.f32 %v552, 2.0
  %v561 = vadd.f32 %v559, %v560
  %v562 = vmul.f32 %v549, 2.0
  %v563 = vmul.f32 %v562, %v489
  %v564 = vadd.f32 %v561, %v563
  %v565 = vmul.f32 %v564, 0.25
  %v566 = vmul.f32 %v520, %v505
  %v567 = vmul.f32 %v555, 2.0
  %v568 = vadd.f32 %v566, %v567
  %v569 = vmul.f32 %v562, %v491
  %v570 = vadd.f32 %v568, %v569
  %v571 = vmul.f32 %v570, 0.25
  %v572 = vmul.f32 %v520, %v507
  %v573 = vmul.f32 %v558, 2.0
  %v574 = vadd.f32 %v572, %v573
  %v575 = vmul.f32 %v562, %v493
  %v576 = vadd.f32 %v574, %v575
  %v577 = vmul.f32 %v576, 0.25
  %v578 = vmul.f32 %v525, %v501
  %v579 = vmul.f32 %v527, %v499
  %v580 = vsub.f32 %v578, %v579
  %v581 = vmul.f32 %v527, %v497
  %v582 = vmul.f32 %v523, %v501
  %v583 = vsub.f32 %v581, %v582
  %v584 = vmul.f32 %v523, %v499
  %v585 = vmul.f32 %v525, %v497
  %v586 = vsub.f32 %v584, %v585
  %v587 = vmul.f32 %v580, 2.0
  %v588 = vmul.f32 %v583, 2.0
  %v589 = vmul.f32 %v586, 2.0
  %v590 = vmul.f32 %v525, %v589
  %v591 = vmul.f32 %v527, %v588
  %v592 = vsub.f32 %v590, %v591
  %v593 = vmul.f32 %v527, %v587
  %v594 = vmul.f32 %v523, %v589
  %v595 = vsub.f32 %v593, %v594
  %v596 = vmul.f32 %v523, %v588
  %v597 = vmul.f32 %v525, %v587
  %v598 = vsub.f32 %v596, %v597
  %v599 = vmul.f32 %v521, %v587
  %v600 = vadd.f32 %v497, %v599
  %v601 = vadd.f32 %v600, %v592
  %v602 = vmul.f32 %v521, %v588
  %v603 = vadd.f32 %v499, %v602
  %v604 = vadd.f32 %v603, %v595
  %v605 = vmul.f32 %v521, %v589
  %v606 = vadd.f32 %v501, %v605
  %v607 = vadd.f32 %v606, %v598
  %v608 = vmul.f32 %v505, %v501
  %v609 = vmul.f32 %v507, %v499
  %v610 = vsub.f32 %v608, %v609
  %v611 = vmul.f32 %v507, %v497
  %v612 = vmul.f32 %v503, %v501
  %v613 = vsub.f32 %v611, %v612
  %v614 = vmul.f32 %v503, %v499
  %v615 = vmul.f32 %v505, %v497
  %v616 = vsub.f32 %v614, %v615
  %v617 = vmul.f32 %v540, 0.45454547
  %v618 = vsub.f32 %v617, %v610
  %v619 = vmul.f32 %v542, 0.45454547
  %v620 = vsub.f32 %v619, %v613
  %v621 = vmul.f32 %v544, 0.45454547
  %v622 = vsub.f32 %v621, %v616
  %v623 = vmul.f32 %v503, 0.01566089
  %v624 = vmul.f32 %v505, 3.18037e-06
  %v625 = vadd.f32 %v623, %v624
  %v626 = vmul.f32 %v503, 3.18037e-06
  %v627 = vmul.f32 %v505, 0.01562078
  %v628 = vadd.f32 %v626, %v627
  %v629 = vmul.f32 %v507, 0.02226868
  %v630 = vmul.f32 %v505, %v629
  %v631 = vmul.f32 %v507, %v628
  %v632 = vsub.f32 %v630, %v631
  %v633 = vmul.f32 %v507, %v625
  %v634 = vmul.f32 %v503, %v629
  %v635 = vsub.f32 %v633, %v634
  %v636 = vmul.f32 %v503, %v628
  %v637 = vmul.f32 %v505, %v625
  %v638 = vsub.f32 %v636, %v637
  %v639 = vsub.f32 %v81, %v632
  %v640 = vsub.f32 %v87, %v635
  %v641 = vsub.f32 %v91, %v638
  %v642 = vmul.f32 %v639, 63.853333
  %v643 = vmul.f32 %v640, -0.013000454
  %v644 = vadd.f32 %v642, %v643
  %v645 = vmul.f32 %v639, -0.013000454
  %v646 = vmul.f32 %v640, 64.017296
  %v647 = vadd.f32 %v645, %v646
  %v648 = vmul.f32 %v641, 44.90612
  %v649 = vmul.f32 %v525, %v622
  %v650 = vmul.f32 %v527, %v620
  %v651 = vsub.f32 %v649, %v650
  %v652 = vmul.f32 %v651, 2.0
  %v653 = vmul.f32 %v527, %v618
  %v654 = vmul.f32 %v523, %v622
  %v655 = vsub.f32 %v653, %v654
  %v656 = vmul.f32 %v655, 2.0
  %v657 = vmul.f32 %v523, %v620
  %v658 = vmul.f32 %v525, %v618
  %v659 = vsub.f32 %v657, %v658
  %v660 = vmul.f32 %v659, 2.0
  %v661 = vmul.f32 %v525, %v660
  %v662 = vmul.f32 %v527, %v656
  %v663 = vsub.f32 %v661, %v662
  %v664 = vmul.f32 %v521, %v652
  %v665 = vadd.f32 %v618, %v664
  %v666 = vadd.f32 %v665, %v663
  %v667 = vand.u32 2147483647, %v495
  %vm668 = vcmp.le.f32.partialorder %v667, 0.7853982
  %vm669 = vcmp.lt.s32.totalorder %v495, 0
  %v670 = vand.u32 %v495, 2139095040
  %v671 = vshrl.u32 %v670, 23
  %v672 = vsub.s32 %v671, 127
  %v673 = vand.u32 2147483647, %v495
  %v674 = vand.u32 %v673, 8388607
  %v675 = vor.u32 %v674, 8388608
  %v676 = vsub.s32 0, %v675
  %v677 = vadd.s32 %v672, 1
  %vm678 = vcmp.gt.s32.totalorder %v677, 0
  %v679 = vsel %vm678, %v677, 0
  %v680 = vshrl.u32 %v679, 5
  %v681 = vand.u32 %v679, 31
  %v682 = vsub.s32 32, %v681
  %v683 = vshrl.u32 683565275, %v682
  %v684 = vshll.u32 683565275, %v681
  %v685 = vshrl.u32 2475754826, %v682
  %v686 = vor.u32 %v684, %v685
  %v687 = vshll.u32 2475754826, %v681
  %v688 = vshrl.u32 2131351028, %v682
  %v689 = vor.u32 %v687, %v688
  %v690 = vshll.u32 2131351028, %v681
  %v691 = vshrl.u32 2102212464, %v682
  %v692 = vor.u32 %v690, %v691
  %v693 = vshll.u32 2102212464, %v681
  %v694 = vshrl.u32 920167782, %v682
  %v695 = vor.u32 %v693, %v694
  %v696 = vshll.u32 920167782, %v681
  %v697 = vshrl.u32 1326507024, %v682
  %v698 = vor.u32 %v696, %v697
  %vm699 = vcmp.lt.s32.totalorder %v680, 1
  %vm700 = vcmp.lt.s32.totalorder %v680, 2
  %vm701 = vcmp.lt.s32.totalorder %v680, 3
  %vm702 = vcmp.lt.s32.totalorder %v680, 4
  %v703 = vsel %vm699, %v683, %v686
  %v704 = vsel %vm702, %v692, 2102212464
  %v705 = vsel %vm701, %v689, %v704
  %v706 = vsel %vm700, %v703, %v705
  %v707 = vsel %vm699, %v686, %v689
  %v708 = vsel %vm702, %v695, 920167782
  %v709 = vsel %vm701, %v692, %v708
  %v710 = vsel %vm700, %v707, %v709
  %v711 = vsel %vm699, %v689, %v692
  %v712 = vsel %vm702, %v698, 1326507024
  %v713 = vsel %vm701, %v695, %v712
  %v714 = vsel %vm700, %v711, %v713
  %v715 = vshll.u32 %v675, 8
  %v716 = vmul.u32.u64.compose %v715, %v714
  %v717 = vextract.low.u32 %v716
  %v718 = vextract.high.u32 %v716
  %v719 = vmul.u32.u64.compose %v715, %v710
  %v720 = vextract.low.u32 %v719
  %v721 = vextract.high.u32 %v719
  %v722 = vmul.u32 %v715, %v706
  %v723 = vadd.s32 %v718, %v720
  %vm724 = vc.u32 %v718, %v720
  %v725 = vadd.s32 %v721, 1
  %v726 = vsel %vm724, %v725, %v721
  %v727 = vadd.s32 %v722, %v726
  %v728 = vadd.s32 %v727, 536870912
  %v729 = vshrl.u32 %v728, 30
  %v730 = vshll.u32 %v729, 30
  %v731 = vsub.s32 %v727, %v730
  %vm732 = vcmp.lt.s32.totalorder %v731, 0
  %v733 = vsub.s32 0, %v731
  %v734 = vsel %vm732, %v733, %v731
  %v735 = vclz %v734
  %v736 = vsub.s32 %v735, 2
  %vm737 = vcmp.gt.s32.totalorder 0, %v736
  %v738 = vsel %vm737, 0, %v736
  %v739 = vsub.s32 32, %v738
  %v740 = vshll.u32 %v731, %v738
  %v741 = vshrl.u32 %v723, %v739
  %v742 = vor.u32 %v740, %v741
  %v743 = vsub.s32 4294967266, %v738
  %v744 = vadd.s32 %v743, 127
  %v745 = vshll.u32 %v744, 23
  %v746 = vor.u32 4788187, %v745
  %v747 = vand.u32 2147483647, %v746
  %v749 = vcvt.s32.f32 %v742
  %v750 = vmul.f32 %v749, %v747
  %v751 = vxor.u32 %v750, 2147483648
  %v752 = vsel %vm669, %v751, %v750
  %v753 = vsub.s32 4, %v729
  %v754 = vsel %vm669, %v753, %v729
  %v755 = vsel %vm668, %v495, %v752
  %v756 = vsel %vm668, 0, %v754
  %v757 = vcosq.f32.pop %v755
  %v758 = vsinq.f32.pop %v755
  %vm759 = vweird.f32 %v495
  %v760 = vadd.s32 %v756, 3
  %v761 = vand.u32 %v760, 3
  %vm762 = vcmp.lt.s32.totalorder %v761, 2
  %vm763 = vcmp.eq.s32.totalorder %v761, 0
  %v764 = vxor.u32 %v758, 2147483648
  %v765 = vsel %vm763, %v757, %v764
  %vm766 = vcmp.eq.s32.totalorder %v761, 2
  %v767 = vxor.u32 %v757, 2147483648
  %v768 = vsel %vm766, %v767, %v758
  %v769 = vsel %vm762, %v765, %v768
  %v770 = vsel %vm759, nan, %v769
  %v771 = vmul.f32 %v770, -9.81
  %v772 = vand.u32 2147483647, %v495
  %vm773 = vcmp.le.f32.partialorder %v772, 0.7853982
  %vm774 = vcmp.lt.s32.totalorder %v495, 0
  %v775 = vand.u32 %v495, 2139095040
  %v776 = vshrl.u32 %v775, 23
  %v777 = vsub.s32 %v776, 127
  %v778 = vand.u32 2147483647, %v495
  %v779 = vand.u32 %v778, 8388607
  %v780 = vor.u32 %v779, 8388608
  %v781 = vsub.s32 0, %v780
  %v782 = vadd.s32 %v777, 1
  %vm783 = vcmp.gt.s32.totalorder %v782, 0
  %v784 = vsel %vm783, %v782, 0
  %v785 = vshrl.u32 %v784, 5
  %v786 = vand.u32 %v784, 31
  %v787 = vsub.s32 32, %v786
  %v788 = vshrl.u32 683565275, %v787
  %v789 = vshll.u32 683565275, %v786
  %v790 = vshrl.u32 2475754826, %v787
  %v791 = vor.u32 %v789, %v790
  %v792 = vshll.u32 2475754826, %v786
  %v793 = vshrl.u32 2131351028, %v787
  %v794 = vor.u32 %v792, %v793
  %v795 = vshll.u32 2131351028, %v786
  %v796 = vshrl.u32 2102212464, %v787
  %v797 = vor.u32 %v795, %v796
  %v798 = vshll.u32 2102212464, %v786
  %v799 = vshrl.u32 920167782, %v787
  %v800 = vor.u32 %v798, %v799
  %v801 = vshll.u32 920167782, %v786
  %v802 = vshrl.u32 1326507024, %v787
  %v803 = vor.u32 %v801, %v802
  %vm804 = vcmp.lt.s32.totalorder %v785, 1
  %vm805 = vcmp.lt.s32.totalorder %v785, 2
  %vm806 = vcmp.lt.s32.totalorder %v785, 3
  %vm807 = vcmp.lt.s32.totalorder %v785, 4
  %v808 = vsel %vm804, %v788, %v791
  %v809 = vsel %vm807, %v797, 2102212464
  %v810 = vsel %vm806, %v794, %v809
  %v811 = vsel %vm805, %v808, %v810
  %v812 = vsel %vm804, %v791, %v794
  %v813 = vsel %vm807, %v800, 920167782
  %v814 = vsel %vm806, %v797, %v813
  %v815 = vsel %vm805, %v812, %v814
  %v816 = vsel %vm804, %v794, %v797
  %v817 = vsel %vm807, %v803, 1326507024
  %v818 = vsel %vm806, %v800, %v817
  %v819 = vsel %vm805, %v816, %v818
  %v820 = vshll.u32 %v780, 8
  %v821 = vmul.u32.u64.compose %v820, %v819
  %v822 = vextract.low.u32 %v821
  %v823 = vextract.high.u32 %v821
  %v824 = vmul.u32.u64.compose %v820, %v815
  %v825 = vextract.low.u32 %v824
  %v826 = vextract.high.u32 %v824
  %v827 = vmul.u32 %v820, %v811
  %v828 = vadd.s32 %v823, %v825
  %vm829 = vc.u32 %v823, %v825
  %v830 = vadd.s32 %v826, 1
  %v831 = vsel %vm829, %v830, %v826
  %v832 = vadd.s32 %v827, %v831
  %v833 = vadd.s32 %v832, 536870912
  %v834 = vshrl.u32 %v833, 30
  %v835 = vshll.u32 %v834, 30
  %v836 = vsub.s32 %v832, %v835
  %vm837 = vcmp.lt.s32.totalorder %v836, 0
  %v838 = vsub.s32 0, %v836
  %v839 = vsel %vm837, %v838, %v836
  %v840 = vclz %v839
  %v841 = vsub.s32 %v840, 2
  %vm842 = vcmp.gt.s32.totalorder 0, %v841
  %v843 = vsel %vm842, 0, %v841
  %v844 = vsub.s32 32, %v843
  %v845 = vshll.u32 %v836, %v843
  %v846 = vshrl.u32 %v828, %v844
  %v847 = vor.u32 %v845, %v846
  %v848 = vsub.s32 4294967266, %v843
  %v849 = vadd.s32 %v848, 127
  %v850 = vshll.u32 %v849, 23
  %v851 = vor.u32 4788187, %v850
  %v852 = vand.u32 2147483647, %v851
  %v854 = vcvt.s32.f32 %v847
  %v855 = vmul.f32 %v854, %v852
  %v856 = vxor.u32 %v855, 2147483648
  %v857 = vsel %vm774, %v856, %v855
  %v858 = vsub.s32 4, %v834
  %v859 = vsel %vm774, %v858, %v834
  %v860 = vsel %vm773, %v495, %v857
  %v861 = vsel %vm773, 0, %v859
  %v862 = vcosq.f32.pop %v860
  %v863 = vsinq.f32.pop %v860
  %vm864 = vweird.f32 %v495
  %v865 = vand.u32 %v861, 3
  %vm866 = vcmp.lt.s32.totalorder %v865, 2
  %vm867 = vcmp.eq.s32.totalorder %v865, 0
  %v868 = vxor.u32 %v863, 2147483648
  %v869 = vsel %vm867, %v862, %v868
  %vm870 = vcmp.eq.s32.totalorder %v865, 2
  %v871 = vxor.u32 %v862, 2147483648
  %v872 = vsel %vm870, %v871, %v863
  %v873 = vsel %vm866, %v869, %v872
  %v874 = vsel %vm864, nan, %v873
  %v875 = vmul.f32 %v666, %v874
  %v876 = vadd.f32 %v771, %v875
  %v877 = vmul.f32 %v876, 2.0
  %v878 = vmul.f32 %v601, 0.016666668
  %v879 = vadd.f32 %v461, %v878
  %v880 = vmul.f32 %v604, 0.016666668
  %v881 = vadd.f32 %v463, %v880
  %v882 = vmul.f32 %v607, 0.016666668
  %v883 = vadd.f32 %v465, %v882
  %v884 = vmul.f32 %v565, 0.016666668
  %v885 = vadd.f32 %v467, %v884
  %v886 = vmul.f32 %v571, 0.016666668
  %v887 = vadd.f32 %v469, %v886
  %v888 = vmul.f32 %v577, 0.016666668
  %v889 = vadd.f32 %v471, %v888
  %v890 = vmul.f32 %v509, 0.016666668
  %v891 = vadd.f32 %v473, %v890
  %v892 = vmul.f32 %v618, 0.016666668
  %v893 = vadd.f32 %v475, %v892
  %v894 = vmul.f32 %v620, 0.016666668
  %v895 = vadd.f32 %v477, %v894
  %v896 = vmul.f32 %v622, 0.016666668
  %v897 = vadd.f32 %v479, %v896
  %v898 = vmul.f32 %v644, 0.016666668
  %v899 = vadd.f32 %v481, %v898
  %v900 = vmul.f32 %v647, 0.016666668
  %v901 = vadd.f32 %v483, %v900
  %v902 = vmul.f32 %v648, 0.016666668
  %v903 = vadd.f32 %v485, %v902
  %v904 = vmul.f32 %v877, 0.016666668
  %v905 = vadd.f32 %v487, %v904
  %v906 = vmul.f32 %v565, 0.025
  %v907 = vadd.f32 %v20, %v906
  %v908 = vmul.f32 %v571, 0.025
  %v909 = vadd.f32 %v23, %v908
  %v910 = vmul.f32 %v577, 0.025
  %v911 = vadd.f32 %v26, %v910
  %v912 = vmul.f32 %v509, 0.025
  %v913 = vadd.f32 %v29, %v912
  %v914 = vmul.f32 %v618, 0.025
  %v915 = vadd.f32 %v32, %v914
  %v916 = vmul.f32 %v620, 0.025
  %v917 = vadd.f32 %v35, %v916
  %v918 = vmul.f32 %v622, 0.025
  %v919 = vadd.f32 %v38, %v918
  %v920 = vmul.f32 %v644, 0.025
  %v921 = vadd.f32 %v41, %v920
  %v922 = vmul.f32 %v647, 0.025
  %v923 = vadd.f32 %v44, %v922
  %v924 = vmul.f32 %v648, 0.025
  %v925 = vadd.f32 %v47, %v924
  %v926 = vmul.f32 %v877, 0.025
  %v927 = vadd.f32 %v50, %v926
  %v928 = vmul.f32 %v907, %v907
  %v929 = vmul.f32 %v909, %v909
  %v930 = vadd.f32 %v928, %v929
  %v931 = vmul.f32 %v911, %v911
  %v932 = vadd.f32 %v930, %v931
  %v933 = vadd.f32 %v932, 1.0
  %v934 = vrcp.pop %v933
  %v935 = vmul.f32 %v933, %v934
  %v936 = vsub.f32 2.0, %v935
  %v937 = vmul.f32 %v934, %v936
  %v938 = vsub.f32 1.0, %v932
  %v939 = vmul.f32 %v938, %v937
  %v940 = vmul.f32 %v907, 2.0
  %v941 = vmul.f32 %v940, %v937
  %v942 = vmul.f32 %v909, 2.0
  %v943 = vmul.f32 %v942, %v937
  %v944 = vmul.f32 %v911, 2.0
  %v945 = vmul.f32 %v944, %v937
  %v946 = vmul.f32 %v943, -2.0
  %v947 = vmul.f32 %v946, -21.582
  %v948 = vmul.f32 %v941, 2.0
  %v949 = vmul.f32 %v948, -21.582
  %v950 = vmul.f32 %v945, %v949
  %v951 = vsub.f32 0.0, %v945
  %v952 = vmul.f32 %v951, %v947
  %v953 = vsub.f32 0.0, %v941
  %v954 = vmul.f32 %v953, %v949
  %v955 = vmul.f32 %v943, %v947
  %v956 = vadd.f32 %v954, %v955
  %v957 = vmul.f32 %v939, %v947
  %v958 = vadd.f32 %v957, %v950
  %v959 = vmul.f32 %v939, %v949
  %v960 = vadd.f32 %v959, %v952
  %v961 = vadd.f32 %v956, -21.582
  %v962 = vadd.f32 %v69, %v961
  %v963 = vmul.f32 %v907, %v921
  %v964 = vmul.f32 %v909, %v923
  %v965 = vadd.f32 %v963, %v964
  %v966 = vmul.f32 %v911, %v925
  %v967 = vadd.f32 %v965, %v966
  %v968 = vmul.f32 %v909, %v925
  %v969 = vmul.f32 %v911, %v923
  %v970 = vsub.f32 %v968, %v969
  %v971 = vmul.f32 %v911, %v921
  %v972 = vmul.f32 %v907, %v925
  %v973 = vsub.f32 %v971, %v972
  %v974 = vmul.f32 %v907, %v923
  %v975 = vmul.f32 %v909, %v921
  %v976 = vsub.f32 %v974, %v975
  %v977 = vmul.f32 %v938, %v921
  %v978 = vmul.f32 %v970, 2.0
  %v979 = vadd.f32 %v977, %v978
  %v980 = vmul.f32 %v967, 2.0
  %v981 = vmul.f32 %v980, %v907
  %v982 = vadd.f32 %v979, %v981
  %v983 = vmul.f32 %v982, 0.25
  %v984 = vmul.f32 %v938, %v923
  %v985 = vmul.f32 %v973, 2.0
  %v986 = vadd.f32 %v984, %v985
  %v987 = vmul.f32 %v980, %v909
  %v988 = vadd.f32 %v986, %v987
  %v989 = vmul.f32 %v988, 0.25
  %v990 = vmul.f32 %v938, %v925
  %v991 = vmul.f32 %v976, 2.0
  %v992 = vadd.f32 %v990, %v991
  %v993 = vmul.f32 %v980, %v911
  %v994 = vadd.f32 %v992, %v993
  %v995 = vmul.f32 %v994, 0.25
  %v996 = vmul.f32 %v943, %v919
  %v997 = vmul.f32 %v945, %v917
  %v998 = vsub.f32 %v996, %v997
  %v999 = vmul.f32 %v945, %v915
  %v1000 = vmul.f32 %v941, %v919
  %v1001 = vsub.f32 %v999, %v1000
  %v1002 = vmul.f32 %v941, %v917
  %v1003 = vmul.f32 %v943, %v915
  %v1004 = vsub.f32 %v1002, %v1003
  %v1005 = vmul.f32 %v998, 2.0
  %v1006 = vmul.f32 %v1001, 2.0
  %v1007 = vmul.f32 %v1004, 2.0
  %v1008 = vmul.f32 %v943, %v1007
  %v1009 = vmul.f32 %v945, %v1006
  %v1010 = vsub.f32 %v1008, %v1009
  %v1011 = vmul.f32 %v945, %v1005
  %v1012 = vmul.f32 %v941, %v1007
  %v1013 = vsub.f32 %v1011, %v1012
  %v1014 = vmul.f32 %v941, %v1006
  %v1015 = vmul.f32 %v943, %v1005
  %v1016 = vsub.f32 %v1014, %v1015
  %v1017 = vmul.f32 %v939, %v1005
  %v1018 = vadd.f32 %v915, %v1017
  %v1019 = vadd.f32 %v1018, %v1010
  %v1020 = vmul.f32 %v939, %v1006
  %v1021 = vadd.f32 %v917, %v1020
  %v1022 = vadd.f32 %v1021, %v1013
  %v1023 = vmul.f32 %v939, %v1007
  %v1024 = vadd.f32 %v919, %v1023
  %v1025 = vadd.f32 %v1024, %v1016
  %v1026 = vmul.f32 %v923, %v919
  %v1027 = vmul.f32 %v925, %v917
  %v1028 = vsub.f32 %v1026, %v1027
  %v1029 = vmul.f32 %v925, %v915
  %v1030 = vmul.f32 %v921, %v919
  %v1031 = vsub.f32 %v1029, %v1030
  %v1032 = vmul.f32 %v921, %v917
  %v1033 = vmul.f32 %v923, %v915
  %v1034 = vsub.f32 %v1032, %v1033
  %v1035 = vmul.f32 %v958, 0.45454547
  %v1036 = vsub.f32 %v1035, %v1028
  %v1037 = vmul.f32 %v960, 0.45454547
  %v1038 = vsub.f32 %v1037, %v1031
  %v1039 = vmul.f32 %v962, 0.45454547
  %v1040 = vsub.f32 %v1039, %v1034
  %v1041 = vmul.f32 %v921, 0.01566089
  %v1042 = vmul.f32 %v923, 3.18037e-06
  %v1043 = vadd.f32 %v1041, %v1042
  %v1044 = vmul.f32 %v921, 3.18037e-06
  %v1045 = vmul.f32 %v923, 0.01562078
  %v1046 = vadd.f32 %v1044, %v1045
  %v1047 = vmul.f32 %v925, 0.02226868
  %v1048 = vmul.f32 %v923, %v1047
  %v1049 = vmul.f32 %v925, %v1046
  %v1050 = vsub.f32 %v1048, %v1049
  %v1051 = vmul.f32 %v925, %v1043
  %v1052 = vmul.f32 %v921, %v1047
  %v1053 = vsub.f32 %v1051, %v1052
  %v1054 = vmul.f32 %v921, %v1046
  %v1055 = vmul.f32 %v923, %v1043
  %v1056 = vsub.f32 %v1054, %v1055
  %v1057 = vsub.f32 %v81, %v1050
  %v1058 = vsub.f32 %v87, %v1053
  %v1059 = vsub.f32 %v91, %v1056
  %v1060 = vmul.f32 %v1057, 63.853333
  %v1061 = vmul.f32 %v1058, -0.013000454
  %v1062 = vadd.f32 %v1060, %v1061
  %v1063 = vmul.f32 %v1057, -0.013000454
  %v1064 = vmul.f32 %v1058, 64.017296
  %v1065 = vadd.f32 %v1063, %v1064
  %v1066 = vmul.f32 %v1059, 44.90612
  %v1067 = vmul.f32 %v943, %v1040
  %v1068 = vmul.f32 %v945, %v1038
  %v1069 = vsub.f32 %v1067, %v1068
  %v1070 = vmul.f32 %v1069, 2.0
  %v1071 = vmul.f32 %v945, %v1036
  %v1072 = vmul.f32 %v941, %v1040
  %v1073 = vsub.f32 %v1071, %v1072
  %v1074 = vmul.f32 %v1073, 2.0
  %v1075 = vmul.f32 %v941, %v1038
  %v1076 = vmul.f32 %v943, %v1036
  %v1077 = vsub.f32 %v1075, %v1076
  %v1078 = vmul.f32 %v1077, 2.0
  %v1079 = vmul.f32 %v943, %v1078
  %v1080 = vmul.f32 %v945, %v1074
  %v1081 = vsub.f32 %v1079, %v1080
  %v1082 = vmul.f32 %v939, %v1070
  %v1083 = vadd.f32 %v1036, %v1082
  %v1084 = vadd.f32 %v1083, %v1081
  %v1085 = vand.u32 2147483647, %v913
  %vm1086 = vcmp.le.f32.partialorder %v1085, 0.7853982
  %vm1087 = vcmp.lt.s32.totalorder %v913, 0
  %v1088 = vand.u32 %v913, 2139095040
  %v1089 = vshrl.u32 %v1088, 23
  %v1090 = vsub.s32 %v1089, 127
  %v1091 = vand.u32 2147483647, %v913
  %v1092 = vand.u32 %v1091, 8388607
  %v1093 = vor.u32 %v1092, 8388608
  %v1094 = vsub.s32 0, %v1093
  %v1095 = vadd.s32 %v1090, 1
  %vm1096 = vcmp.gt.s32.totalorder %v1095, 0
  %v1097 = vsel %vm1096, %v1095, 0
  %v1098 = vshrl.u32 %v1097, 5
  %v1099 = vand.u32 %v1097, 31
  %v1100 = vsub.s32 32, %v1099
  %v1101 = vshrl.u32 683565275, %v1100
  %v1102 = vshll.u32 683565275, %v1099
  %v1103 = vshrl.u32 2475754826, %v1100
  %v1104 = vor.u32 %v1102, %v1103
  %v1105 = vshll.u32 2475754826, %v1099
  %v1106 = vshrl.u32 2131351028, %v1100
  %v1107 = vor.u32 %v1105, %v1106
  %v1108 = vshll.u32 2131351028, %v1099
  %v1109 = vshrl.u32 2102212464, %v1100
  %v1110 = vor.u32 %v1108, %v1109
  %v1111 = vshll.u32 2102212464, %v1099
  %v1112 = vshrl.u32 920167782, %v1100
  %v1113 = vor.u32 %v1111, %v1112
  %v1114 = vshll.u32 920167782, %v1099
  %v1115 = vshrl.u32 1326507024, %v1100
  %v1116 = vor.u32 %v1114, %v1115
  %vm1117 = vcmp.lt.s32.totalorder %v1098, 1
  %vm1118 = vcmp.lt.s32.totalorder %v1098, 2
  %vm1119 = vcmp.lt.s32.totalorder %v1098, 3
  %vm1120 = vcmp.lt.s32.totalorder %v1098, 4
  %v1121 = vsel %vm1117, %v1101, %v1104
  %v1122 = vsel %vm1120, %v1110, 2102212464
  %v1123 = vsel %vm1119, %v1107, %v1122
  %v1124 = vsel %vm1118, %v1121, %v1123
  %v1125 = vsel %vm1117, %v1104, %v1107
  %v1126 = vsel %vm1120, %v1113, 920167782
  %v1127 = vsel %vm1119, %v1110, %v1126
  %v1128 = vsel %vm1118, %v1125, %v1127
  %v1129 = vsel %vm1117, %v1107, %v1110
  %v1130 = vsel %vm1120, %v1116, 1326507024
  %v1131 = vsel %vm1119, %v1113, %v1130
  %v1132 = vsel %vm1118, %v1129, %v1131
  %v1133 = vshll.u32 %v1093, 8
  %v1134 = vmul.u32.u64.compose %v1133, %v1132
  %v1135 = vextract.low.u32 %v1134
  %v1136 = vextract.high.u32 %v1134
  %v1137 = vmul.u32.u64.compose %v1133, %v1128
  %v1138 = vextract.low.u32 %v1137
  %v1139 = vextract.high.u32 %v1137
  %v1140 = vmul.u32 %v1133, %v1124
  %v1141 = vadd.s32 %v1136, %v1138
  %vm1142 = vc.u32 %v1136, %v1138
  %v1143 = vadd.s32 %v1139, 1
  %v1144 = vsel %vm1142, %v1143, %v1139
  %v1145 = vadd.s32 %v1140, %v1144
  %v1146 = vadd.s32 %v1145, 536870912
  %v1147 = vshrl.u32 %v1146, 30
  %v1148 = vshll.u32 %v1147, 30
  %v1149 = vsub.s32 %v1145, %v1148
  %vm1150 = vcmp.lt.s32.totalorder %v1149, 0
  %v1151 = vsub.s32 0, %v1149
  %v1152 = vsel %vm1150, %v1151, %v1149
  %v1153 = vclz %v1152
  %v1154 = vsub.s32 %v1153, 2
  %vm1155 = vcmp.gt.s32.totalorder 0, %v1154
  %v1156 = vsel %vm1155, 0, %v1154
  %v1157 = vsub.s32 32, %v1156
  %v1158 = vshll.u32 %v1149, %v1156
  %v1159 = vshrl.u32 %v1141, %v1157
  %v1160 = vor.u32 %v1158, %v1159
  %v1161 = vsub.s32 4294967266, %v1156
  %v1162 = vadd.s32 %v1161, 127
  %v1163 = vshll.u32 %v1162, 23
  %v1164 = vor.u32 4788187, %v1163
  %v1165 = vand.u32 2147483647, %v1164
  %v1167 = vcvt.s32.f32 %v1160
  %v1168 = vmul.f32 %v1167, %v1165
  %v1169 = vxor.u32 %v1168, 2147483648
  %v1170 = vsel %vm1087, %v1169, %v1168
  %v1171 = vsub.s32 4, %v1147
  %v1172 = vsel %vm1087, %v1171, %v1147
  %v1173 = vsel %vm1086, %v913, %v1170
  %v1174 = vsel %vm1086, 0, %v1172
  %v1175 = vcosq.f32.pop %v1173
  %v1176 = vsinq.f32.pop %v1173
  %vm1177 = vweird.f32 %v913
  %v1178 = vadd.s32 %v1174, 3
  %v1179 = vand.u32 %v1178, 3
  %vm1180 = vcmp.lt.s32.totalorder %v1179, 2
  %vm1181 = vcmp.eq.s32.totalorder %v1179, 0
  %v1182 = vxor.u32 %v1176, 2147483648
  %v1183 = vsel %vm1181, %v1175, %v1182
  %vm1184 = vcmp.eq.s32.totalorder %v1179, 2
  %v1185 = vxor.u32 %v1175, 2147483648
  %v1186 = vsel %vm1184, %v1185, %v1176
  %v1187 = vsel %vm1180, %v1183, %v1186
  %v1188 = vsel %vm1177, nan, %v1187
  %v1189 = vmul.f32 %v1188, -9.81
  %v1190 = vand.u32 2147483647, %v913
  %vm1191 = vcmp.le.f32.partialorder %v1190, 0.7853982
  %vm1192 = vcmp.lt.s32.totalorder %v913, 0
  %v1193 = vand.u32 %v913, 2139095040
  %v1194 = vshrl.u32 %v1193, 23
  %v1195 = vsub.s32 %v1194, 127
  %v1196 = vand.u32 2147483647, %v913
  %v1197 = vand.u32 %v1196, 8388607
  %v1198 = vor.u32 %v1197, 8388608
  %v1199 = vsub.s32 0, %v1198
  %v1200 = vadd.s32 %v1195, 1
  %vm1201 = vcmp.gt.s32.totalorder %v1200, 0
  %v1202 = vsel %vm1201, %v1200, 0
  %v1203 = vshrl.u32 %v1202, 5
  %v1204 = vand.u32 %v1202, 31
  %v1205 = vsub.s32 32, %v1204
  %v1206 = vshrl.u32 683565275, %v1205
  %v1207 = vshll.u32 683565275, %v1204
  %v1208 = vshrl.u32 2475754826, %v1205
  %v1209 = vor.u32 %v1207, %v1208
  %v1210 = vshll.u32 2475754826, %v1204
  %v1211 = vshrl.u32 2131351028, %v1205
  %v1212 = vor.u32 %v1210, %v1211
  %v1213 = vshll.u32 2131351028, %v1204
  %v1214 = vshrl.u32 2102212464, %v1205
  %v1215 = vor.u32 %v1213, %v1214
  %v1216 = vshll.u32 2102212464, %v1204
  %v1217 = vshrl.u32 920167782, %v1205
  %v1218 = vor.u32 %v1216, %v1217
  %v1219 = vshll.u32 920167782, %v1204
  %v1220 = vshrl.u32 1326507024, %v1205
  %v1221 = vor.u32 %v1219, %v1220
  %vm1222 = vcmp.lt.s32.totalorder %v1203, 1
  %vm1223 = vcmp.lt.s32.totalorder %v1203, 2
  %vm1224 = vcmp.lt.s32.totalorder %v1203, 3
  %vm1225 = vcmp.lt.s32.totalorder %v1203, 4
  %v1226 = vsel %vm1222, %v1206, %v1209
  %v1227 = vsel %vm1225, %v1215, 2102212464
  %v1228 = vsel %vm1224, %v1212, %v1227
  %v1229 = vsel %vm1223, %v1226, %v1228
  %v1230 = vsel %vm1222, %v1209, %v1212
  %v1231 = vsel %vm1225, %v1218, 920167782
  %v1232 = vsel %vm1224, %v1215, %v1231
  %v1233 = vsel %vm1223, %v1230, %v1232
  %v1234 = vsel %vm1222, %v1212, %v1215
  %v1235 = vsel %vm1225, %v1221, 1326507024
  %v1236 = vsel %vm1224, %v1218, %v1235
  %v1237 = vsel %vm1223, %v1234, %v1236
  %v1238 = vshll.u32 %v1198, 8
  %v1239 = vmul.u32.u64.compose %v1238, %v1237
  %v1240 = vextract.low.u32 %v1239
  %v1241 = vextract.high.u32 %v1239
  %v1242 = vmul.u32.u64.compose %v1238, %v1233
  %v1243 = vextract.low.u32 %v1242
  %v1244 = vextract.high.u32 %v1242
  %v1245 = vmul.u32 %v1238, %v1229
  %v1246 = vadd.s32 %v1241, %v1243
  %vm1247 = vc.u32 %v1241, %v1243
  %v1248 = vadd.s32 %v1244, 1
  %v1249 = vsel %vm1247, %v1248, %v1244
  %v1250 = vadd.s32 %v1245, %v1249
  %v1251 = vadd.s32 %v1250, 536870912
  %v1252 = vshrl.u32 %v1251, 30
  %v1253 = vshll.u32 %v1252, 30
  %v1254 = vsub.s32 %v1250, %v1253
  %vm1255 = vcmp.lt.s32.totalorder %v1254, 0
  %v1256 = vsub.s32 0, %v1254
  %v1257 = vsel %vm1255, %v1256, %v1254
  %v1258 = vclz %v1257
  %v1259 = vsub.s32 %v1258, 2
  %vm1260 = vcmp.gt.s32.totalorder 0, %v1259
  %v1261 = vsel %vm1260, 0, %v1259
  %v1262 = vsub.s32 32, %v1261
  %v1263 = vshll.u32 %v1254, %v1261
  %v1264 = vshrl.u32 %v1246, %v1262
  %v1265 = vor.u32 %v1263, %v1264
  %v1266 = vsub.s32 4294967266, %v1261
  %v1267 = vadd.s32 %v1266, 127
  %v1268 = vshll.u32 %v1267, 23
  %v1269 = vor.u32 4788187, %v1268
  %v1270 = vand.u32 2147483647, %v1269
  %v1272 = vcvt.s32.f32 %v1265
  %v1273 = vmul.f32 %v1272, %v1270
  %v1274 = vxor.u32 %v1273, 2147483648
  %v1275 = vsel %vm1192, %v1274, %v1273
  %v1276 = vsub.s32 4, %v1252
  %v1277 = vsel %vm1192, %v1276, %v1252
  %v1278 = vsel %vm1191, %v913, %v1275
  %v1279 = vsel %vm1191, 0, %v1277
  %v1280 = vcosq.f32.pop %v1278
  %v1281 = vsinq.f32.pop %v1278
  %vm1282 = vweird.f32 %v913
  %v1283 = vand.u32 %v1279, 3
  %vm1284 = vcmp.lt.s32.totalorder %v1283, 2
  %vm1285 = vcmp.eq.s32.totalorder %v1283, 0
  %v1286 = vxor.u32 %v1281, 2147483648
  %v1287 = vsel %vm1285, %v1280, %v1286
  %vm1288 = vcmp.eq.s32.totalorder %v1283, 2
  %v1289 = vxor.u32 %v1280, 2147483648
  %v1290 = vsel %vm1288, %v1289, %v1281
  %v1291 = vsel %vm1284, %v1287, %v1290
  %v1292 = vsel %vm1282, nan, %v1291
  %v1293 = vmul.f32 %v1084, %v1292
  %v1294 = vadd.f32 %v1189, %v1293
  %v1295 = vmul.f32 %v1294, 2.0
  %v1296 = vmul.f32 %v1019, 0.016666668
  %v1297 = vadd.f32 %v879, %v1296
  %v1298 = vmul.f32 %v1022, 0.016666668
  %v1299 = vadd.f32 %v881, %v1298
  %v1300 = vmul.f32 %v1025, 0.016666668
  %v1301 = vadd.f32 %v883, %v1300
  %v1302 = vmul.f32 %v983, 0.016666668
  %v1303 = vadd.f32 %v885, %v1302
  %v1304 = vmul.f32 %v989, 0.016666668
  %v1305 = vadd.f32 %v887, %v1304
  %v1306 = vmul.f32 %v995, 0.016666668
  %v1307 = vadd.f32 %v889, %v1306
  %v1308 = vmul.f32 %v927, 0.016666668
  %v1309 = vadd.f32 %v891, %v1308
  %v1310 = vmul.f32 %v1036, 0.016666668
  %v1311 = vadd.f32 %v893, %v1310
  %v1312 = vmul.f32 %v1038, 0.016666668
  %v1313 = vadd.f32 %v895, %v1312
  %v1314 = vmul.f32 %v1040, 0.016666668
  %v1315 = vadd.f32 %v897, %v1314
  %v1316 = vmul.f32 %v1062, 0.016666668
  %v1317 = vadd.f32 %v899, %v1316
  %v1318 = vmul.f32 %v1065, 0.016666668
  %v1319 = vadd.f32 %v901, %v1318
  %v1320 = vmul.f32 %v1066, 0.016666668
  %v1321 = vadd.f32 %v903, %v1320
  %v1322 = vmul.f32 %v1295, 0.016666668
  %v1323 = vadd.f32 %v905, %v1322
  %v1324 = vmul.f32 %v983, 0.05
  %v1325 = vadd.f32 %v20, %v1324
  %v1326 = vmul.f32 %v989, 0.05
  %v1327 = vadd.f32 %v23, %v1326
  %v1328 = vmul.f32 %v995, 0.05
  %v1329 = vadd.f32 %v26, %v1328
  %v1330 = vmul.f32 %v927, 0.05
  %v1331 = vadd.f32 %v29, %v1330
  %v1332 = vmul.f32 %v1036, 0.05
  %v1333 = vadd.f32 %v32, %v1332
  %v1334 = vmul.f32 %v1038, 0.05
  %v1335 = vadd.f32 %v35, %v1334
  %v1336 = vmul.f32 %v1040, 0.05
  %v1337 = vadd.f32 %v38, %v1336
  %v1338 = vmul.f32 %v1062, 0.05
  %v1339 = vadd.f32 %v41, %v1338
  %v1340 = vmul.f32 %v1065, 0.05
  %v1341 = vadd.f32 %v44, %v1340
  %v1342 = vmul.f32 %v1066, 0.05
  %v1343 = vadd.f32 %v47, %v1342
  %v1344 = vmul.f32 %v1295, 0.05
  %v1345 = vadd.f32 %v50, %v1344
  %v1346 = vmul.f32 %v1325, %v1325
  %v1347 = vmul.f32 %v1327, %v1327
  %v1348 = vadd.f32 %v1346, %v1347
  %v1349 = vmul.f32 %v1329, %v1329
  %v1350 = vadd.f32 %v1348, %v1349
  %v1351 = vadd.f32 %v1350, 1.0
  %v1352 = vrcp.pop %v1351
  %v1353 = vmul.f32 %v1351, %v1352
  %v1354 = vsub.f32 2.0, %v1353
  %v1355 = vmul.f32 %v1352, %v1354
  %v1356 = vsub.f32 1.0, %v1350
  %v1357 = vmul.f32 %v1356, %v1355
  %v1358 = vmul.f32 %v1325, 2.0
  %v1359 = vmul.f32 %v1358, %v1355
  %v1360 = vmul.f32 %v1327, 2.0
  %v1361 = vmul.f32 %v1360, %v1355
  %v1362 = vmul.f32 %v1329, 2.0
  %v1363 = vmul.f32 %v1362, %v1355
  %v1364 = vmul.f32 %v1361, -2.0
  %v1365 = vmul.f32 %v1364, -21.582
  %v1366 = vmul.f32 %v1359, 2.0
  %v1367 = vmul.f32 %v1366, -21.582
  %v1368 = vmul.f32 %v1363, %v1367
  %v1369 = vsub.f32 0.0, %v1363
  %v1370 = vmul.f32 %v1369, %v1365
  %v1371 = vsub.f32 0.0, %v1359
  %v1372 = vmul.f32 %v1371, %v1367
  %v1373 = vmul.f32 %v1361, %v1365
  %v1374 = vadd.f32 %v1372, %v1373
  %v1375 = vmul.f32 %v1357, %v1365
  %v1376 = vadd.f32 %v1375, %v1368
  %v1377 = vmul.f32 %v1357, %v1367
  %v1378 = vadd.f32 %v1377, %v1370
  %v1379 = vadd.f32 %v1374, -21.582
  %v1380 = vadd.f32 %v69, %v1379
  %v1381 = vmul.f32 %v1325, %v1339
  %v1382 = vmul.f32 %v1327, %v1341
  %v1383 = vadd.f32 %v1381, %v1382
  %v1384 = vmul.f32 %v1329, %v1343
  %v1385 = vadd.f32 %v1383, %v1384
  %v1386 = vmul.f32 %v1327, %v1343
  %v1387 = vmul.f32 %v1329, %v1341
  %v1388 = vsub.f32 %v1386, %v1387
  %v1389 = vmul.f32 %v1329, %v1339
  %v1390 = vmul.f32 %v1325, %v1343
  %v1391 = vsub.f32 %v1389, %v1390
  %v1392 = vmul.f32 %v1325, %v1341
  %v1393 = vmul.f32 %v1327, %v1339
  %v1394 = vsub.f32 %v1392, %v1393
  %v1395 = vmul.f32 %v1356, %v1339
  %v1396 = vmul.f32 %v1388, 2.0
  %v1397 = vadd.f32 %v1395, %v1396
  %v1398 = vmul.f32 %v1385, 2.0
  %v1399 = vmul.f32 %v1398, %v1325
  %v1400 = vadd.f32 %v1397, %v1399
  %v1401 = vmul.f32 %v1400, 0.25
  %v1402 = vmul.f32 %v1356, %v1341
  %v1403 = vmul.f32 %v1391, 2.0
  %v1404 = vadd.f32 %v1402, %v1403
  %v1405 = vmul.f32 %v1398, %v1327
  %v1406 = vadd.f32 %v1404, %v1405
  %v1407 = vmul.f32 %v1406, 0.25
  %v1408 = vmul.f32 %v1356, %v1343
  %v1409 = vmul.f32 %v1394, 2.0
  %v1410 = vadd.f32 %v1408, %v1409
  %v1411 = vmul.f32 %v1398, %v1329
  %v1412 = vadd.f32 %v1410, %v1411
  %v1413 = vmul.f32 %v1412, 0.25
  %v1414 = vmul.f32 %v1361, %v1337
  %v1415 = vmul.f32 %v1363, %v1335
  %v1416 = vsub.f32 %v1414, %v1415
  %v1417 = vmul.f32 %v1363, %v1333
  %v1418 = vmul.f32 %v1359, %v1337
  %v1419 = vsub.f32 %v1417, %v1418
  %v1420 = vmul.f32 %v1359, %v1335
  %v1421 = vmul.f32 %v1361, %v1333
  %v1422 = vsub.f32 %v1420, %v1421
  %v1423 = vmul.f32 %v1416, 2.0
  %v1424 = vmul.f32 %v1419, 2.0
  %v1425 = vmul.f32 %v1422, 2.0
  %v1426 = vmul.f32 %v1361, %v1425
  %v1427 = vmul.f32 %v1363, %v1424
  %v1428 = vsub.f32 %v1426, %v1427
  %v1429 = vmul.f32 %v1363, %v1423
  %v1430 = vmul.f32 %v1359, %v1425
  %v1431 = vsub.f32 %v1429, %v1430
  %v1432 = vmul.f32 %v1359, %v1424
  %v1433 = vmul.f32 %v1361, %v1423
  %v1434 = vsub.f32 %v1432, %v1433
  %v1435 = vmul.f32 %v1357, %v1423
  %v1436 = vadd.f32 %v1333, %v1435
  %v1437 = vadd.f32 %v1436, %v1428
  %v1438 = vmul.f32 %v1357, %v1424
  %v1439 = vadd.f32 %v1335, %v1438
  %v1440 = vadd.f32 %v1439, %v1431
  %v1441 = vmul.f32 %v1357, %v1425
  %v1442 = vadd.f32 %v1337, %v1441
  %v1443 = vadd.f32 %v1442, %v1434
  %v1444 = vmul.f32 %v1341, %v1337
  %v1445 = vmul.f32 %v1343, %v1335
  %v1446 = vsub.f32 %v1444, %v1445
  %v1447 = vmul.f32 %v1343, %v1333
  %v1448 = vmul.f32 %v1339, %v1337
  %v1449 = vsub.f32 %v1447, %v1448
  %v1450 = vmul.f32 %v1339, %v1335
  %v1451 = vmul.f32 %v1341, %v1333
  %v1452 = vsub.f32 %v1450, %v1451
  %v1453 = vmul.f32 %v1376, 0.45454547
  %v1454 = vsub.f32 %v1453, %v1446
  %v1455 = vmul.f32 %v1378, 0.45454547
  %v1456 = vsub.f32 %v1455, %v1449
  %v1457 = vmul.f32 %v1380, 0.45454547
  %v1458 = vsub.f32 %v1457, %v1452
  %v1459 = vmul.f32 %v1339, 0.01566089
  %v1460 = vmul.f32 %v1341, 3.18037e-06
  %v1461 = vadd.f32 %v1459, %v1460
  %v1462 = vmul.f32 %v1339, 3.18037e-06
  %v1463 = vmul.f32 %v1341, 0.01562078
  %v1464 = vadd.f32 %v1462, %v1463
  %v1465 = vmul.f32 %v1343, 0.02226868
  %v1466 = vmul.f32 %v1341, %v1465
  %v1467 = vmul.f32 %v1343, %v1464
  %v1468 = vsub.f32 %v1466, %v1467
  %v1469 = vmul.f32 %v1343, %v1461
  %v1470 = vmul.f32 %v1339, %v1465
  %v1471 = vsub.f32 %v1469, %v1470
  %v1472 = vmul.f32 %v1339, %v1464
  %v1473 = vmul.f32 %v1341, %v1461
  %v1474 = vsub.f32 %v1472, %v1473
  %v1475 = vsub.f32 %v81, %v1468
  %v1476 = vsub.f32 %v87, %v1471
  %v1477 = vsub.f32 %v91, %v1474
  %v1478 = vmul.f32 %v1475, 63.853333
  %v1479 = vmul.f32 %v1476, -0.013000454
  %v1480 = vadd.f32 %v1478, %v1479
  %v1481 = vmul.f32 %v1475, -0.013000454
  %v1482 = vmul.f32 %v1476, 64.017296
  %v1483 = vadd.f32 %v1481, %v1482
  %v1484 = vmul.f32 %v1477, 44.90612
  %v1485 = vmul.f32 %v1361, %v1458
  %v1486 = vmul.f32 %v1363, %v1456
  %v1487 = vsub.f32 %v1485, %v1486
  %v1488 = vmul.f32 %v1487, 2.0
  %v1489 = vmul.f32 %v1363, %v1454
  %v1490 = vmul.f32 %v1359, %v1458
  %v1491 = vsub.f32 %v1489, %v1490
  %v1492 = vmul.f32 %v1491, 2.0
  %v1493 = vmul.f32 %v1359, %v1456
  %v1494 = vmul.f32 %v1361, %v1454
  %v1495 = vsub.f32 %v1493, %v1494
  %v1496 = vmul.f32 %v1495, 2.0
  %v1497 = vmul.f32 %v1361, %v1496
  %v1498 = vmul.f32 %v1363, %v1492
  %v1499 = vsub.f32 %v1497, %v1498
  %v1500 = vmul.f32 %v1357, %v1488
  %v1501 = vadd.f32 %v1454, %v1500
  %v1502 = vadd.f32 %v1501, %v1499
  %v1503 = vand.u32 2147483647, %v1331
  %vm1504 = vcmp.le.f32.partialorder %v1503, 0.7853982
  %vm1505 = vcmp.lt.s32.totalorder %v1331, 0
  %v1506 = vand.u32 %v1331, 2139095040
  %v1507 = vshrl.u32 %v1506, 23
  %v1508 = vsub.s32 %v1507, 127
  %v1509 = vand.u32 2147483647, %v1331
  %v1510 = vand.u32 %v1509, 8388607
  %v1511 = vor.u32 %v1510, 8388608
  %v1512 = vsub.s32 0, %v1511
  %v1513 = vadd.s32 %v1508, 1
  %vm1514 = vcmp.gt.s32.totalorder %v1513, 0
  %v1515 = vsel %vm1514, %v1513, 0
  %v1516 = vshrl.u32 %v1515, 5
  %v1517 = vand.u32 %v1515, 31
  %v1518 = vsub.s32 32, %v1517
  %v1519 = vshrl.u32 683565275, %v1518
  %v1520 = vshll.u32 683565275, %v1517
  %v1521 = vshrl.u32 2475754826, %v1518
  %v1522 = vor.u32 %v1520, %v1521
  %v1523 = vshll.u32 2475754826, %v1517
  %v1524 = vshrl.u32 2131351028, %v1518
  %v1525 = vor.u32 %v1523, %v1524
  %v1526 = vshll.u32 2131351028, %v1517
  %v1527 = vshrl.u32 2102212464, %v1518
  %v1528 = vor.u32 %v1526, %v1527
  %v1529 = vshll.u32 2102212464, %v1517
  %v1530 = vshrl.u32 920167782, %v1518
  %v1531 = vor.u32 %v1529, %v1530
  %v1532 = vshll.u32 920167782, %v1517
  %v1533 = vshrl.u32 1326507024, %v1518
  %v1534 = vor.u32 %v1532, %v1533
  %vm1535 = vcmp.lt.s32.totalorder %v1516, 1
  %vm1536 = vcmp.lt.s32.totalorder %v1516, 2
  %vm1537 = vcmp.lt.s32.totalorder %v1516, 3
  %vm1538 = vcmp.lt.s32.totalorder %v1516, 4
  %v1539 = vsel %vm1535, %v1519, %v1522
  %v1540 = vsel %vm1538, %v1528, 2102212464
  %v1541 = vsel %vm1537, %v1525, %v1540
  %v1542 = vsel %vm1536, %v1539, %v1541
  %v1543 = vsel %vm1535, %v1522, %v1525
  %v1544 = vsel %vm1538, %v1531, 920167782
  %v1545 = vsel %vm1537, %v1528, %v1544
  %v1546 = vsel %vm1536, %v1543, %v1545
  %v1547 = vsel %vm1535, %v1525, %v1528
  %v1548 = vsel %vm1538, %v1534, 1326507024
  %v1549 = vsel %vm1537, %v1531, %v1548
  %v1550 = vsel %vm1536, %v1547, %v1549
  %v1551 = vshll.u32 %v1511, 8
  %v1552 = vmul.u32.u64.compose %v1551, %v1550
  %v1553 = vextract.low.u32 %v1552
  %v1554 = vextract.high.u32 %v1552
  %v1555 = vmul.u32.u64.compose %v1551, %v1546
  %v1556 = vextract.low.u32 %v1555
  %v1557 = vextract.high.u32 %v1555
  %v1558 = vmul.u32 %v1551, %v1542
  %v1559 = vadd.s32 %v1554, %v1556
  %vm1560 = vc.u32 %v1554, %v1556
  %v1561 = vadd.s32 %v1557, 1
  %v1562 = vsel %vm1560, %v1561, %v1557
  %v1563 = vadd.s32 %v1558, %v1562
  %v1564 = vadd.s32 %v1563, 536870912
  %v1565 = vshrl.u32 %v1564, 30
  %v1566 = vshll.u32 %v1565, 30
  %v1567 = vsub.s32 %v1563, %v1566
  %vm1568 = vcmp.lt.s32.totalorder %v1567, 0
  %v1569 = vsub.s32 0, %v1567
  %v1570 = vsel %vm1568, %v1569, %v1567
  %v1571 = vclz %v1570
  %v1572 = vsub.s32 %v1571, 2
  %vm1573 = vcmp.gt.s32.totalorder 0, %v1572
  %v1574 = vsel %vm1573, 0, %v1572
  %v1575 = vsub.s32 32, %v1574
  %v1576 = vshll.u32 %v1567, %v1574
  %v1577 = vshrl.u32 %v1559, %v1575
  %v1578 = vor.u32 %v1576, %v1577
  %v1579 = vsub.s32 4294967266, %v1574
  %v1580 = vadd.s32 %v1579, 127
  %v1581 = vshll.u32 %v1580, 23
  %v1582 = vor.u32 4788187, %v1581
  %v1583 = vand.u32 2147483647, %v1582
  %v1585 = vcvt.s32.f32 %v1578
  %v1586 = vmul.f32 %v1585, %v1583
  %v1587 = vxor.u32 %v1586, 2147483648
  %v1588 = vsel %vm1505, %v1587, %v1586
  %v1589 = vsub.s32 4, %v1565
  %v1590 = vsel %vm1505, %v1589, %v1565
  %v1591 = vsel %vm1504, %v1331, %v1588
  %v1592 = vsel %vm1504, 0, %v1590
  %v1593 = vcosq.f32.pop %v1591
  %v1594 = vsinq.f32.pop %v1591
  %vm1595 = vweird.f32 %v1331
  %v1596 = vadd.s32 %v1592, 3
  %v1597 = vand.u32 %v1596, 3
  %vm1598 = vcmp.lt.s32.totalorder %v1597, 2
  %vm1599 = vcmp.eq.s32.totalorder %v1597, 0
  %v1600 = vxor.u32 %v1594, 2147483648
  %v1601 = vsel %vm1599, %v1593, %v1600
  %vm1602 = vcmp.eq.s32.totalorder %v1597, 2
  %v1603 = vxor.u32 %v1593, 2147483648
  %v1604 = vsel %vm1602, %v1603, %v1594
  %v1605 = vsel %vm1598, %v1601, %v1604
  %v1606 = vsel %vm1595, nan, %v1605
  %v1607 = vmul.f32 %v1606, -9.81
  %v1608 = vand.u32 2147483647, %v1331
  %vm1609 = vcmp.le.f32.partialorder %v1608, 0.7853982
  %vm1610 = vcmp.lt.s32.totalorder %v1331, 0
  %v1611 = vand.u32 %v1331, 2139095040
  %v1612 = vshrl.u32 %v1611, 23
  %v1613 = vsub.s32 %v1612, 127
  %v1614 = vand.u32 2147483647, %v1331
  %v1615 = vand.u32 %v1614, 8388607
  %v1616 = vor.u32 %v1615, 8388608
  %v1617 = vsub.s32 0, %v1616
  %v1618 = vadd.s32 %v1613, 1
  %vm1619 = vcmp.gt.s32.totalorder %v1618, 0
  %v1620 = vsel %vm1619, %v1618, 0
  %v1621 = vshrl.u32 %v1620, 5
  %v1622 = vand.u32 %v1620, 31
  %v1623 = vsub.s32 32, %v1622
  %v1624 = vshrl.u32 683565275, %v1623
  %v1625 = vshll.u32 683565275, %v1622
  %v1626 = vshrl.u32 2475754826, %v1623
  %v1627 = vor.u32 %v1625, %v1626
  %v1628 = vshll.u32 2475754826, %v1622
  %v1629 = vshrl.u32 2131351028, %v1623
  %v1630 = vor.u32 %v1628, %v1629
  %v1631 = vshll.u32 2131351028, %v1622
  %v1632 = vshrl.u32 2102212464, %v1623
  %v1633 = vor.u32 %v1631, %v1632
  %v1634 = vshll.u32 2102212464, %v1622
  %v1635 = vshrl.u32 920167782, %v1623
  %v1636 = vor.u32 %v1634, %v1635
  %v1637 = vshll.u32 920167782, %v1622
  %v1638 = vshrl.u32 1326507024, %v1623
  %v1639 = vor.u32 %v1637, %v1638
  %vm1640 = vcmp.lt.s32.totalorder %v1621, 1
  %vm1641 = vcmp.lt.s32.totalorder %v1621, 2
  %vm1642 = vcmp.lt.s32.totalorder %v1621, 3
  %vm1643 = vcmp.lt.s32.totalorder %v1621, 4
  %v1644 = vsel %vm1640, %v1624, %v1627
  %v1645 = vsel %vm1643, %v1633, 2102212464
  %v1646 = vsel %vm1642, %v1630, %v1645
  %v1647 = vsel %vm1641, %v1644, %v1646
  %v1648 = vsel %vm1640, %v1627, %v1630
  %v1649 = vsel %vm1643, %v1636, 920167782
  %v1650 = vsel %vm1642, %v1633, %v1649
  %v1651 = vsel %vm1641, %v1648, %v1650
  %v1652 = vsel %vm1640, %v1630, %v1633
  %v1653 = vsel %vm1643, %v1639, 1326507024
  %v1654 = vsel %vm1642, %v1636, %v1653
  %v1655 = vsel %vm1641, %v1652, %v1654
  %v1656 = vshll.u32 %v1616, 8
  %v1657 = vmul.u32.u64.compose %v1656, %v1655
  %v1658 = vextract.low.u32 %v1657
  %v1659 = vextract.high.u32 %v1657
  %v1660 = vmul.u32.u64.compose %v1656, %v1651
  %v1661 = vextract.low.u32 %v1660
  %v1662 = vextract.high.u32 %v1660
  %v1663 = vmul.u32 %v1656, %v1647
  %v1664 = vadd.s32 %v1659, %v1661
  %vm1665 = vc.u32 %v1659, %v1661
  %v1666 = vadd.s32 %v1662, 1
  %v1667 = vsel %vm1665, %v1666, %v1662
  %v1668 = vadd.s32 %v1663, %v1667
  %v1669 = vadd.s32 %v1668, 536870912
  %v1670 = vshrl.u32 %v1669, 30
  %v1671 = vshll.u32 %v1670, 30
  %v1672 = vsub.s32 %v1668, %v1671
  %vm1673 = vcmp.lt.s32.totalorder %v1672, 0
  %v1674 = vsub.s32 0, %v1672
  %v1675 = vsel %vm1673, %v1674, %v1672
  %v1676 = vclz %v1675
  %v1677 = vsub.s32 %v1676, 2
  %vm1678 = vcmp.gt.s32.totalorder 0, %v1677
  %v1679 = vsel %vm1678, 0, %v1677
  %v1680 = vsub.s32 32, %v1679
  %v1681 = vshll.u32 %v1672, %v1679
  %v1682 = vshrl.u32 %v1664, %v1680
  %v1683 = vor.u32 %v1681, %v1682
  %v1684 = vsub.s32 4294967266, %v1679
  %v1685 = vadd.s32 %v1684, 127
  %v1686 = vshll.u32 %v1685, 23
  %v1687 = vor.u32 4788187, %v1686
  %v1688 = vand.u32 2147483647, %v1687
  %v1690 = vcvt.s32.f32 %v1683
  %v1691 = vmul.f32 %v1690, %v1688
  %v1692 = vxor.u32 %v1691, 2147483648
  %v1693 = vsel %vm1610, %v1692, %v1691
  %v1694 = vsub.s32 4, %v1670
  %v1695 = vsel %vm1610, %v1694, %v1670
  %v1696 = vsel %vm1609, %v1331, %v1693
  %v1697 = vsel %vm1609, 0, %v1695
  %v1698 = vcosq.f32.pop %v1696
  %v1699 = vsinq.f32.pop %v1696
  %vm1700 = vweird.f32 %v1331
  %v1701 = vand.u32 %v1697, 3
  %vm1702 = vcmp.lt.s32.totalorder %v1701, 2
  %vm1703 = vcmp.eq.s32.totalorder %v1701, 0
  %v1704 = vxor.u32 %v1699, 2147483648
  %v1705 = vsel %vm1703, %v1698, %v1704
  %vm1706 = vcmp.eq.s32.totalorder %v1701, 2
  %v1707 = vxor.u32 %v1698, 2147483648
  %v1708 = vsel %vm1706, %v1707, %v1699
  %v1709 = vsel %vm1702, %v1705, %v1708
  %v1710 = vsel %vm1700, nan, %v1709
  %v1711 = vmul.f32 %v1502, %v1710
  %v1712 = vadd.f32 %v1607, %v1711
  %v1713 = vmul.f32 %v1712, 2.0
  %v1714 = vmul.f32 %v1437, 0.008333334
  %v1715 = vadd.f32 %v1297, %v1714
  %v1716 = vmul.f32 %v1440, 0.008333334
  %v1717 = vadd.f32 %v1299, %v1716
  %v1718 = vmul.f32 %v1443, 0.008333334
  %v1719 = vadd.f32 %v1301, %v1718
  %v1720 = vmul.f32 %v1401, 0.008333334
  %v1721 = vadd.f32 %v1303, %v1720
  %v1722 = vmul.f32 %v1407, 0.008333334
  %v1723 = vadd.f32 %v1305, %v1722
  %v1724 = vmul.f32 %v1413, 0.008333334
  %v1725 = vadd.f32 %v1307, %v1724
  %v1726 = vmul.f32 %v1345, 0.008333334
  %v1727 = vadd.f32 %v1309, %v1726
  %v1728 = vmul.f32 %v1454, 0.008333334
  %v1729 = vadd.f32 %v1311, %v1728
  %v1730 = vmul.f32 %v1456, 0.008333334
  %v1731 = vadd.f32 %v1313, %v1730
  %v1732 = vmul.f32 %v1458, 0.008333334
  %v1733 = vadd.f32 %v1315, %v1732
  %v1734 = vmul.f32 %v1480, 0.008333334
  %v1735 = vadd.f32 %v1317, %v1734
  %v1736 = vmul.f32 %v1483, 0.008333334
  %v1737 = vadd.f32 %v1319, %v1736
  %v1738 = vmul.f32 %v1484, 0.008333334
  %v1739 = vadd.f32 %v1321, %v1738
  %v1740 = vmul.f32 %v1713, 0.008333334
  %v1741 = vadd.f32 %v1323, %v1740
  %1742 = vst [vmem:[%s2] sm:$0xff] %v1715
  %s1743 = scalar_lea.vmem %s2, %s12
  %1744 = vst [vmem:[%s1743] sm:$0xff] %v1717
  %s1745 = scalar_lea.vmem %s2, %s15
  %1746 = vst [vmem:[%s1745] sm:$0xff] %v1719
  %s1747 = scalar_lea.vmem %s2, %s18
  %1748 = vst [vmem:[%s1747] sm:$0xff] %v1721
  %s1749 = scalar_lea.vmem %s2, %s21
  %1750 = vst [vmem:[%s1749] sm:$0xff] %v1723
  %s1751 = scalar_lea.vmem %s2, %s24
  %1752 = vst [vmem:[%s1751] sm:$0xff] %v1725
  %s1753 = scalar_lea.vmem %s2, %s27
  %1754 = vst [vmem:[%s1753] sm:$0xff] %v1727
  %s1755 = scalar_lea.vmem %s2, %s30
  %1756 = vst [vmem:[%s1755] sm:$0xff] %v1729
  %s1757 = scalar_lea.vmem %s2, %s33
  %1758 = vst [vmem:[%s1757] sm:$0xff] %v1731
  %s1759 = scalar_lea.vmem %s2, %s36
  %1760 = vst [vmem:[%s1759] sm:$0xff] %v1733
  %s1761 = scalar_lea.vmem %s2, %s39
  %1762 = vst [vmem:[%s1761] sm:$0xff] %v1735
  %s1763 = scalar_lea.vmem %s2, %s42
  %1764 = vst [vmem:[%s1763] sm:$0xff] %v1737
  %s1765 = scalar_lea.vmem %s2, %s45
  %1766 = vst [vmem:[%s1765] sm:$0xff] %v1739
  %s1767 = scalar_lea.vmem %s2, %s48
  %1768 = vst [vmem:[%s1767] sm:$0xff] %v1741
  // Predicated region
  $region10: #{flying_cartpole_step.1} parent=0 // pred_check
    _
  $region11: #{flying_cartpole_step.1} parent=0 // pred_check_branch
    %1770 = sbr.rel (0) target = $region13
  $region12: #{flying_cartpole_step.1} parent=0 // pred_region
    _
  $region13: #{flying_cartpole_step.1} parent=0 // pred_fallthru
    _
  // Predicated region
  $region14: #{flying_cartpole_step.1} parent=0 // pred_check
    _
  $region15: #{flying_cartpole_step.1} parent=0 // pred_check_branch
    %1772 = sbr.rel (0) target = $region17
  $region16: #{flying_cartpole_step.1} parent=0 // pred_region
    _
  $region17: #{flying_cartpole_step.1} parent=0 // pred_fallthru
    _

</llo_original>
